<compile_context>
chip_gen: v7x
topology: tpu7x:2x2x1
jax: 0.10.0
libtpu: 0.0.40
codegen_flags: <defaults>
</compile_context>

<pallas_src>
import functools

import jax
import jax.numpy as jnp
import numpy as np
from jax import lax
from jax.experimental import pallas as pl
from jax.experimental.pallas import tpu as pltpu


# Per-step blocks are a few MiB at most (TILE rows ~1024), so 32 MiB of scoped
# VMEM is plenty on every generation (v7x physical VMEM is 64 MiB).
_VMEM_LIMIT = 32 * 1024 * 1024


# ----------------------------- Pallas kernel -----------------------------

def _spade_kernel(tap_ref, ws_ref, bs_ref, wg_ref, bg_ref, wb_ref, bb_ref,
                  x_ref, o_ref, *, TH, W):
    """Fused SPADE tile: shared conv+ReLU, gamma/beta convs, norm, modulate.

    tap_ref: (1, 1, TH+2, W, 9*ic) bf16 -- seg im2col rows for this tile plus
             one halo row above/below (reflect indices resolved in the wrapper),
             so the hidden halo is recomputed locally and never read from HBM.
    """
    C = o_ref.shape[-1]
    P = TH * W
    PH = (TH + 2) * W
    Ks = tap_ref.shape[-1]

    # --- mlp_shared: one K=72 bf16 MXU matmul over TH+2 rows, ReLU, bf16. ---
    taps = tap_ref[0, 0].reshape(PH, Ks)                         # (PH, 9*ic)
    h = jnp.dot(taps, ws_ref[...], preferred_element_type=jnp.float32)
    h = jnp.maximum(h + bs_ref[...], 0.0).astype(jnp.bfloat16)
    h = h.reshape(TH + 2, W, C)

    # Reflect pad hidden along W in VMEM (torch reflect: col -1 -> 1, W -> W-2).
    hp = jnp.concatenate([h[:, 1:2, :], h, h[:, W - 2:W - 1, :]], axis=1)

    # --- mlp_gamma / mlp_beta: 3 accumulating dots of K = 3*C each. ---------
    # The (P, 3C) tap matrix for each dy is built once in VMEM and reused for
    # both convs; peak VMEM is ~1/3 of a full (P, 9C) im2col.
    acc_g = jnp.zeros((P, C), jnp.float32)
    acc_b = jnp.zeros((P, C), jnp.float32)
    for dy in range(3):
        tap_dy = jnp.concatenate(
            [hp[dy:dy + TH, dx:dx + W, :].reshape(P, C) for dx in range(3)],
            axis=-1)                                             # (P, 3C) bf16
        acc_g = acc_g + jnp.dot(tap_dy, wg_ref[dy],
                                preferred_element_type=jnp.float32)
        acc_b = acc_b + jnp.dot(tap_dy, wb_ref[dy],
                                preferred_element_type=jnp.float32)
    gamma = (acc_g + bg_ref[...]).reshape(TH, W, C)
    beta = (acc_b + bb_ref[...]).reshape(TH, W, C)

    # --- PositionalNorm2d in f32 (torch var default is unbiased, C > 1). ----
    x = x_ref[0]                                                 # (TH, W, C)
    mean = jnp.mean(x, axis=-1, keepdims=True)
    d = x - mean
    var = jnp.sum(d * d, axis=-1, keepdims=True) * (1.0 / (C - 1))
    norm = d * lax.rsqrt(var + 1e-8)

    o_ref[0] = ((1.0 + gamma) * norm + beta).astype(o_ref.dtype)


# ----------------------------- wrapper -----------------------------

def _conv_weight_matrix(w_oihw):
    """torch (Cout, Cin, 3, 3) -> (9*Cin, Cout), rows ordered (ky, kx, cin)."""
    cin, cout = w_oihw.shape[1], w_oihw.shape[0]
    return jnp.transpose(w_oihw, (2, 3, 1, 0)).reshape(9 * cin, cout)


def _pick_tile_h(H, W):
    """Largest divisor of H giving ~<=1024 output rows per grid step."""
    target = max(1, 1024 // max(W, 1))
    th = 1
    for d in range(1, H + 1):
        if H % d == 0 and d <= target:
            th = d
    return th


def spade_forward(params, x_nhwc, seg_nhwc, *, tile_h=None):
    """(1 + mlp_gamma(h)) * PositionalNorm2d(x) + mlp_beta(h), h = relu(shared(seg))."""
    N, H, W, C = x_nhwc.shape
    if seg_nhwc.shape[1:3] != (H, W):
        # TODO(synk): F.interpolate default 'nearest' index rounding differs
        # from jax.image.resize for non-integer scales; plain-JAX glue only.
        seg_nhwc = jax.image.resize(
            seg_nhwc, (N, H, W, seg_nhwc.shape[-1]), method="nearest")
    ic = seg_nhwc.shape[-1]
    Ks = 9 * ic

    TH = tile_h if tile_h is not None else _pick_tile_h(H, W)
    assert H % TH == 0, "tile_h must divide H"
    T = H // TH

    # Wrapper-side im2col for seg in bf16: ic is tiny, so the 9x replication is
    # negligible HBM traffic and buys a single fused K=9*ic contraction.
    seg_b = seg_nhwc.astype(jnp.bfloat16)
    sp = jnp.pad(seg_b, ((0, 0), (1, 1), (1, 1), (0, 0)), mode="reflect")
    taps = jnp.concatenate(
        [sp[:, dy:dy + H, dx:dx + W, :] for dy in range(3) for dx in range(3)],
        axis=-1)                                                 # (N, H, W, 9*ic)

    # Overlapping (TH+2)-row windows with reflect row indices: each tile owns
    # the taps it needs to recompute its own hidden halo rows in-kernel.
    r = np.arange(T)[:, None] * TH + np.arange(-1, TH + 1)[None, :]
    r = np.where(r < 0, -r, r)
    r = np.where(r >= H, 2 * (H - 1) - r, r)
    taps_win = taps[:, r]                                        # (N, T, TH+2, W, 9*ic)

    wsk = _conv_weight_matrix(params["shared_w"]).astype(jnp.bfloat16)     # (9*ic, C)
    wgk = _conv_weight_matrix(params["gamma_w"]).astype(jnp.bfloat16)
    wbk = _conv_weight_matrix(params["beta_w"]).astype(jnp.bfloat16)
    wgk = wgk.reshape(3, 3 * C, C)                               # grouped by ky
    wbk = wbk.reshape(3, 3 * C, C)
    bsk = params["shared_b"].reshape(1, C).astype(jnp.float32)
    bgk = params["gamma_b"].reshape(1, C).astype(jnp.float32)
    bbk = params["beta_b"].reshape(1, C).astype(jnp.float32)

    return pl.pallas_call(
        functools.partial(_spade_kernel, TH=TH, W=W),
        out_shape=jax.ShapeDtypeStruct((N, H, W, C), jnp.float32),
        grid=(N, T),
        in_specs=[
            pl.BlockSpec((1, 1, TH + 2, W, Ks), lambda n, t: (n, t, 0, 0, 0)),
            pl.BlockSpec((Ks, C), lambda n, t: (0, 0)),
            pl.BlockSpec((1, C), lambda n, t: (0, 0)),
            pl.BlockSpec((3, 3 * C, C), lambda n, t: (0, 0, 0)),
            pl.BlockSpec((1, C), lambda n, t: (0, 0)),
            pl.BlockSpec((3, 3 * C, C), lambda n, t: (0, 0, 0)),
            pl.BlockSpec((1, C), lambda n, t: (0, 0)),
            pl.BlockSpec((1, TH, W, C), lambda n, t: (n, t, 0, 0)),
        ],
        out_specs=pl.BlockSpec((1, TH, W, C), lambda n, t: (n, t, 0, 0)),
        compiler_params=pltpu.CompilerParams(
            dimension_semantics=("parallel", "parallel"),
            vmem_limit_bytes=_VMEM_LIMIT),
    )(taps_win, wsk, bsk, wgk, bgk, wbk, bbk, x_nhwc)


# ----------------------------- parameters -----------------------------

def make_params(key, dim, ic, scale=0.1):
    ks = jax.random.split(key, 6)

    def conv_init(kw, kb, cout, cin):
        w = jax.random.normal(kw, (cout, cin, 3, 3), jnp.float32) * scale
        b = jax.random.normal(kb, (cout,), jnp.float32) * scale
        return w, b

    sw, sb = conv_init(ks[0], ks[1], dim, ic)
    gw, gb = conv_init(ks[2], ks[3], dim, dim)
    bw, bb = conv_init(ks[4], ks[5], dim, dim)
    # NOTE: SPADE constructs a CoordAtt module, but forward() never calls it,
    # so no parameters / compute are needed for it.
    return {"shared_w": sw, "shared_b": sb,
            "gamma_w": gw, "gamma_b": gb,
            "beta_w": bw, "beta_b": bb}


# ----------------------------- pure-JAX reference -----------------------------

def _conv3x3_ref(x, w_oihw, b):
    xp = jnp.pad(x, ((0, 0), (1, 1), (1, 1), (0, 0)), mode="reflect")
    w_hwio = jnp.transpose(w_oihw, (2, 3, 1, 0))
    y = lax.conv_general_dilated(
        xp.astype(jnp.bfloat16), w_hwio.astype(jnp.bfloat16), (1, 1), "VALID",
        dimension_numbers=("NHWC", "HWIO", "NHWC"),
        preferred_element_type=jnp.float32)
    return y + b


def _spade_ref(params, x, seg):
    if seg.shape[1:3] != x.shape[1:3]:
        seg = jax.image.resize(
            seg, (x.shape[0], x.shape[1], x.shape[2], seg.shape[-1]),
            method="nearest")
    hidden = jax.nn.relu(_conv3x3_ref(seg, params["shared_w"], params["shared_b"]))
    hidden = hidden.astype(jnp.bfloat16)   # Pallas path keeps hidden in bf16
    gamma = _conv3x3_ref(hidden, params["gamma_w"], params["gamma_b"])
    beta = _conv3x3_ref(hidden, params["beta_w"], params["beta_b"])
    mean = x.mean(axis=-1, keepdims=True)
    var = x.var(axis=-1, keepdims=True, ddof=1)
    norm = (x - mean) / jnp.sqrt(var + 1e-8)
    return (1.0 + gamma) * norm + beta


# ----------------------------- main -----------------------------

if __name__ == "__main__":
    # dim = 128 so the channel axis exactly fills the 128-lane vreg.
    dim, ic = 128, 8
    N, H, W = 2, 16, 16

    key = jax.random.PRNGKey(0)
    kx, kseg, kp = jax.random.split(key, 3)

    # PyTorch-style NCHW inputs
    x_nchw = jax.random.normal(kx, (N, dim, H, W), jnp.float32)
    seg_nchw = jax.random.normal(kseg, (N, ic, H, W), jnp.float32)
    params = make_params(kp, dim, ic)

    x_nhwc = jnp.transpose(x_nchw, (0, 2, 3, 1))
    seg_nhwc = jnp.transpose(seg_nchw, (0, 2, 3, 1))

    # tile_h=8 -> grid (2, 2): exercises the row tiling and the reflect halo
    # recompute across tile boundaries at the demo shape.
    fwd = jax.jit(functools.partial(spade_forward, tile_h=8))
    out_nhwc = jax.block_until_ready(fwd(params, x_nhwc, seg_nhwc))

    ref_nhwc = _spade_ref(params, x_nhwc, seg_nhwc)
    np.testing.assert_allclose(np.asarray(out_nhwc), np.asarray(ref_nhwc),
                               rtol=5e-3, atol=5e-3)

    out_nchw = jnp.transpose(out_nhwc, (0, 3, 1, 2))   # back to torch layout
    assert out_nchw.shape == x_nchw.shape
    print("KERNEL_OK")
</pallas_src>

<mosaic_0001>
module attributes {stable_mosaic.version = 11 : i64} {
  func.func @_spade_kernel(%arg0: i32, %arg1: i32, %arg2: memref<1x1x10x16x72xbf16, #tpu.memory_space<vmem>>, %arg3: memref<72x128xbf16, #tpu.memory_space<vmem>>, %arg4: memref<1x128xf32, #tpu.memory_space<vmem>>, %arg5: memref<3x384x128xbf16, #tpu.memory_space<vmem>>, %arg6: memref<1x128xf32, #tpu.memory_space<vmem>>, %arg7: memref<3x384x128xbf16, #tpu.memory_space<vmem>>, %arg8: memref<1x128xf32, #tpu.memory_space<vmem>>, %arg9: memref<1x8x16x128xf32, #tpu.memory_space<vmem>>, %arg10: memref<1x8x16x128xf32, #tpu.memory_space<vmem>>) attributes {dimension_semantics = [#tpu.dimension_semantics<parallel>, #tpu.dimension_semantics<parallel>], iteration_bounds = array<i64: 2, 2>, scalar_prefetch = 0 : i64, scratch_operands = 0 : i64, tpu.core_type = #tpu.core_type<tc>, window_params = [{transform_indices = @transform_0, window_bounds = array<i64: 1, 1, 10, 16, 72>}, {pipeline_mode = #tpu.pipeline_mode<synchronous>, transform_indices = @transform_1, window_bounds = array<i64: 72, 128>}, {pipeline_mode = #tpu.pipeline_mode<synchronous>, transform_indices = @transform_2, window_bounds = array<i64: 1, 128>}, {pipeline_mode = #tpu.pipeline_mode<synchronous>, transform_indices = @transform_3, window_bounds = array<i64: 3, 384, 128>}, {pipeline_mode = #tpu.pipeline_mode<synchronous>, transform_indices = @transform_4, window_bounds = array<i64: 1, 128>}, {pipeline_mode = #tpu.pipeline_mode<synchronous>, transform_indices = @transform_5, window_bounds = array<i64: 3, 384, 128>}, {pipeline_mode = #tpu.pipeline_mode<synchronous>, transform_indices = @transform_6, window_bounds = array<i64: 1, 128>}, {transform_indices = @transform_7, window_bounds = array<i64: 1, 8, 16, 128>}, {transform_indices = @transform_8, window_bounds = array<i64: 1, 8, 16, 128>}]} {
    %c0 = arith.constant 0 : index
    %c0_0 = arith.constant 0 : index
    %c0_1 = arith.constant 0 : index
    %c0_2 = arith.constant 0 : index
    %c0_3 = arith.constant 0 : index
    %0 = vector.load %arg2[%c0, %c0_0, %c0_1, %c0_2, %c0_3] : memref<1x1x10x16x72xbf16, #tpu.memory_space<vmem>>, vector<1x1x10x16x72xbf16>
    %1 = vector.shape_cast %0 : vector<1x1x10x16x72xbf16> to vector<10x16x72xbf16>
    %2 = vector.shape_cast %1 : vector<10x16x72xbf16> to vector<160x72xbf16>
    %c0_4 = arith.constant 0 : index
    %c0_5 = arith.constant 0 : index
    %3 = vector.load %arg3[%c0_4, %c0_5] : memref<72x128xbf16, #tpu.memory_space<vmem>>, vector<72x128xbf16>
    %cst = arith.constant dense<0.000000e+00> : vector<160x128xf32>
    %4 = tpu.matmul %2, %3, %cst {dimension_numbers = #tpu.dot_dimension_numbers<[1], [0], [0], [1], [0, 0, 1, 1], [], []>} : vector<160x72xbf16>, vector<72x128xbf16>, vector<160x128xf32> -> vector<160x128xf32>
    %c0_6 = arith.constant 0 : index
    %c0_7 = arith.constant 0 : index
    %5 = vector.load %arg4[%c0_6, %c0_7] : memref<1x128xf32, #tpu.memory_space<vmem>>, vector<1x128xf32>
    %6 = vector.broadcast %5 : vector<1x128xf32> to vector<160x128xf32>
    %7 = arith.addf %4, %6 : vector<160x128xf32>
    %cst_8 = arith.constant 0.000000e+00 : f32
    %8 = vector.broadcast %cst_8 : f32 to vector<160x128xf32>
    %9 = arith.maximumf %7, %8 : vector<160x128xf32>
    %10 = arith.truncf %9 : vector<160x128xf32> to vector<160x128xbf16>
    %11 = vector.shape_cast %10 : vector<160x128xbf16> to vector<10x16x128xbf16>
    %12 = vector.extract_strided_slice %11 {offsets = [0, 1, 0], sizes = [10, 1, 128], strides = [1, 1, 1]} : vector<10x16x128xbf16> to vector<10x1x128xbf16>
    %13 = vector.extract_strided_slice %11 {offsets = [0, 14, 0], sizes = [10, 1, 128], strides = [1, 1, 1]} : vector<10x16x128xbf16> to vector<10x1x128xbf16>
    %14 = tpu.concatenate %12, %11, %13 in 1 : vector<10x1x128xbf16>, vector<10x16x128xbf16>, vector<10x1x128xbf16> -> vector<10x18x128xbf16>
    %cst_9 = arith.constant 0.000000e+00 : f32
    %15 = vector.broadcast %cst_9 : f32 to vector<128x128xf32>
    %cst_10 = arith.constant 0.000000e+00 : f32
    %16 = vector.broadcast %cst_10 : f32 to vector<128x128xf32>
    %17 = vector.extract_strided_slice %14 {offsets = [0, 0, 0], sizes = [8, 16, 128], strides = [1, 1, 1]} : vector<10x18x128xbf16> to vector<8x16x128xbf16>
    %18 = vector.shape_cast %17 : vector<8x16x128xbf16> to vector<128x128xbf16>
    %19 = vector.extract_strided_slice %14 {offsets = [0, 1, 0], sizes = [8, 16, 128], strides = [1, 1, 1]} : vector<10x18x128xbf16> to vector<8x16x128xbf16>
    %20 = vector.shape_cast %19 : vector<8x16x128xbf16> to vector<128x128xbf16>
    %21 = vector.extract_strided_slice %14 {offsets = [0, 2, 0], sizes = [8, 16, 128], strides = [1, 1, 1]} : vector<10x18x128xbf16> to vector<8x16x128xbf16>
    %22 = vector.shape_cast %21 : vector<8x16x128xbf16> to vector<128x128xbf16>
    %23 = tpu.concatenate %18, %20, %22 in 1 : vector<128x128xbf16>, vector<128x128xbf16>, vector<128x128xbf16> -> vector<128x384xbf16>
    %c0_11 = arith.constant 0 : index
    %c0_12 = arith.constant 0 : index
    %c0_13 = arith.constant 0 : index
    %24 = vector.load %arg5[%c0_11, %c0_12, %c0_13] : memref<3x384x128xbf16, #tpu.memory_space<vmem>>, vector<1x384x128xbf16>
    %25 = vector.shape_cast %24 : vector<1x384x128xbf16> to vector<384x128xbf16>
    %cst_14 = arith.constant dense<0.000000e+00> : vector<128x128xf32>
    %26 = tpu.matmul %23, %25, %cst_14 {dimension_numbers = #tpu.dot_dimension_numbers<[1], [0], [0], [1], [0, 0, 1, 1], [], []>} : vector<128x384xbf16>, vector<384x128xbf16>, vector<128x128xf32> -> vector<128x128xf32>
    %27 = arith.addf %15, %26 : vector<128x128xf32>
    %c0_15 = arith.constant 0 : index
    %c0_16 = arith.constant 0 : index
    %c0_17 = arith.constant 0 : index
    %28 = vector.load %arg7[%c0_15, %c0_16, %c0_17] : memref<3x384x128xbf16, #tpu.memory_space<vmem>>, vector<1x384x128xbf16>
    %29 = vector.shape_cast %28 : vector<1x384x128xbf16> to vector<384x128xbf16>
    %cst_18 = arith.constant dense<0.000000e+00> : vector<128x128xf32>
    %30 = tpu.matmul %23, %29, %cst_18 {dimension_numbers = #tpu.dot_dimension_numbers<[1], [0], [0], [1], [0, 0, 1, 1], [], []>} : vector<128x384xbf16>, vector<384x128xbf16>, vector<128x128xf32> -> vector<128x128xf32>
    %31 = arith.addf %16, %30 : vector<128x128xf32>
    %32 = vector.extract_strided_slice %14 {offsets = [1, 0, 0], sizes = [8, 16, 128], strides = [1, 1, 1]} : vector<10x18x128xbf16> to vector<8x16x128xbf16>
    %33 = vector.shape_cast %32 : vector<8x16x128xbf16> to vector<128x128xbf16>
    %34 = vector.extract_strided_slice %14 {offsets = [1, 1, 0], sizes = [8, 16, 128], strides = [1, 1, 1]} : vector<10x18x128xbf16> to vector<8x16x128xbf16>
    %35 = vector.shape_cast %34 : vector<8x16x128xbf16> to vector<128x128xbf16>
    %36 = vector.extract_strided_slice %14 {offsets = [1, 2, 0], sizes = [8, 16, 128], strides = [1, 1, 1]} : vector<10x18x128xbf16> to vector<8x16x128xbf16>
    %37 = vector.shape_cast %36 : vector<8x16x128xbf16> to vector<128x128xbf16>
    %38 = tpu.concatenate %33, %35, %37 in 1 : vector<128x128xbf16>, vector<128x128xbf16>, vector<128x128xbf16> -> vector<128x384xbf16>
    %c1 = arith.constant 1 : index
    %c0_19 = arith.constant 0 : index
    %c0_20 = arith.constant 0 : index
    %39 = vector.load %arg5[%c1, %c0_19, %c0_20] : memref<3x384x128xbf16, #tpu.memory_space<vmem>>, vector<1x384x128xbf16>
    %40 = vector.shape_cast %39 : vector<1x384x128xbf16> to vector<384x128xbf16>
    %cst_21 = arith.constant dense<0.000000e+00> : vector<128x128xf32>
    %41 = tpu.matmul %38, %40, %cst_21 {dimension_numbers = #tpu.dot_dimension_numbers<[1], [0], [0], [1], [0, 0, 1, 1], [], []>} : vector<128x384xbf16>, vector<384x128xbf16>, vector<128x128xf32> -> vector<128x128xf32>
    %42 = arith.addf %27, %41 : vector<128x128xf32>
    %c1_22 = arith.constant 1 : index
    %c0_23 = arith.constant 0 : index
    %c0_24 = arith.constant 0 : index
    %43 = vector.load %arg7[%c1_22, %c0_23, %c0_24] : memref<3x384x128xbf16, #tpu.memory_space<vmem>>, vector<1x384x128xbf16>
    %44 = vector.shape_cast %43 : vector<1x384x128xbf16> to vector<384x128xbf16>
    %cst_25 = arith.constant dense<0.000000e+00> : vector<128x128xf32>
    %45 = tpu.matmul %38, %44, %cst_25 {dimension_numbers = #tpu.dot_dimension_numbers<[1], [0], [0], [1], [0, 0, 1, 1], [], []>} : vector<128x384xbf16>, vector<384x128xbf16>, vector<128x128xf32> -> vector<128x128xf32>
    %46 = arith.addf %31, %45 : vector<128x128xf32>
    %47 = vector.extract_strided_slice %14 {offsets = [2, 0, 0], sizes = [8, 16, 128], strides = [1, 1, 1]} : vector<10x18x128xbf16> to vector<8x16x128xbf16>
    %48 = vector.shape_cast %47 : vector<8x16x128xbf16> to vector<128x128xbf16>
    %49 = vector.extract_strided_slice %14 {offsets = [2, 1, 0], sizes = [8, 16, 128], strides = [1, 1, 1]} : vector<10x18x128xbf16> to vector<8x16x128xbf16>
    %50 = vector.shape_cast %49 : vector<8x16x128xbf16> to vector<128x128xbf16>
    %51 = vector.extract_strided_slice %14 {offsets = [2, 2, 0], sizes = [8, 16, 128], strides = [1, 1, 1]} : vector<10x18x128xbf16> to vector<8x16x128xbf16>
    %52 = vector.shape_cast %51 : vector<8x16x128xbf16> to vector<128x128xbf16>
    %53 = tpu.concatenate %48, %50, %52 in 1 : vector<128x128xbf16>, vector<128x128xbf16>, vector<128x128xbf16> -> vector<128x384xbf16>
    %c2 = arith.constant 2 : index
    %c0_26 = arith.constant 0 : index
    %c0_27 = arith.constant 0 : index
    %54 = vector.load %arg5[%c2, %c0_26, %c0_27] : memref<3x384x128xbf16, #tpu.memory_space<vmem>>, vector<1x384x128xbf16>
    %55 = vector.shape_cast %54 : vector<1x384x128xbf16> to vector<384x128xbf16>
    %cst_28 = arith.constant dense<0.000000e+00> : vector<128x128xf32>
    %56 = tpu.matmul %53, %55, %cst_28 {dimension_numbers = #tpu.dot_dimension_numbers<[1], [0], [0], [1], [0, 0, 1, 1], [], []>} : vector<128x384xbf16>, vector<384x128xbf16>, vector<128x128xf32> -> vector<128x128xf32>
    %57 = arith.addf %42, %56 : vector<128x128xf32>
    %c2_29 = arith.constant 2 : index
    %c0_30 = arith.constant 0 : index
    %c0_31 = arith.constant 0 : index
    %58 = vector.load %arg7[%c2_29, %c0_30, %c0_31] : memref<3x384x128xbf16, #tpu.memory_space<vmem>>, vector<1x384x128xbf16>
    %59 = vector.shape_cast %58 : vector<1x384x128xbf16> to vector<384x128xbf16>
    %cst_32 = arith.constant dense<0.000000e+00> : vector<128x128xf32>
    %60 = tpu.matmul %53, %59, %cst_32 {dimension_numbers = #tpu.dot_dimension_numbers<[1], [0], [0], [1], [0, 0, 1, 1], [], []>} : vector<128x384xbf16>, vector<384x128xbf16>, vector<128x128xf32> -> vector<128x128xf32>
    %61 = arith.addf %46, %60 : vector<128x128xf32>
    %c0_33 = arith.constant 0 : index
    %c0_34 = arith.constant 0 : index
    %62 = vector.load %arg6[%c0_33, %c0_34] : memref<1x128xf32, #tpu.memory_space<vmem>>, vector<1x128xf32>
    %63 = vector.broadcast %62 : vector<1x128xf32> to vector<128x128xf32>
    %64 = arith.addf %57, %63 : vector<128x128xf32>
    %65 = vector.shape_cast %64 : vector<128x128xf32> to vector<8x16x128xf32>
    %c0_35 = arith.constant 0 : index
    %c0_36 = arith.constant 0 : index
    %66 = vector.load %arg8[%c0_35, %c0_36] : memref<1x128xf32, #tpu.memory_space<vmem>>, vector<1x128xf32>
    %67 = vector.broadcast %66 : vector<1x128xf32> to vector<128x128xf32>
    %68 = arith.addf %61, %67 : vector<128x128xf32>
    %69 = vector.shape_cast %68 : vector<128x128xf32> to vector<8x16x128xf32>
    %c0_37 = arith.constant 0 : index
    %c0_38 = arith.constant 0 : index
    %c0_39 = arith.constant 0 : index
    %c0_40 = arith.constant 0 : index
    %70 = vector.load %arg9[%c0_37, %c0_38, %c0_39, %c0_40] : memref<1x8x16x128xf32, #tpu.memory_space<vmem>>, vector<1x8x16x128xf32>
    %71 = vector.shape_cast %70 : vector<1x8x16x128xf32> to vector<8x16x128xf32>
    %cst_41 = arith.constant dense<0.000000e+00> : vector<8x16xf32>
    %72 = vector.multi_reduction <add>, %71, %cst_41 [2] : vector<8x16x128xf32> to vector<8x16xf32>
    %73 = vector.shape_cast %72 : vector<8x16xf32> to vector<8x16x1xf32>
    %cst_42 = arith.constant 1.280000e+02 : f32
    %74 = vector.broadcast %cst_42 : f32 to vector<8x16x1xf32>
    %75 = arith.divf %73, %74 : vector<8x16x1xf32>
    %76 = vector.broadcast %75 : vector<8x16x1xf32> to vector<8x16x128xf32>
    %77 = arith.subf %71, %76 : vector<8x16x128xf32>
    %78 = arith.mulf %77, %77 : vector<8x16x128xf32>
    %cst_43 = arith.constant dense<0.000000e+00> : vector<8x16xf32>
    %79 = vector.multi_reduction <add>, %78, %cst_43 [2] : vector<8x16x128xf32> to vector<8x16xf32>
    %80 = vector.shape_cast %79 : vector<8x16xf32> to vector<8x16x1xf32>
    %cst_44 = arith.constant 0.00787401571 : f32
    %81 = vector.broadcast %cst_44 : f32 to vector<8x16x1xf32>
    %82 = arith.mulf %80, %81 : vector<8x16x1xf32>
    %cst_45 = arith.constant 9.99999993E-9 : f32
    %83 = vector.broadcast %cst_45 : f32 to vector<8x16x1xf32>
    %84 = arith.addf %82, %83 : vector<8x16x1xf32>
    %85 = math.rsqrt %84 : vector<8x16x1xf32>
    %86 = vector.broadcast %85 : vector<8x16x1xf32> to vector<8x16x128xf32>
    %87 = arith.mulf %77, %86 : vector<8x16x128xf32>
    %cst_46 = arith.constant 1.000000e+00 : f32
    %88 = vector.broadcast %cst_46 : f32 to vector<8x16x128xf32>
    %89 = arith.addf %88, %65 : vector<8x16x128xf32>
    %90 = arith.mulf %89, %87 : vector<8x16x128xf32>
    %91 = arith.addf %90, %69 : vector<8x16x128xf32>
    %c0_47 = arith.constant 0 : index
    %c0_48 = arith.constant 0 : index
    %c0_49 = arith.constant 0 : index
    %c0_50 = arith.constant 0 : index
    %92 = vector.load %arg10[%c0_47, %c0_48, %c0_49, %c0_50] : memref<1x8x16x128xf32, #tpu.memory_space<vmem>>, vector<1x8x16x128xf32>
    %93 = vector.shape_cast %92 : vector<1x8x16x128xf32> to vector<8x16x128xf32>
    %94 = vector.shape_cast %91 : vector<8x16x128xf32> to vector<1x8x16x128xf32>
    tpu.vector_store %arg10[%c0_47, %c0_48, %c0_49, %c0_50], %94 {strides = array<i32>} : memref<1x8x16x128xf32, #tpu.memory_space<vmem>>, vector<1x8x16x128xf32>,
    return
  }
  func.func @transform_0(%arg0: i32, %arg1: i32) -> (i32, i32, i32, i32, i32) {
    %c0_i32 = arith.constant 0 : i32
    %c0_i32_0 = arith.constant 0 : i32
    %c0_i32_1 = arith.constant 0 : i32
    %c0_i32_2 = arith.constant 0 : i32
    return %arg0, %arg1, %c0_i32, %c0_i32_0, %c0_i32_1 : i32, i32, i32, i32, i32
  }
  func.func @transform_1(%arg0: i32, %arg1: i32) -> (i32, i32) {
    %c0_i32 = arith.constant 0 : i32
    %c0_i32_0 = arith.constant 0 : i32
    %c0_i32_1 = arith.constant 0 : i32
    return %c0_i32, %c0_i32_0 : i32, i32
  }
  func.func @transform_2(%arg0: i32, %arg1: i32) -> (i32, i32) {
    %c0_i32 = arith.constant 0 : i32
    %c0_i32_0 = arith.constant 0 : i32
    %c0_i32_1 = arith.constant 0 : i32
    return %c0_i32, %c0_i32_0 : i32, i32
  }
  func.func @transform_3(%arg0: i32, %arg1: i32) -> (i32, i32, i32) {
    %c0_i32 = arith.constant 0 : i32
    %c0_i32_0 = arith.constant 0 : i32
    %c0_i32_1 = arith.constant 0 : i32
    %c0_i32_2 = arith.constant 0 : i32
    return %c0_i32, %c0_i32_0, %c0_i32_1 : i32, i32, i32
  }
  func.func @transform_4(%arg0: i32, %arg1: i32) -> (i32, i32) {
    %c0_i32 = arith.constant 0 : i32
    %c0_i32_0 = arith.constant 0 : i32
    %c0_i32_1 = arith.constant 0 : i32
    return %c0_i32, %c0_i32_0 : i32, i32
  }
  func.func @transform_5(%arg0: i32, %arg1: i32) -> (i32, i32, i32) {
    %c0_i32 = arith.constant 0 : i32
    %c0_i32_0 = arith.constant 0 : i32
    %c0_i32_1 = arith.constant 0 : i32
    %c0_i32_2 = arith.constant 0 : i32
    return %c0_i32, %c0_i32_0, %c0_i32_1 : i32, i32, i32
  }
  func.func @transform_6(%arg0: i32, %arg1: i32) -> (i32, i32) {
    %c0_i32 = arith.constant 0 : i32
    %c0_i32_0 = arith.constant 0 : i32
    %c0_i32_1 = arith.constant 0 : i32
    return %c0_i32, %c0_i32_0 : i32, i32
  }
  func.func @transform_7(%arg0: i32, %arg1: i32) -> (i32, i32, i32, i32) {
    %c0_i32 = arith.constant 0 : i32
    %c0_i32_0 = arith.constant 0 : i32
    %c0_i32_1 = arith.constant 0 : i32
    return %arg0, %arg1, %c0_i32, %c0_i32_0 : i32, i32, i32, i32
  }
  func.func @transform_8(%arg0: i32, %arg1: i32) -> (i32, i32, i32, i32) {
    %c0_i32 = arith.constant 0 : i32
    %c0_i32_0 = arith.constant 0 : i32
    %c0_i32_1 = arith.constant 0 : i32
    return %arg0, %arg1, %c0_i32, %c0_i32_0 : i32, i32, i32, i32
  }
}

</mosaic_0001>

<llo_original>
// kernel: spade_forward.1
$region0: #{spade_forward.1}
  #allocation0 [shape = 'u32[]', space=smem, size = 0x4, offset = 0x4, fixed_abs, tag = 'smem constant byte address 0x4 - core index']
  #allocation1 [shape = 'u32[144,128]{1,0:T(1,128)}', space=vmem, size = 0x12000, scoped, tag = 'internal scratch']
  %s0 = inlined_call_operand.vmem [shape: bf16[2,2,10,16,72], index: 0, kind: input, shape index: {}]
  %s1 = inlined_call_operand.vmem [shape: bf16[72,128], index: 1, kind: input, shape index: {}]
  %s2 = inlined_call_operand.vmem [shape: f32[1,128], index: 2, kind: input, shape index: {}]
  %s3 = inlined_call_operand.vmem [shape: bf16[3,384,128], index: 3, kind: input, shape index: {}]
  %s4 = inlined_call_operand.vmem [shape: f32[1,128], index: 4, kind: input, shape index: {}]
  %s5 = inlined_call_operand.vmem [shape: bf16[3,384,128], index: 5, kind: input, shape index: {}]
  %s6 = inlined_call_operand.vmem [shape: f32[1,128], index: 6, kind: input, shape index: {}]
  %s7 = inlined_call_operand.vmem [shape: f32[2,16,16,128], index: 7, kind: input, shape index: {}]
  %s8 = inlined_call_operand.hbm [shape: f32[2,16,16,128], index: 8, kind: output, shape index: {}]
  %s9 = sld [smem:[#allocation0]]
  $region65: #{spade_forward.1} parent=0
    _
  %s11 = ssub.s32 1, %s9
  %s12 = scalar_select 0, %s11, %s9
  $region1: #{spade_forward.1} parent=0
    #allocation2 [shape = 'u8[131072]{0}', space=vmem, size = 0x20000, scoped, tag = 'output window, operand 0']
    #allocation3 [shape = 's32[2]{0}', space=sflag, size = 0x8, scoped, tag = 'scoped memory for spade_forward.1']
    %13 = vsyncpa [#allocation3], 0
    %s14 = scalar_lea.sflag [#allocation3], 1
    %15 = vsyncpa %s14, 0
    loop: start=0, step=1, limit=6
    $region2: #{spade_forward.1} parent=1 // loop_pre_header
      _
    $region3: #{spade_forward.1} parent=1 // loop_header
      %s17 = sphi 0, %s21
      %p18 = scmp.ge.s32.totalorder %s17, 6
      %s24 = sphi 0, %s36
      %s25 = sphi 0, %s32
      %s26 = sphi 0, %s24
      %s27 = sphi 0, %s25
      %s28 = sphi 0, %s26
      %s29 = sphi 0, %s27
      %s41 = sphi 0, %s43
      %s44 = sphi 0, %s41
      %s45 = sphi 0, %s44
      %s61 = sphi 0, %s45
      %s65 = sphi 0, %s65
      %s67 = sphi 0, %s65
      %s68 = sphi 0, %s67
      %s82 = sphi 0, %s68
      %s86 = sphi 0, %s86
      %s88 = sphi 0, %s86
      %s89 = sphi 0, %s88
      %s103 = sphi 0, %s89
      %s107 = sphi 0, %s107
      %s109 = sphi 0, %s107
      %s110 = sphi 0, %s109
      %s124 = sphi 0, %s110
      %s128 = sphi 0, %s128
      %s130 = sphi 0, %s128
      %s131 = sphi 0, %s130
      %s145 = sphi 0, %s131
      %s149 = sphi 0, %s149
      %s151 = sphi 0, %s149
      %s152 = sphi 0, %s151
      %s166 = sphi 0, %s152
      %s170 = sphi 0, %s170
      %s172 = sphi 0, %s170
      %s173 = sphi 0, %s172
      %s187 = sphi 0, %s173
      %s195 = sphi 0, %s197
      %s198 = sphi 0, %s195
      %s199 = sphi 0, %s198
      %s215 = sphi 0, %s199
      %s223 = sphi 0, %s225
      %s226 = sphi 0, %s223
      %s227 = sphi 0, %s226
      %s243 = sphi 0, %s227
    $region4: #{spade_forward.1} parent=1 // loop_header_branch
      %20 = sbr.rel (%p18) target = $region8
    $region5: #{spade_forward.1} parent=1 // loop_body
      %s22 = ssub.s32 %s17, 1
      %s23 = ssub.s32 %s17, 2
      %s30 = sadd.s32 1, %s25
      %p31 = scmp.ge.s32.totalorder %s30, 2
      %s32 = scalar_select %p31, 0, %s30
      %s33 = sadd.s32 1, %s24
      %s34 = scalar_select %p31, %s33, %s24
      %p35 = scmp.ge.s32.totalorder %s34, 2
      %s36 = scalar_select %p35, 0, %s34
      %s37 = ssub.s32 %s24, %s36
      %s38 = ssub.s32 %s25, %s32
      %s39 = sor.u32 %s37, %s38
      %p40 = scmp.eq.s32.totalorder %s39, 0
      %s42 = sadd.s32 %s41, 1
      %s43 = scalar_select %p40, %s41, %s42
      %p46 = pneg %p40
      %p47 = scmp.eq.s32.totalorder %s17, 3
      %p48 = por %p46, %p47
      %p49 = scmp.ne.s32.totalorder %s41, %s44
      %p50 = scmp.eq.s32.totalorder %s17, 0
      %p51 = por %p49, %p50
      %p52 = scmp.ne.s32.totalorder %s41, %s44
      %p53 = scmp.eq.s32.totalorder %s22, 3
      %p54 = por %p52, %p53
      %p55 = scmp.ne.s32.totalorder %s44, %s45
      %p56 = scmp.eq.s32.totalorder %s22, 0
      %p57 = por %p55, %p56
      %p58 = scmp.ne.s32.totalorder %s44, %s45
      %p59 = scmp.eq.s32.totalorder %s23, 3
      %p60 = por %p58, %p59
      %p62 = scmp.ne.s32.totalorder %s45, %s61
      %p63 = scmp.eq.s32.totalorder %s23, 0
      %p64 = por %p62, %p63
      %s66 = sadd.s32 %s65, 1
      %p69 = scmp.eq.s32.totalorder %s17, 3
      %p70 = scmp.ne.s32.totalorder %s65, %s67
      %p71 = scmp.eq.s32.totalorder %s17, 0
      %p72 = por %p70, %p71
      %p73 = scmp.ne.s32.totalorder %s65, %s67
      %p74 = scmp.eq.s32.totalorder %s22, 3
      %p75 = por %p73, %p74
      %p76 = scmp.ne.s32.totalorder %s67, %s68
      %p77 = scmp.eq.s32.totalorder %s22, 0
      %p78 = por %p76, %p77
      %p79 = scmp.ne.s32.totalorder %s67, %s68
      %p80 = scmp.eq.s32.totalorder %s23, 3
      %p81 = por %p79, %p80
      %p83 = scmp.ne.s32.totalorder %s68, %s82
      %p84 = scmp.eq.s32.totalorder %s23, 0
      %p85 = por %p83, %p84
      %s87 = sadd.s32 %s86, 1
      %p90 = scmp.eq.s32.totalorder %s17, 3
      %p91 = scmp.ne.s32.totalorder %s86, %s88
      %p92 = scmp.eq.s32.totalorder %s17, 0
      %p93 = por %p91, %p92
      %p94 = scmp.ne.s32.totalorder %s86, %s88
      %p95 = scmp.eq.s32.totalorder %s22, 3
      %p96 = por %p94, %p95
      %p97 = scmp.ne.s32.totalorder %s88, %s89
      %p98 = scmp.eq.s32.totalorder %s22, 0
      %p99 = por %p97, %p98
      %p100 = scmp.ne.s32.totalorder %s88, %s89
      %p101 = scmp.eq.s32.totalorder %s23, 3
      %p102 = por %p100, %p101
      %p104 = scmp.ne.s32.totalorder %s89, %s103
      %p105 = scmp.eq.s32.totalorder %s23, 0
      %p106 = por %p104, %p105
      %s108 = sadd.s32 %s107, 1
      %p111 = scmp.eq.s32.totalorder %s17, 3
      %p112 = scmp.ne.s32.totalorder %s107, %s109
      %p113 = scmp.eq.s32.totalorder %s17, 0
      %p114 = por %p112, %p113
      %p115 = scmp.ne.s32.totalorder %s107, %s109
      %p116 = scmp.eq.s32.totalorder %s22, 3
      %p117 = por %p115, %p116
      %p118 = scmp.ne.s32.totalorder %s109, %s110
      %p119 = scmp.eq.s32.totalorder %s22, 0
      %p120 = por %p118, %p119
      %p121 = scmp.ne.s32.totalorder %s109, %s110
      %p122 = scmp.eq.s32.totalorder %s23, 3
      %p123 = por %p121, %p122
      %p125 = scmp.ne.s32.totalorder %s110, %s124
      %p126 = scmp.eq.s32.totalorder %s23, 0
      %p127 = por %p125, %p126
      %s129 = sadd.s32 %s128, 1
      %p132 = scmp.eq.s32.totalorder %s17, 3
      %p133 = scmp.ne.s32.totalorder %s128, %s130
      %p134 = scmp.eq.s32.totalorder %s17, 0
      %p135 = por %p133, %p134
      %p136 = scmp.ne.s32.totalorder %s128, %s130
      %p137 = scmp.eq.s32.totalorder %s22, 3
      %p138 = por %p136, %p137
      %p139 = scmp.ne.s32.totalorder %s130, %s131
      %p140 = scmp.eq.s32.totalorder %s22, 0
      %p141 = por %p139, %p140
      %p142 = scmp.ne.s32.totalorder %s130, %s131
      %p143 = scmp.eq.s32.totalorder %s23, 3
      %p144 = por %p142, %p143
      %p146 = scmp.ne.s32.totalorder %s131, %s145
      %p147 = scmp.eq.s32.totalorder %s23, 0
      %p148 = por %p146, %p147
      %s150 = sadd.s32 %s149, 1
      %p153 = scmp.eq.s32.totalorder %s17, 3
      %p154 = scmp.ne.s32.totalorder %s149, %s151
      %p155 = scmp.eq.s32.totalorder %s17, 0
      %p156 = por %p154, %p155
      %p157 = scmp.ne.s32.totalorder %s149, %s151
      %p158 = scmp.eq.s32.totalorder %s22, 3
      %p159 = por %p157, %p158
      %p160 = scmp.ne.s32.totalorder %s151, %s152
      %p161 = scmp.eq.s32.totalorder %s22, 0
      %p162 = por %p160, %p161
      %p163 = scmp.ne.s32.totalorder %s151, %s152
      %p164 = scmp.eq.s32.totalorder %s23, 3
      %p165 = por %p163, %p164
      %p167 = scmp.ne.s32.totalorder %s152, %s166
      %p168 = scmp.eq.s32.totalorder %s23, 0
      %p169 = por %p167, %p168
      %s171 = sadd.s32 %s170, 1
      %p174 = scmp.eq.s32.totalorder %s17, 3
      %p175 = scmp.ne.s32.totalorder %s170, %s172
      %p176 = scmp.eq.s32.totalorder %s17, 0
      %p177 = por %p175, %p176
      %p178 = scmp.ne.s32.totalorder %s170, %s172
      %p179 = scmp.eq.s32.totalorder %s22, 3
      %p180 = por %p178, %p179
      %p181 = scmp.ne.s32.totalorder %s172, %s173
      %p182 = scmp.eq.s32.totalorder %s22, 0
      %p183 = por %p181, %p182
      %p184 = scmp.ne.s32.totalorder %s172, %s173
      %p185 = scmp.eq.s32.totalorder %s23, 3
      %p186 = por %p184, %p185
      %p188 = scmp.ne.s32.totalorder %s173, %s187
      %p189 = scmp.eq.s32.totalorder %s23, 0
      %p190 = por %p188, %p189
      %s191 = ssub.s32 %s24, %s36
      %s192 = ssub.s32 %s25, %s32
      %s193 = sor.u32 %s191, %s192
      %p194 = scmp.eq.s32.totalorder %s193, 0
      %s196 = sadd.s32 %s195, 1
      %s197 = scalar_select %p194, %s195, %s196
      %p200 = pneg %p194
      %p201 = scmp.eq.s32.totalorder %s17, 3
      %p202 = por %p200, %p201
      %p203 = scmp.ne.s32.totalorder %s195, %s198
      %p204 = scmp.eq.s32.totalorder %s17, 0
      %p205 = por %p203, %p204
      %p206 = scmp.ne.s32.totalorder %s195, %s198
      %p207 = scmp.eq.s32.totalorder %s22, 3
      %p208 = por %p206, %p207
      %p209 = scmp.ne.s32.totalorder %s198, %s199
      %p210 = scmp.eq.s32.totalorder %s22, 0
      %p211 = por %p209, %p210
      %p212 = scmp.ne.s32.totalorder %s198, %s199
      %p213 = scmp.eq.s32.totalorder %s23, 3
      %p214 = por %p212, %p213
      %p216 = scmp.ne.s32.totalorder %s199, %s215
      %p217 = scmp.eq.s32.totalorder %s23, 0
      %p218 = por %p216, %p217
      %s219 = ssub.s32 %s24, %s36
      %s220 = ssub.s32 %s25, %s32
      %s221 = sor.u32 %s219, %s220
      %p222 = scmp.eq.s32.totalorder %s221, 0
      %s224 = sadd.s32 %s223, 1
      %s225 = scalar_select %p222, %s223, %s224
      %p228 = pneg %p222
      %p229 = scmp.eq.s32.totalorder %s17, 3
      %p230 = por %p228, %p229
      %p231 = scmp.ne.s32.totalorder %s223, %s226
      %p232 = scmp.eq.s32.totalorder %s17, 0
      %p233 = por %p231, %p232
      %p234 = scmp.ne.s32.totalorder %s223, %s226
      %p235 = scmp.eq.s32.totalorder %s22, 3
      %p236 = por %p234, %p235
      %p237 = scmp.ne.s32.totalorder %s226, %s227
      %p238 = scmp.eq.s32.totalorder %s22, 0
      %p239 = por %p237, %p238
      %p240 = scmp.ne.s32.totalorder %s226, %s227
      %p241 = scmp.eq.s32.totalorder %s23, 3
      %p242 = por %p240, %p241
      %p244 = scmp.ne.s32.totalorder %s227, %s243
      %p245 = scmp.eq.s32.totalorder %s23, 0
      %p246 = por %p244, %p245
      %p247 = scmp.le.s32.totalorder 1, %s17
      %p248 = scmp.lt.s32.totalorder %s17, 5
      %p249 = pnand %p247, %p248
      %p250 = pneg %p249
      // Predicated region
      $region9: #{spade_forward.1} parent=5 // pred_check
        _
      $region10: #{spade_forward.1} parent=5 // pred_check_branch
        %252 = sbr.rel (%p249) target = $region12
      $region11: #{spade_forward.1} parent=5 // pred_region
        %s253 = ssub.s32 %s17, 1
        // Predicated region
        $region13: #{spade_forward.1} parent=11 // pred_check
          %p254 = pneg %p78
        $region14: #{spade_forward.1} parent=11 // pred_check_branch
          %256 = sbr.rel (%p254) target = $region16
        $region15: #{spade_forward.1} parent=11 // pred_region
          _
        $region16: #{spade_forward.1} parent=11 // pred_fallthru
          _
        // Predicated region
        $region17: #{spade_forward.1} parent=11 // pred_check
          %p257 = pneg %p99
        $region18: #{spade_forward.1} parent=11 // pred_check_branch
          %259 = sbr.rel (%p257) target = $region20
        $region19: #{spade_forward.1} parent=11 // pred_region
          _
        $region20: #{spade_forward.1} parent=11 // pred_fallthru
          _
        // Predicated region
        $region21: #{spade_forward.1} parent=11 // pred_check
          %p260 = pneg %p120
        $region22: #{spade_forward.1} parent=11 // pred_check_branch
          %262 = sbr.rel (%p260) target = $region24
        $region23: #{spade_forward.1} parent=11 // pred_region
          _
        $region24: #{spade_forward.1} parent=11 // pred_fallthru
          _
        // Predicated region
        $region25: #{spade_forward.1} parent=11 // pred_check
          %p263 = pneg %p141
        $region26: #{spade_forward.1} parent=11 // pred_check_branch
          %265 = sbr.rel (%p263) target = $region28
        $region27: #{spade_forward.1} parent=11 // pred_region
          _
        $region28: #{spade_forward.1} parent=11 // pred_fallthru
          _
        // Predicated region
        $region29: #{spade_forward.1} parent=11 // pred_check
          %p266 = pneg %p162
        $region30: #{spade_forward.1} parent=11 // pred_check_branch
          %268 = sbr.rel (%p266) target = $region32
        $region31: #{spade_forward.1} parent=11 // pred_region
          _
        $region32: #{spade_forward.1} parent=11 // pred_fallthru
          _
        // Predicated region
        $region33: #{spade_forward.1} parent=11 // pred_check
          %p269 = pneg %p183
        $region34: #{spade_forward.1} parent=11 // pred_check_branch
          %271 = sbr.rel (%p269) target = $region36
        $region35: #{spade_forward.1} parent=11 // pred_region
          _
        $region36: #{spade_forward.1} parent=11 // pred_fallthru
          _
      $region12: #{spade_forward.1} parent=5 // pred_fallthru
        _
      %p272 = scmp.lt.s32.totalorder %s17, 4
      // Predicated region
      $region37: #{spade_forward.1} parent=5 // pred_check
        %p273 = pneg %p272
      $region38: #{spade_forward.1} parent=5 // pred_check_branch
        %275 = sbr.rel (%p273) target = $region40
      $region39: #{spade_forward.1} parent=5 // pred_region
        // Predicated region
        $region41: #{spade_forward.1} parent=39 // pred_check
          %p276 = pneg %p51
        $region42: #{spade_forward.1} parent=39 // pred_check_branch
          %278 = sbr.rel (%p276) target = $region44
        $region43: #{spade_forward.1} parent=39 // pred_region
          %p279 = scmp.lt.s32.totalorder %s24, 1
          %s280 = scalar_select %p279, %s24, 1
          %p281 = scmp.lt.s32.totalorder %s25, 1
          %s282 = scalar_select %p281, %s25, 1
          %s283 = smul.addr %s282, 20
          %s284 = smul.addr %s280, 40
          %s285 = sadd.s32 %s283, %s284
          %s286 = smul.addr %s285, 4
          %s287 = scalar_lea.vmem %s0, %s286
        $region44: #{spade_forward.1} parent=39 // pred_fallthru
          _
        // Predicated region
        $region45: #{spade_forward.1} parent=39 // pred_check
          %p288 = pneg %p205
        $region46: #{spade_forward.1} parent=39 // pred_check_branch
          %290 = sbr.rel (%p288) target = $region48
        $region47: #{spade_forward.1} parent=39 // pred_region
          %s291 = smul.u32 8, %s25
          %p292 = scmp.lt.s32.totalorder %s24, 1
          %s293 = scalar_select %p292, %s24, 1
          %p294 = scmp.lt.s32.totalorder %s291, 15
          %s295 = scalar_select %p294, %s291, 15
          %s296 = smul.addr %s295, 2
          %s297 = smul.addr %s293, 32
          %s298 = sadd.s32 %s296, %s297
          %s299 = smul.addr %s298, 8
          %s300 = scalar_lea.vmem %s7, %s299
          %s301 = smul.u32 8, %s25
        $region48: #{spade_forward.1} parent=39 // pred_fallthru
          _
      $region40: #{spade_forward.1} parent=5 // pred_fallthru
        _
      %p302 = scmp.le.s32.totalorder 1, %s17
      %p303 = scmp.lt.s32.totalorder %s17, 5
      %p304 = pnand %p302, %p303
      %p305 = pneg %p304
      // Predicated region
      $region49: #{spade_forward.1} parent=5 // pred_check
        _
      $region50: #{spade_forward.1} parent=5 // pred_check_branch
        %307 = sbr.rel (%p304) target = $region52
      $region51: #{spade_forward.1} parent=5 // pred_region
        %s308 = ssub.s32 %s17, 1
        %p309 = scmp.lt.s32.totalorder %s26, 1
        %s310 = scalar_select %p309, %s26, 1
        %p311 = scmp.lt.s32.totalorder %s27, 1
        %s312 = scalar_select %p311, %s27, 1
        %s313 = smul.addr %s312, 20
        %s314 = smul.addr %s310, 40
        %s315 = sadd.s32 %s313, %s314
        %s316 = smul.addr %s315, 4
        %s317 = scalar_lea.vmem %s0, %s316
        %p318 = pneg %p57
        %p319 = pneg %p54
        %p320 = pneg %p78
        %p321 = pneg %p75
        %p322 = pneg %p99
        %p323 = pneg %p96
        %p324 = pneg %p120
        %p325 = pneg %p117
        %p326 = pneg %p141
        %p327 = pneg %p138
        %p328 = pneg %p162
        %p329 = pneg %p159
        %p330 = pneg %p183
        %p331 = pneg %p180
        %s332 = smul.u32 8, %s27
        %p333 = scmp.lt.s32.totalorder %s26, 1
        %s334 = scalar_select %p333, %s26, 1
        %p335 = scmp.lt.s32.totalorder %s332, 15
        %s336 = scalar_select %p335, %s332, 15
        %s337 = smul.addr %s336, 2
        %s338 = smul.addr %s334, 32
        %s339 = sadd.s32 %s337, %s338
        %s340 = smul.addr %s339, 8
        %s341 = scalar_lea.vmem %s7, %s340
        %p342 = pneg %p211
        %p343 = pneg %p208
        %p344 = pneg %p239
        %p345 = pneg %p236
        %s346 = sand.u32 %s226, 1
        %s347 = scalar_lea.sflag [#allocation3], %s346
        %s348 = sand.u32 %s226, 1
        %s349 = smul.addr %s348, 128
        %s350 = scalar_lea.vmem [#allocation2], %s349
        %p351 = scmp.lt.s32.totalorder %s26, 1
        %s352 = scalar_select %p351, %s26, 1
        %p353 = scmp.lt.s32.totalorder %s27, 1
        %s354 = scalar_select %p353, %s27, 1
        %s355 = smul.addr %s354, 20
        %s356 = smul.addr %s352, 40
        %s357 = sadd.s32 %s355, %s356
        %s358 = smul.addr %s357, 4
        %s359 = scalar_lea.vmem %s0, %s358
        %s360 = smul.u32 8, %s27
        %p361 = scmp.lt.s32.totalorder %s26, 1
        %s362 = scalar_select %p361, %s26, 1
        %p363 = scmp.lt.s32.totalorder %s360, 15
        %s364 = scalar_select %p363, %s360, 15
        %s365 = smul.addr %s364, 2
        %s366 = smul.addr %s362, 32
        %s367 = sadd.s32 %s365, %s366
        %s368 = smul.addr %s367, 8
        %s369 = scalar_lea.vmem %s7, %s368
        %s370 = smul.u32 8, %s27
        %s371 = smul.u32 8, %s27
        %v373 = vld [vmem:[%s359] sm:$0xf]
        %v374 = vld [vmem:[%s359 + $0x4] sm:$0xf]
        %v375 = vld [vmem:[%s359 + $0x8] sm:$0xf]
        %v376 = vld [vmem:[%s359 + $0xc] sm:$0xf]
        %v377 = vld [vmem:[%s359 + $0x10] sm:$0xf]
        %v378 = vld [vmem:[%s359 + $0x14] sm:$0xf]
        %v379 = vld [vmem:[%s359 + $0x18] sm:$0xf]
        %v380 = vld [vmem:[%s359 + $0x1c] sm:$0xf]
        %v381 = vld [vmem:[%s359 + $0x20] sm:$0xf]
        %v382 = vld [vmem:[%s359 + $0x24] sm:$0xf]
        %v383 = vld [vmem:[%s359 + $0x28] sm:$0xf]
        %v384 = vld [vmem:[%s359 + $0x2c] sm:$0xf]
        %v385 = vld [vmem:[%s359 + $0x30] sm:$0xf]
        %v386 = vld [vmem:[%s359 + $0x34] sm:$0xf]
        %v387 = vld [vmem:[%s359 + $0x38] sm:$0xf]
        %v388 = vld [vmem:[%s359 + $0x3c] sm:$0xf]
        %v389 = vld [vmem:[%s359 + $0x40] sm:$0xf]
        %v390 = vld [vmem:[%s359 + $0x44] sm:$0xf]
        %v391 = vld [vmem:[%s359 + $0x48] sm:$0xf]
        %v392 = vld [vmem:[%s359 + $0x4c] sm:$0xf]
        %v393 = vld [vmem:[%s1] sm:$0xf]
        %v394 = vld [vmem:[%s1 + $0x4] sm:$0xf]
        %v395 = vld [vmem:[%s1 + $0x8] sm:$0xf]
        %v396 = vld [vmem:[%s1 + $0xc] sm:$0xf]
        %v397 = vld [vmem:[%s1 + $0x10] sm:$0xf]
        %v398 = vld [vmem:[%s1 + $0x14] sm:$0xf]
        %v399 = vld [vmem:[%s1 + $0x18] sm:$0xf]
        %v400 = vld [vmem:[%s1 + $0x1c] sm:$0xf]
        %v401 = vld [vmem:[%s1 + $0x20] sm:$0xf]
        %v402 = vld [vmem:[%s2] sm:$0x1]
        %v404 = vlaneseq
        %v405 = vshrl.u32 %v404, 7
        %v406 = vsub.s32 0, %v405
        %v407 = vrot.slane %v402, %v406
        %v429 = vunpack.c.l.b16 %v373
        %v430 = vunpack.c.l.b16 %v374
        %v431 = vunpack.c.l.b16 %v375
        %v432 = vunpack.c.l.b16 %v376
        %v433 = vunpack.c.l.b16 %v377
        %v434 = vunpack.c.l.b16 %v378
        %v435 = vunpack.c.l.b16 %v379
        %v436 = vunpack.c.l.b16 %v380
        %v437 = vunpack.c.l.b16 %v381
        %v438 = vunpack.c.l.b16 %v382
        %v439 = vunpack.c.l.b16 %v383
        %v440 = vunpack.c.l.b16 %v384
        %v441 = vunpack.c.l.b16 %v385
        %v442 = vunpack.c.l.b16 %v386
        %v443 = vunpack.c.l.b16 %v387
        %v444 = vunpack.c.l.b16 %v388
        %v445 = vunpack.c.l.b16 %v389
        %v446 = vunpack.c.l.b16 %v390
        %v447 = vunpack.c.l.b16 %v391
        %v448 = vunpack.c.l.b16 %v392
        %v449 = vpack.c.b16 %v430, %v429
        %v450 = vpack.c.b16 %v432, %v431
        %v451 = vpack.c.b16 %v434, %v433
        %v452 = vpack.c.b16 %v436, %v435
        %v453 = vpack.c.b16 %v438, %v437
        %v454 = vpack.c.b16 %v440, %v439
        %v455 = vpack.c.b16 %v442, %v441
        %v456 = vpack.c.b16 %v444, %v443
        %v457 = vpack.c.b16 %v446, %v445
        %v458 = vpack.c.b16 %v448, %v447
        %v468 = vunpack.c.l.b16 %v393
        %v469 = vunpack.c.l.b16 %v394
        %v470 = vunpack.c.l.b16 %v395
        %v471 = vunpack.c.l.b16 %v396
        %v472 = vunpack.c.l.b16 %v397
        %v473 = vunpack.c.l.b16 %v398
        %v474 = vunpack.c.l.b16 %v399
        %v475 = vunpack.c.l.b16 %v400
        %v476 = vunpack.c.l.b16 %v401
        %v477 = vpack.c.b16 %v469, %v468
        %v478 = vpack.c.b16 %v471, %v470
        %v479 = vpack.c.b16 %v473, %v472
        %v480 = vpack.c.b16 %v475, %v474
        %v481 = vpack.c.b16 %v476, %v476
        %vm486 = vcmask 588800
        %v488 = vsel %vm486, %v449, 0
        %v491 = vsel %vm486, %v450, 0
        %v494 = vsel %vm486, %v451, 0
        %v497 = vsel %vm486, %v452, 0
        %v500 = vsel %vm486, %v453, 0
        %v503 = vsel %vm486, %v454, 0
        %v506 = vsel %vm486, %v455, 0
        %v509 = vsel %vm486, %v456, 0
        %v512 = vsel %vm486, %v457, 0
        %v515 = vsel %vm486, %v458, 0
        %vm517 = vcmask 1043456
        %v519 = vsel %vm517, %v481, 0
        %521 = vmatprep.subr.bf16.mxu0 0
        %522 = vmatpush1.bf16.msra.mxu0 %v477
        %523 = vmatprep.subr.bf16.mxu0 0
        %524 = vmatpush1.bf16.msra.mxu0 %v478
        %525 = vmatprep.subr.bf16.mxu0 0
        %526 = vmatpush1.bf16.msra.mxu0 %v479
        %527 = vmatprep.subr.bf16.mxu0 0
        %528 = vmatpush1.bf16.msra.mxu0 %v480
        %529 = vmatprep.subr.bf16.mxu0 0
        %530 = vmatpush1.bf16.msra.mxu0 %v519
        %531 = vmatprep.subr.bf16.mxu0 0
        %532 = vmatpush1.bf16.msra.mxu0 0
        %533 = vmatprep.subr.bf16.mxu0 0
        %534 = vmatpush1.bf16.msra.mxu0 0
        %535 = vmatprep.subr.bf16.mxu0 0
        %536 = vmatpush1.bf16.msra.mxu0 0
        %537 = vmatprep.subr.bf16.mxu0 0
        %538 = vmatpush1.bf16.msra.mxu0 0
        %539 = vmatprep.subr.bf16.mxu0 0
        %540 = vmatpush1.bf16.msra.mxu0 0
        %541 = vmatprep.subr.bf16.mxu0 0
        %542 = vmatpush1.bf16.msra.mxu0 0
        %543 = vmatprep.subr.bf16.mxu0 0
        %544 = vmatpush1.bf16.msra.mxu0 0
        %545 = vmatprep.subr.bf16.mxu0 0
        %546 = vmatpush1.bf16.msra.mxu0 0
        %547 = vmatprep.subr.bf16.mxu0 0
        %548 = vmatpush1.bf16.msra.mxu0 0
        %549 = vmatprep.subr.bf16.mxu0 0
        %550 = vmatpush1.bf16.msra.mxu0 0
        %551 = vmatprep.subr.bf16.mxu0 0
        %552 = vmatpush1.bf16.msra.mxu0 0
        %553 = vmatprep.mubr.bf16.mxu0 0
        %554 = vmatmul.mubr.bf16.gmra.mrb[0].mxu0 %v488
        %v555 = vpop.f32.mrb[0].mxu0
        %v556 = vadd.f32 %v407, %v555
        %v557 = vpop.f32.mrb[0].mxu0
        %v558 = vpop.f32.mrb[0].mxu0
        %v559 = vadd.f32 %v407, %v558
        %v560 = vpop.f32.mrb[0].mxu0
        %561 = vmatprep.mubr.bf16.mxu0 0
        %562 = vmatmul.mubr.bf16.gmra.mrb[0].mxu0 %v491
        %v563 = vpop.f32.mrb[0].mxu0
        %v564 = vadd.f32 %v407, %v563
        %v565 = vpop.f32.mrb[0].mxu0
        %v566 = vpop.f32.mrb[0].mxu0
        %v567 = vadd.f32 %v407, %v566
        %v568 = vpop.f32.mrb[0].mxu0
        %569 = vmatprep.mubr.bf16.mxu0 0
        %570 = vmatmul.mubr.bf16.gmra.mrb[0].mxu0 %v494
        %v571 = vpop.f32.mrb[0].mxu0
        %v572 = vadd.f32 %v407, %v571
        %v573 = vpop.f32.mrb[0].mxu0
        %v574 = vpop.f32.mrb[0].mxu0
        %v575 = vadd.f32 %v407, %v574
        %v576 = vpop.f32.mrb[0].mxu0
        %577 = vmatprep.mubr.bf16.mxu0 0
        %578 = vmatmul.mubr.bf16.gmra.mrb[0].mxu0 %v497
        %v579 = vpop.f32.mrb[0].mxu0
        %v580 = vadd.f32 %v407, %v579
        %v581 = vpop.f32.mrb[0].mxu0
        %v582 = vpop.f32.mrb[0].mxu0
        %v583 = vadd.f32 %v407, %v582
        %v584 = vpop.f32.mrb[0].mxu0
        %585 = vmatprep.mubr.bf16.mxu0 0
        %586 = vmatmul.mubr.bf16.gmra.mrb[0].mxu0 %v500
        %v587 = vpop.f32.mrb[0].mxu0
        %v588 = vadd.f32 %v407, %v587
        %v589 = vpop.f32.mrb[0].mxu0
        %v590 = vpop.f32.mrb[0].mxu0
        %v591 = vadd.f32 %v407, %v590
        %v592 = vpop.f32.mrb[0].mxu0
        %593 = vmatprep.mubr.bf16.mxu0 0
        %594 = vmatmul.mubr.bf16.gmra.mrb[0].mxu0 %v503
        %v595 = vpop.f32.mrb[0].mxu0
        %v596 = vadd.f32 %v407, %v595
        %v597 = vpop.f32.mrb[0].mxu0
        %v598 = vpop.f32.mrb[0].mxu0
        %v599 = vadd.f32 %v407, %v598
        %v600 = vpop.f32.mrb[0].mxu0
        %601 = vmatprep.mubr.bf16.mxu0 0
        %602 = vmatmul.mubr.bf16.gmra.mrb[0].mxu0 %v506
        %v603 = vpop.f32.mrb[0].mxu0
        %v604 = vadd.f32 %v407, %v603
        %v605 = vpop.f32.mrb[0].mxu0
        %v606 = vpop.f32.mrb[0].mxu0
        %v607 = vadd.f32 %v407, %v606
        %v608 = vpop.f32.mrb[0].mxu0
        %609 = vmatprep.mubr.bf16.mxu0 0
        %610 = vmatmul.mubr.bf16.gmra.mrb[0].mxu0 %v509
        %v611 = vpop.f32.mrb[0].mxu0
        %v612 = vadd.f32 %v407, %v611
        %v613 = vpop.f32.mrb[0].mxu0
        %v614 = vpop.f32.mrb[0].mxu0
        %v615 = vadd.f32 %v407, %v614
        %v616 = vpop.f32.mrb[0].mxu0
        %617 = vmatprep.mubr.bf16.mxu0 0
        %618 = vmatmul.mubr.bf16.gmra.mrb[0].mxu0 %v512
        %v619 = vpop.f32.mrb[0].mxu0
        %v620 = vadd.f32 %v407, %v619
        %v621 = vpop.f32.mrb[0].mxu0
        %v622 = vpop.f32.mrb[0].mxu0
        %v623 = vadd.f32 %v407, %v622
        %v624 = vpop.f32.mrb[0].mxu0
        %625 = vmatprep.mubr.bf16.mxu0 0
        %626 = vmatmul.mubr.bf16.gmra.mrb[0].mxu0 %v515
        %v627 = vpop.f32.mrb[0].mxu0
        %v628 = vadd.f32 %v407, %v627
        %v629 = vpop.f32.mrb[0].mxu0
        %v630 = vpop.f32.mrb[0].mxu0
        %v631 = vadd.f32 %v407, %v630
        %v632 = vpop.f32.mrb[0].mxu0
        %633 = vdwg.mxu0
        %v634 = vmax.f32 %v556, 0.0
        %v635 = vmax.f32 %v559, 0.0
        %v636 = vmax.f32 %v564, 0.0
        %v637 = vmax.f32 %v567, 0.0
        %v638 = vmax.f32 %v572, 0.0
        %v639 = vmax.f32 %v575, 0.0
        %v640 = vmax.f32 %v580, 0.0
        %v641 = vmax.f32 %v583, 0.0
        %v642 = vmax.f32 %v588, 0.0
        %v643 = vmax.f32 %v591, 0.0
        %v644 = vmax.f32 %v596, 0.0
        %v645 = vmax.f32 %v599, 0.0
        %v646 = vmax.f32 %v604, 0.0
        %v647 = vmax.f32 %v607, 0.0
        %v648 = vmax.f32 %v612, 0.0
        %v649 = vmax.f32 %v615, 0.0
        %v650 = vmax.f32 %v620, 0.0
        %v651 = vmax.f32 %v623, 0.0
        %v652 = vmax.f32 %v628, 0.0
        %v653 = vmax.f32 %v631, 0.0
        %v654 = vpack.c.bf16 %v635, %v634
        %v655 = vpack.c.bf16 %v637, %v636
        %v656 = vpack.c.bf16 %v639, %v638
        %v657 = vpack.c.bf16 %v641, %v640
        %v658 = vpack.c.bf16 %v643, %v642
        %v659 = vpack.c.bf16 %v645, %v644
        %v660 = vpack.c.bf16 %v647, %v646
        %v661 = vpack.c.bf16 %v649, %v648
        %v662 = vpack.c.bf16 %v651, %v650
        %v663 = vpack.c.bf16 %v653, %v652
        %v665 = vshrl.u32 %v654, 16
        %v668 = vshrl.u32 %v655, 16
        %v671 = vshrl.u32 %v656, 16
        %v674 = vshrl.u32 %v657, 16
        %v677 = vshrl.u32 %v658, 16
        %v680 = vshrl.u32 %v659, 16
        %v683 = vshrl.u32 %v660, 16
        %v686 = vshrl.u32 %v661, 16
        %v689 = vshrl.u32 %v662, 16
        %v692 = vshrl.u32 %v663, 16
        %v704 = vrot.slane %v665, 7
        %v705 = vshll.u32 %v654, 16
        %v707 = vor.u32 %v704, %v705
        %v708 = vrot.slane %v668, 7
        %v709 = vshll.u32 %v655, 16
        %v711 = vor.u32 %v708, %v709
        %v712 = vrot.slane %v671, 7
        %v713 = vshll.u32 %v656, 16
        %v715 = vor.u32 %v712, %v713
        %v716 = vrot.slane %v674, 7
        %v717 = vshll.u32 %v657, 16
        %v719 = vor.u32 %v716, %v717
        %v720 = vrot.slane %v677, 7
        %v721 = vshll.u32 %v658, 16
        %v723 = vor.u32 %v720, %v721
        %v724 = vrot.slane %v680, 7
        %v725 = vshll.u32 %v659, 16
        %v727 = vor.u32 %v724, %v725
        %v728 = vrot.slane %v683, 7
        %v729 = vshll.u32 %v660, 16
        %v731 = vor.u32 %v728, %v729
        %v732 = vrot.slane %v686, 7
        %v733 = vshll.u32 %v661, 16
        %v735 = vor.u32 %v732, %v733
        %v736 = vrot.slane %v689, 7
        %v737 = vshll.u32 %v662, 16
        %v739 = vor.u32 %v736, %v737
        %v740 = vrot.slane %v692, 7
        %v741 = vshll.u32 %v663, 16
        %v743 = vor.u32 %v740, %v741
        %v764 = vrot.slane %v705, 7
        %v765 = vrot.slane %v709, 7
        %v766 = vrot.slane %v713, 7
        %v767 = vrot.slane %v717, 7
        %v768 = vrot.slane %v721, 7
        %v769 = vrot.slane %v725, 7
        %v770 = vrot.slane %v729, 7
        %v771 = vrot.slane %v733, 7
        %v772 = vrot.slane %v737, 7
        %v773 = vrot.slane %v741, 7
        %vm784 = vcmask 1040384
        %vm785 = vsmask.f32 256
        %vm786 = vmand %vm784, %vm785
        %v787 = vsel %vm786, %v665, %v707
        %v788 = vsel %vm786, %v668, %v711
        %v789 = vsel %vm786, %v671, %v715
        %v790 = vsel %vm786, %v674, %v719
        %v791 = vsel %vm786, %v677, %v723
        %v792 = vsel %vm786, %v680, %v727
        %v793 = vsel %vm786, %v683, %v731
        %v794 = vsel %vm786, %v686, %v735
        %v795 = vsel %vm786, %v689, %v739
        %v796 = vsel %vm786, %v692, %v743
        %v797 = vsel %vm786, %v704, %v764
        %v798 = vsel %vm786, %v708, %v765
        %v799 = vsel %vm786, %v712, %v766
        %v800 = vsel %vm786, %v716, %v767
        %v801 = vsel %vm786, %v720, %v768
        %v802 = vsel %vm786, %v724, %v769
        %v803 = vsel %vm786, %v728, %v770
        %v804 = vsel %vm786, %v732, %v771
        %v805 = vsel %vm786, %v736, %v772
        %v806 = vsel %vm786, %v740, %v773
        %vm807 = vsmask.f32 7424
        %v809 = vshrl.u32 %v787, 16
        %v811 = vshll.u32 %v787, 16
        %v813 = vrot.slane %v811, 1
        %v814 = vor.u32 %v809, %v813
        %v816 = vshll.u32 %v797, 16
        %v818 = vrot.slane %v816, 1
        %v819 = vsel %vm807, %v814, %v818
        %v821 = vshrl.u32 %v788, 16
        %v823 = vshll.u32 %v788, 16
        %v825 = vrot.slane %v823, 1
        %v826 = vor.u32 %v821, %v825
        %v828 = vshll.u32 %v798, 16
        %v830 = vrot.slane %v828, 1
        %v831 = vsel %vm807, %v826, %v830
        %v833 = vshrl.u32 %v789, 16
        %v835 = vshll.u32 %v789, 16
        %v837 = vrot.slane %v835, 1
        %v838 = vor.u32 %v833, %v837
        %v840 = vshll.u32 %v799, 16
        %v842 = vrot.slane %v840, 1
        %v843 = vsel %vm807, %v838, %v842
        %v845 = vshrl.u32 %v790, 16
        %v847 = vshll.u32 %v790, 16
        %v849 = vrot.slane %v847, 1
        %v850 = vor.u32 %v845, %v849
        %v852 = vshll.u32 %v800, 16
        %v854 = vrot.slane %v852, 1
        %v855 = vsel %vm807, %v850, %v854
        %v857 = vshrl.u32 %v791, 16
        %v859 = vshll.u32 %v791, 16
        %v861 = vrot.slane %v859, 1
        %v862 = vor.u32 %v857, %v861
        %v864 = vshll.u32 %v801, 16
        %v866 = vrot.slane %v864, 1
        %v867 = vsel %vm807, %v862, %v866
        %v869 = vshrl.u32 %v792, 16
        %v871 = vshll.u32 %v792, 16
        %v873 = vrot.slane %v871, 1
        %v874 = vor.u32 %v869, %v873
        %v876 = vshll.u32 %v802, 16
        %v878 = vrot.slane %v876, 1
        %v879 = vsel %vm807, %v874, %v878
        %v881 = vshrl.u32 %v793, 16
        %v883 = vshll.u32 %v793, 16
        %v885 = vrot.slane %v883, 1
        %v886 = vor.u32 %v881, %v885
        %v888 = vshll.u32 %v803, 16
        %v890 = vrot.slane %v888, 1
        %v891 = vsel %vm807, %v886, %v890
        %v893 = vshrl.u32 %v794, 16
        %v895 = vshll.u32 %v794, 16
        %v897 = vrot.slane %v895, 1
        %v898 = vor.u32 %v893, %v897
        %v900 = vshll.u32 %v804, 16
        %v902 = vrot.slane %v900, 1
        %v903 = vsel %vm807, %v898, %v902
        %vm928 = vcmask 1046528
        %v929 = vrot.slane %v787, 1
        %v930 = vrot.slane %v797, 1
        %v931 = vsel %vm928, %v929, %v930
        %v932 = vrot.slane %v788, 1
        %v933 = vrot.slane %v798, 1
        %v934 = vsel %vm928, %v932, %v933
        %v935 = vrot.slane %v789, 1
        %v936 = vrot.slane %v799, 1
        %v937 = vsel %vm928, %v935, %v936
        %v938 = vrot.slane %v790, 1
        %v939 = vrot.slane %v800, 1
        %v940 = vsel %vm928, %v938, %v939
        %v941 = vrot.slane %v791, 1
        %v942 = vrot.slane %v801, 1
        %v943 = vsel %vm928, %v941, %v942
        %v944 = vrot.slane %v792, 1
        %v945 = vrot.slane %v802, 1
        %v946 = vsel %vm928, %v944, %v945
        %v947 = vrot.slane %v793, 1
        %v948 = vrot.slane %v803, 1
        %v949 = vsel %vm928, %v947, %v948
        %v950 = vrot.slane %v794, 1
        %v951 = vrot.slane %v804, 1
        %v952 = vsel %vm928, %v950, %v951
        %v961 = vld [vmem:[%s3] sm:$0xf]
        %v962 = vld [vmem:[%s3 + $0x4] sm:$0xf]
        %v963 = vld [vmem:[%s3 + $0x8] sm:$0xf]
        %v964 = vld [vmem:[%s3 + $0xc] sm:$0xf]
        %v965 = vld [vmem:[%s3 + $0x10] sm:$0xf]
        %v966 = vld [vmem:[%s3 + $0x14] sm:$0xf]
        %v967 = vld [vmem:[%s3 + $0x18] sm:$0xf]
        %v968 = vld [vmem:[%s3 + $0x1c] sm:$0xf]
        %v969 = vld [vmem:[%s3 + $0x20] sm:$0xf]
        %v970 = vld [vmem:[%s3 + $0x24] sm:$0xf]
        %v971 = vld [vmem:[%s3 + $0x28] sm:$0xf]
        %v972 = vld [vmem:[%s3 + $0x2c] sm:$0xf]
        %v973 = vld [vmem:[%s3 + $0x30] sm:$0xf]
        %v974 = vld [vmem:[%s3 + $0x34] sm:$0xf]
        %v975 = vld [vmem:[%s3 + $0x38] sm:$0xf]
        %v976 = vld [vmem:[%s3 + $0x3c] sm:$0xf]
        %v977 = vld [vmem:[%s3 + $0x40] sm:$0xf]
        %v978 = vld [vmem:[%s3 + $0x44] sm:$0xf]
        %v979 = vld [vmem:[%s3 + $0x48] sm:$0xf]
        %v980 = vld [vmem:[%s3 + $0x4c] sm:$0xf]
        %v981 = vld [vmem:[%s3 + $0x50] sm:$0xf]
        %v982 = vld [vmem:[%s3 + $0x54] sm:$0xf]
        %v983 = vld [vmem:[%s3 + $0x58] sm:$0xf]
        %v984 = vld [vmem:[%s3 + $0x5c] sm:$0xf]
        %v985 = vld [vmem:[%s3 + $0x60] sm:$0xf]
        %v986 = vld [vmem:[%s3 + $0x64] sm:$0xf]
        %v987 = vld [vmem:[%s3 + $0x68] sm:$0xf]
        %v988 = vld [vmem:[%s3 + $0x6c] sm:$0xf]
        %v989 = vld [vmem:[%s3 + $0x70] sm:$0xf]
        %v990 = vld [vmem:[%s3 + $0x74] sm:$0xf]
        %v991 = vld [vmem:[%s3 + $0x78] sm:$0xf]
        %v992 = vld [vmem:[%s3 + $0x7c] sm:$0xf]
        %v993 = vld [vmem:[%s3 + $0x80] sm:$0xf]
        %v994 = vld [vmem:[%s3 + $0x84] sm:$0xf]
        %v995 = vld [vmem:[%s3 + $0x88] sm:$0xf]
        %v996 = vld [vmem:[%s3 + $0x8c] sm:$0xf]
        %v997 = vld [vmem:[%s3 + $0x90] sm:$0xf]
        %v998 = vld [vmem:[%s3 + $0x94] sm:$0xf]
        %v999 = vld [vmem:[%s3 + $0x98] sm:$0xf]
        %v1000 = vld [vmem:[%s3 + $0x9c] sm:$0xf]
        %v1001 = vld [vmem:[%s3 + $0xa0] sm:$0xf]
        %v1002 = vld [vmem:[%s3 + $0xa4] sm:$0xf]
        %v1003 = vld [vmem:[%s3 + $0xa8] sm:$0xf]
        %v1004 = vld [vmem:[%s3 + $0xac] sm:$0xf]
        %v1005 = vld [vmem:[%s3 + $0xb0] sm:$0xf]
        %v1006 = vld [vmem:[%s3 + $0xb4] sm:$0xf]
        %v1007 = vld [vmem:[%s3 + $0xb8] sm:$0xf]
        %v1008 = vld [vmem:[%s3 + $0xbc] sm:$0xf]
        %v1009 = vld [vmem:[%s5] sm:$0xf]
        %v1010 = vld [vmem:[%s5 + $0x4] sm:$0xf]
        %v1011 = vld [vmem:[%s5 + $0x8] sm:$0xf]
        %v1012 = vld [vmem:[%s5 + $0xc] sm:$0xf]
        %v1013 = vld [vmem:[%s5 + $0x10] sm:$0xf]
        %v1014 = vld [vmem:[%s5 + $0x14] sm:$0xf]
        %v1015 = vld [vmem:[%s5 + $0x18] sm:$0xf]
        %v1016 = vld [vmem:[%s5 + $0x1c] sm:$0xf]
        %v1017 = vld [vmem:[%s5 + $0x20] sm:$0xf]
        %v1018 = vld [vmem:[%s5 + $0x24] sm:$0xf]
        %v1019 = vld [vmem:[%s5 + $0x28] sm:$0xf]
        %v1020 = vld [vmem:[%s5 + $0x2c] sm:$0xf]
        %v1021 = vld [vmem:[%s5 + $0x30] sm:$0xf]
        %v1022 = vld [vmem:[%s5 + $0x34] sm:$0xf]
        %v1023 = vld [vmem:[%s5 + $0x38] sm:$0xf]
        %v1024 = vld [vmem:[%s5 + $0x3c] sm:$0xf]
        %v1025 = vld [vmem:[%s5 + $0x40] sm:$0xf]
        %v1026 = vld [vmem:[%s5 + $0x44] sm:$0xf]
        %v1027 = vld [vmem:[%s5 + $0x48] sm:$0xf]
        %v1028 = vld [vmem:[%s5 + $0x4c] sm:$0xf]
        %v1029 = vld [vmem:[%s5 + $0x50] sm:$0xf]
        %v1030 = vld [vmem:[%s5 + $0x54] sm:$0xf]
        %v1031 = vld [vmem:[%s5 + $0x58] sm:$0xf]
        %v1032 = vld [vmem:[%s5 + $0x5c] sm:$0xf]
        %v1033 = vld [vmem:[%s5 + $0x60] sm:$0xf]
        %v1034 = vld [vmem:[%s5 + $0x64] sm:$0xf]
        %v1035 = vld [vmem:[%s5 + $0x68] sm:$0xf]
        %v1036 = vld [vmem:[%s5 + $0x6c] sm:$0xf]
        %v1037 = vld [vmem:[%s5 + $0x70] sm:$0xf]
        %v1038 = vld [vmem:[%s5 + $0x74] sm:$0xf]
        %v1039 = vld [vmem:[%s5 + $0x78] sm:$0xf]
        %v1040 = vld [vmem:[%s5 + $0x7c] sm:$0xf]
        %v1041 = vld [vmem:[%s5 + $0x80] sm:$0xf]
        %v1042 = vld [vmem:[%s5 + $0x84] sm:$0xf]
        %v1043 = vld [vmem:[%s5 + $0x88] sm:$0xf]
        %v1044 = vld [vmem:[%s5 + $0x8c] sm:$0xf]
        %v1045 = vld [vmem:[%s5 + $0x90] sm:$0xf]
        %v1046 = vld [vmem:[%s5 + $0x94] sm:$0xf]
        %v1047 = vld [vmem:[%s5 + $0x98] sm:$0xf]
        %v1048 = vld [vmem:[%s5 + $0x9c] sm:$0xf]
        %v1049 = vld [vmem:[%s5 + $0xa0] sm:$0xf]
        %v1050 = vld [vmem:[%s5 + $0xa4] sm:$0xf]
        %v1051 = vld [vmem:[%s5 + $0xa8] sm:$0xf]
        %v1052 = vld [vmem:[%s5 + $0xac] sm:$0xf]
        %v1053 = vld [vmem:[%s5 + $0xb0] sm:$0xf]
        %v1054 = vld [vmem:[%s5 + $0xb4] sm:$0xf]
        %v1055 = vld [vmem:[%s5 + $0xb8] sm:$0xf]
        %v1056 = vld [vmem:[%s5 + $0xbc] sm:$0xf]
        %v1058 = vshrl.u32 %v795, 16
        %v1060 = vshll.u32 %v795, 16
        %v1062 = vrot.slane %v1060, 1
        %v1063 = vor.u32 %v1058, %v1062
        %v1065 = vshll.u32 %v805, 16
        %v1067 = vrot.slane %v1065, 1
        %v1068 = vsel %vm807, %v1063, %v1067
        %v1072 = vrot.slane %v795, 1
        %v1073 = vrot.slane %v805, 1
        %v1074 = vsel %vm928, %v1072, %v1073
        %s1076 = scalar_lea.vmem %s3, 192
        %v1077 = vld [vmem:[%s1076] sm:$0xf]
        %v1078 = vld [vmem:[%s1076 + $0x4] sm:$0xf]
        %v1079 = vld [vmem:[%s1076 + $0x8] sm:$0xf]
        %v1080 = vld [vmem:[%s1076 + $0xc] sm:$0xf]
        %v1081 = vld [vmem:[%s1076 + $0x10] sm:$0xf]
        %v1082 = vld [vmem:[%s1076 + $0x14] sm:$0xf]
        %v1083 = vld [vmem:[%s1076 + $0x18] sm:$0xf]
        %v1084 = vld [vmem:[%s1076 + $0x1c] sm:$0xf]
        %v1085 = vld [vmem:[%s1076 + $0x20] sm:$0xf]
        %v1086 = vld [vmem:[%s1076 + $0x24] sm:$0xf]
        %v1087 = vld [vmem:[%s1076 + $0x28] sm:$0xf]
        %v1088 = vld [vmem:[%s1076 + $0x2c] sm:$0xf]
        %v1089 = vld [vmem:[%s1076 + $0x30] sm:$0xf]
        %v1090 = vld [vmem:[%s1076 + $0x34] sm:$0xf]
        %v1091 = vld [vmem:[%s1076 + $0x38] sm:$0xf]
        %v1092 = vld [vmem:[%s1076 + $0x3c] sm:$0xf]
        %v1093 = vld [vmem:[%s1076 + $0x40] sm:$0xf]
        %v1094 = vld [vmem:[%s1076 + $0x44] sm:$0xf]
        %v1095 = vld [vmem:[%s1076 + $0x48] sm:$0xf]
        %v1096 = vld [vmem:[%s1076 + $0x4c] sm:$0xf]
        %v1097 = vld [vmem:[%s1076 + $0x50] sm:$0xf]
        %v1098 = vld [vmem:[%s1076 + $0x54] sm:$0xf]
        %v1099 = vld [vmem:[%s1076 + $0x58] sm:$0xf]
        %v1100 = vld [vmem:[%s1076 + $0x5c] sm:$0xf]
        %v1101 = vld [vmem:[%s1076 + $0x60] sm:$0xf]
        %v1102 = vld [vmem:[%s1076 + $0x64] sm:$0xf]
        %v1103 = vld [vmem:[%s1076 + $0x68] sm:$0xf]
        %v1104 = vld [vmem:[%s1076 + $0x6c] sm:$0xf]
        %v1105 = vld [vmem:[%s1076 + $0x70] sm:$0xf]
        %v1106 = vld [vmem:[%s1076 + $0x74] sm:$0xf]
        %v1107 = vld [vmem:[%s1076 + $0x78] sm:$0xf]
        %v1108 = vld [vmem:[%s1076 + $0x7c] sm:$0xf]
        %v1109 = vld [vmem:[%s1076 + $0x80] sm:$0xf]
        %v1110 = vld [vmem:[%s1076 + $0x84] sm:$0xf]
        %v1111 = vld [vmem:[%s1076 + $0x88] sm:$0xf]
        %v1112 = vld [vmem:[%s1076 + $0x8c] sm:$0xf]
        %v1113 = vld [vmem:[%s1076 + $0x90] sm:$0xf]
        %v1114 = vld [vmem:[%s1076 + $0x94] sm:$0xf]
        %v1115 = vld [vmem:[%s1076 + $0x98] sm:$0xf]
        %v1116 = vld [vmem:[%s1076 + $0x9c] sm:$0xf]
        %v1117 = vld [vmem:[%s1076 + $0xa0] sm:$0xf]
        %v1118 = vld [vmem:[%s1076 + $0xa4] sm:$0xf]
        %v1119 = vld [vmem:[%s1076 + $0xa8] sm:$0xf]
        %v1120 = vld [vmem:[%s1076 + $0xac] sm:$0xf]
        %v1121 = vld [vmem:[%s1076 + $0xb0] sm:$0xf]
        %v1122 = vld [vmem:[%s1076 + $0xb4] sm:$0xf]
        %v1123 = vld [vmem:[%s1076 + $0xb8] sm:$0xf]
        %v1124 = vld [vmem:[%s1076 + $0xbc] sm:$0xf]
        %v1173 = vunpack.c.l.b16 %v1077
        %v1174 = vunpack.c.l.b16 %v1078
        %v1175 = vunpack.c.l.b16 %v1079
        %v1176 = vunpack.c.l.b16 %v1080
        %v1177 = vunpack.c.l.b16 %v1081
        %v1178 = vunpack.c.l.b16 %v1082
        %v1179 = vunpack.c.l.b16 %v1083
        %v1180 = vunpack.c.l.b16 %v1084
        %v1181 = vunpack.c.l.b16 %v1085
        %v1182 = vunpack.c.l.b16 %v1086
        %v1183 = vunpack.c.l.b16 %v1087
        %v1184 = vunpack.c.l.b16 %v1088
        %v1185 = vunpack.c.l.b16 %v1089
        %v1186 = vunpack.c.l.b16 %v1090
        %v1187 = vunpack.c.l.b16 %v1091
        %v1188 = vunpack.c.l.b16 %v1092
        %v1189 = vunpack.c.l.b16 %v1093
        %v1190 = vunpack.c.l.b16 %v1094
        %v1191 = vunpack.c.l.b16 %v1095
        %v1192 = vunpack.c.l.b16 %v1096
        %v1193 = vunpack.c.l.b16 %v1097
        %v1194 = vunpack.c.l.b16 %v1098
        %v1195 = vunpack.c.l.b16 %v1099
        %v1196 = vunpack.c.l.b16 %v1100
        %v1197 = vunpack.c.l.b16 %v1101
        %v1198 = vunpack.c.l.b16 %v1102
        %v1199 = vunpack.c.l.b16 %v1103
        %v1200 = vunpack.c.l.b16 %v1104
        %v1201 = vunpack.c.l.b16 %v1105
        %v1202 = vunpack.c.l.b16 %v1106
        %v1203 = vunpack.c.l.b16 %v1107
        %v1204 = vunpack.c.l.b16 %v1108
        %v1205 = vunpack.c.l.b16 %v1109
        %v1206 = vunpack.c.l.b16 %v1110
        %v1207 = vunpack.c.l.b16 %v1111
        %v1208 = vunpack.c.l.b16 %v1112
        %v1209 = vunpack.c.l.b16 %v1113
        %v1210 = vunpack.c.l.b16 %v1114
        %v1211 = vunpack.c.l.b16 %v1115
        %v1212 = vunpack.c.l.b16 %v1116
        %v1213 = vunpack.c.l.b16 %v1117
        %v1214 = vunpack.c.l.b16 %v1118
        %v1215 = vunpack.c.l.b16 %v1119
        %v1216 = vunpack.c.l.b16 %v1120
        %v1217 = vunpack.c.l.b16 %v1121
        %v1218 = vunpack.c.l.b16 %v1122
        %v1219 = vunpack.c.l.b16 %v1123
        %v1220 = vunpack.c.l.b16 %v1124
        %v1221 = vpack.c.b16 %v1174, %v1173
        %v1222 = vpack.c.b16 %v1176, %v1175
        %v1223 = vpack.c.b16 %v1178, %v1177
        %v1224 = vpack.c.b16 %v1180, %v1179
        %v1225 = vpack.c.b16 %v1182, %v1181
        %v1226 = vpack.c.b16 %v1184, %v1183
        %v1227 = vpack.c.b16 %v1186, %v1185
        %v1228 = vpack.c.b16 %v1188, %v1187
        %v1229 = vpack.c.b16 %v1190, %v1189
        %v1230 = vpack.c.b16 %v1192, %v1191
        %v1231 = vpack.c.b16 %v1194, %v1193
        %v1232 = vpack.c.b16 %v1196, %v1195
        %v1233 = vpack.c.b16 %v1198, %v1197
        %v1234 = vpack.c.b16 %v1200, %v1199
        %v1235 = vpack.c.b16 %v1202, %v1201
        %v1236 = vpack.c.b16 %v1204, %v1203
        %v1237 = vpack.c.b16 %v1206, %v1205
        %v1238 = vpack.c.b16 %v1208, %v1207
        %v1239 = vpack.c.b16 %v1210, %v1209
        %v1240 = vpack.c.b16 %v1212, %v1211
        %v1241 = vpack.c.b16 %v1214, %v1213
        %v1242 = vpack.c.b16 %v1216, %v1215
        %v1243 = vpack.c.b16 %v1218, %v1217
        %v1244 = vpack.c.b16 %v1220, %v1219
        %1269 = vmatprep.subr.bf16.mxu0 0
        %1270 = vmatpush1.bf16.msra.mxu0 %v1221
        %1271 = vmatprep.subr.bf16.mxu0 0
        %1272 = vmatpush1.bf16.msra.mxu0 %v1222
        %1273 = vmatprep.subr.bf16.mxu0 0
        %1274 = vmatpush1.bf16.msra.mxu0 %v1223
        %1275 = vmatprep.subr.bf16.mxu0 0
        %1276 = vmatpush1.bf16.msra.mxu0 %v1224
        %1277 = vmatprep.subr.bf16.mxu0 0
        %1278 = vmatpush1.bf16.msra.mxu0 %v1225
        %1279 = vmatprep.subr.bf16.mxu0 0
        %1280 = vmatpush1.bf16.msra.mxu0 %v1226
        %1281 = vmatprep.subr.bf16.mxu0 0
        %1282 = vmatpush1.bf16.msra.mxu0 %v1227
        %1283 = vmatprep.subr.bf16.mxu0 0
        %1284 = vmatpush1.bf16.msra.mxu0 %v1228
        %1285 = vmatprep.subr.bf16.mxu0 0
        %1286 = vmatpush1.bf16.msra.mxu0 %v1229
        %1287 = vmatprep.subr.bf16.mxu0 0
        %1288 = vmatpush1.bf16.msra.mxu0 %v1230
        %1289 = vmatprep.subr.bf16.mxu0 0
        %1290 = vmatpush1.bf16.msra.mxu0 %v1231
        %1291 = vmatprep.subr.bf16.mxu0 0
        %1292 = vmatpush1.bf16.msra.mxu0 %v1232
        %1293 = vmatprep.subr.bf16.mxu0 0
        %1294 = vmatpush1.bf16.msra.mxu0 %v1233
        %1295 = vmatprep.subr.bf16.mxu0 0
        %1296 = vmatpush1.bf16.msra.mxu0 %v1234
        %1297 = vmatprep.subr.bf16.mxu0 0
        %1298 = vmatpush1.bf16.msra.mxu0 %v1235
        %1299 = vmatprep.subr.bf16.mxu0 0
        %1300 = vmatpush1.bf16.msra.mxu0 %v1236
        %1301 = vmatprep.mubr.bf16.mxu0 %v831
        %1302 = vmatmul.mubr.bf16.gmra.mrb[0].mxu0 %v788
        %v1303 = vpop.f32.mrb[0].mxu0
        %v1304 = vadd.f32 0.0, %v1303
        %v1305 = vpop.f32.mrb[0].mxu0
        %v1306 = vpop.f32.mrb[0].mxu0
        %v1307 = vadd.f32 0.0, %v1306
        %v1308 = vpop.f32.mrb[0].mxu0
        %1309 = vmatprep.mubr.bf16.mxu0 %v843
        %1310 = vmatmul.mubr.bf16.gmra.mrb[0].mxu0 %v789
        %v1311 = vpop.f32.mrb[0].mxu0
        %v1312 = vadd.f32 0.0, %v1311
        %v1313 = vpop.f32.mrb[0].mxu0
        %v1314 = vpop.f32.mrb[0].mxu0
        %v1315 = vadd.f32 0.0, %v1314
        %v1316 = vpop.f32.mrb[0].mxu0
        %1317 = vmatprep.mubr.bf16.mxu0 %v855
        %1318 = vmatmul.mubr.bf16.gmra.mrb[0].mxu0 %v790
        %v1319 = vpop.f32.mrb[0].mxu0
        %v1320 = vadd.f32 0.0, %v1319
        %v1321 = vpop.f32.mrb[0].mxu0
        %v1322 = vpop.f32.mrb[0].mxu0
        %v1323 = vadd.f32 0.0, %v1322
        %v1324 = vpop.f32.mrb[0].mxu0
        %1325 = vmatprep.mubr.bf16.mxu0 %v867
        %1326 = vmatmul.mubr.bf16.gmra.mrb[0].mxu0 %v791
        %v1327 = vpop.f32.mrb[0].mxu0
        %v1328 = vadd.f32 0.0, %v1327
        %v1329 = vpop.f32.mrb[0].mxu0
        %v1330 = vpop.f32.mrb[0].mxu0
        %v1331 = vadd.f32 0.0, %v1330
        %v1332 = vpop.f32.mrb[0].mxu0
        %1333 = vmatprep.mubr.bf16.mxu0 %v879
        %1334 = vmatmul.mubr.bf16.gmra.mrb[0].mxu0 %v792
        %v1335 = vpop.f32.mrb[0].mxu0
        %v1336 = vadd.f32 0.0, %v1335
        %v1337 = vpop.f32.mrb[0].mxu0
        %v1338 = vpop.f32.mrb[0].mxu0
        %v1339 = vadd.f32 0.0, %v1338
        %v1340 = vpop.f32.mrb[0].mxu0
        %1341 = vmatprep.mubr.bf16.mxu0 %v891
        %1342 = vmatmul.mubr.bf16.gmra.mrb[0].mxu0 %v793
        %v1343 = vpop.f32.mrb[0].mxu0
        %v1344 = vadd.f32 0.0, %v1343
        %v1345 = vpop.f32.mrb[0].mxu0
        %v1346 = vpop.f32.mrb[0].mxu0
        %v1347 = vadd.f32 0.0, %v1346
        %v1348 = vpop.f32.mrb[0].mxu0
        %1349 = vmatprep.mubr.bf16.mxu0 %v903
        %1350 = vmatmul.mubr.bf16.gmra.mrb[0].mxu0 %v794
        %v1351 = vpop.f32.mrb[0].mxu0
        %v1352 = vadd.f32 0.0, %v1351
        %v1353 = vpop.f32.mrb[0].mxu0
        %v1354 = vpop.f32.mrb[0].mxu0
        %v1355 = vadd.f32 0.0, %v1354
        %v1356 = vpop.f32.mrb[0].mxu0
        %1357 = vmatprep.mubr.bf16.mxu0 %v1068
        %1358 = vmatmul.mubr.bf16.gmra.mrb[0].mxu0 %v795
        %v1359 = vpop.f32.mrb[0].mxu0
        %v1360 = vadd.f32 0.0, %v1359
        %v1361 = vpop.f32.mrb[0].mxu0
        %v1362 = vpop.f32.mrb[0].mxu0
        %v1363 = vadd.f32 0.0, %v1362
        %v1364 = vpop.f32.mrb[0].mxu0
        %1365 = vdwg.mxu0
        %1366 = vmatprep.subr.bf16.mxu0 0
        %1367 = vmatpush1.bf16.msra.mxu0 %v1237
        %1368 = vmatprep.subr.bf16.mxu0 0
        %1369 = vmatpush1.bf16.msra.mxu0 %v1238
        %1370 = vmatprep.subr.bf16.mxu0 0
        %1371 = vmatpush1.bf16.msra.mxu0 %v1239
        %1372 = vmatprep.subr.bf16.mxu0 0
        %1373 = vmatpush1.bf16.msra.mxu0 %v1240
        %1374 = vmatprep.subr.bf16.mxu0 0
        %1375 = vmatpush1.bf16.msra.mxu0 %v1241
        %1376 = vmatprep.subr.bf16.mxu0 0
        %1377 = vmatpush1.bf16.msra.mxu0 %v1242
        %1378 = vmatprep.subr.bf16.mxu0 0
        %1379 = vmatpush1.bf16.msra.mxu0 %v1243
        %1380 = vmatprep.subr.bf16.mxu0 0
        %1381 = vmatpush1.bf16.msra.mxu0 %v1244
        %1382 = vmatprep.subr.bf16.mxu0 0
        %1383 = vmatpush1.bf16.msra.mxu0 0
        %1384 = vmatprep.subr.bf16.mxu0 0
        %1385 = vmatpush1.bf16.msra.mxu0 0
        %1386 = vmatprep.subr.bf16.mxu0 0
        %1387 = vmatpush1.bf16.msra.mxu0 0
        %1388 = vmatprep.subr.bf16.mxu0 0
        %1389 = vmatpush1.bf16.msra.mxu0 0
        %1390 = vmatprep.subr.bf16.mxu0 0
        %1391 = vmatpush1.bf16.msra.mxu0 0
        %1392 = vmatprep.subr.bf16.mxu0 0
        %1393 = vmatpush1.bf16.msra.mxu0 0
        %1394 = vmatprep.subr.bf16.mxu0 0
        %1395 = vmatpush1.bf16.msra.mxu0 0
        %1396 = vmatprep.subr.bf16.mxu0 0
        %1397 = vmatpush1.bf16.msra.mxu0 0
        %1398 = vmatprep.mubr.bf16.mxu0 0
        %1399 = vmatmul.mubr.bf16.gmra.mrb[0].mxu0 %v934
        %v1400 = vpop.f32.mrb[0].mxu0
        %v1401 = vadd.f32 %v1304, %v1400
        %v1402 = vpop.f32.mrb[0].mxu0
        %v1403 = vpop.f32.mrb[0].mxu0
        %v1404 = vadd.f32 %v1307, %v1403
        %v1405 = vpop.f32.mrb[0].mxu0
        %1406 = vmatprep.mubr.bf16.mxu0 0
        %1407 = vmatmul.mubr.bf16.gmra.mrb[0].mxu0 %v937
        %v1408 = vpop.f32.mrb[0].mxu0
        %v1409 = vadd.f32 %v1312, %v1408
        %v1410 = vpop.f32.mrb[0].mxu0
        %v1411 = vpop.f32.mrb[0].mxu0
        %v1412 = vadd.f32 %v1315, %v1411
        %v1413 = vpop.f32.mrb[0].mxu0
        %1414 = vmatprep.mubr.bf16.mxu0 0
        %1415 = vmatmul.mubr.bf16.gmra.mrb[0].mxu0 %v940
        %v1416 = vpop.f32.mrb[0].mxu0
        %v1417 = vadd.f32 %v1320, %v1416
        %v1418 = vpop.f32.mrb[0].mxu0
        %v1419 = vpop.f32.mrb[0].mxu0
        %v1420 = vadd.f32 %v1323, %v1419
        %v1421 = vpop.f32.mrb[0].mxu0
        %1422 = vmatprep.mubr.bf16.mxu0 0
        %1423 = vmatmul.mubr.bf16.gmra.mrb[0].mxu0 %v943
        %v1424 = vpop.f32.mrb[0].mxu0
        %v1425 = vadd.f32 %v1328, %v1424
        %v1426 = vpop.f32.mrb[0].mxu0
        %v1427 = vpop.f32.mrb[0].mxu0
        %v1428 = vadd.f32 %v1331, %v1427
        %v1429 = vpop.f32.mrb[0].mxu0
        %1430 = vmatprep.mubr.bf16.mxu0 0
        %1431 = vmatmul.mubr.bf16.gmra.mrb[0].mxu0 %v946
        %v1432 = vpop.f32.mrb[0].mxu0
        %v1433 = vadd.f32 %v1336, %v1432
        %v1434 = vpop.f32.mrb[0].mxu0
        %v1435 = vpop.f32.mrb[0].mxu0
        %v1436 = vadd.f32 %v1339, %v1435
        %v1437 = vpop.f32.mrb[0].mxu0
        %1438 = vmatprep.mubr.bf16.mxu0 0
        %1439 = vmatmul.mubr.bf16.gmra.mrb[0].mxu0 %v949
        %v1440 = vpop.f32.mrb[0].mxu0
        %v1441 = vadd.f32 %v1344, %v1440
        %v1442 = vpop.f32.mrb[0].mxu0
        %v1443 = vpop.f32.mrb[0].mxu0
        %v1444 = vadd.f32 %v1347, %v1443
        %v1445 = vpop.f32.mrb[0].mxu0
        %1446 = vmatprep.mubr.bf16.mxu0 0
        %1447 = vmatmul.mubr.bf16.gmra.mrb[0].mxu0 %v952
        %v1448 = vpop.f32.mrb[0].mxu0
        %v1449 = vadd.f32 %v1352, %v1448
        %v1450 = vpop.f32.mrb[0].mxu0
        %v1451 = vpop.f32.mrb[0].mxu0
        %v1452 = vadd.f32 %v1355, %v1451
        %v1453 = vpop.f32.mrb[0].mxu0
        %1454 = vmatprep.mubr.bf16.mxu0 0
        %1455 = vmatmul.mubr.bf16.gmra.mrb[0].mxu0 %v1074
        %v1456 = vpop.f32.mrb[0].mxu0
        %v1457 = vadd.f32 %v1360, %v1456
        %v1458 = vpop.f32.mrb[0].mxu0
        %v1459 = vpop.f32.mrb[0].mxu0
        %v1460 = vadd.f32 %v1363, %v1459
        %v1461 = vpop.f32.mrb[0].mxu0
        %1462 = vdwg.mxu0
        %v1511 = vunpack.c.l.b16 %v961
        %v1512 = vunpack.c.l.b16 %v962
        %v1513 = vunpack.c.l.b16 %v963
        %v1514 = vunpack.c.l.b16 %v964
        %v1515 = vunpack.c.l.b16 %v965
        %v1516 = vunpack.c.l.b16 %v966
        %v1517 = vunpack.c.l.b16 %v967
        %v1518 = vunpack.c.l.b16 %v968
        %v1519 = vunpack.c.l.b16 %v969
        %v1520 = vunpack.c.l.b16 %v970
        %v1521 = vunpack.c.l.b16 %v971
        %v1522 = vunpack.c.l.b16 %v972
        %v1523 = vunpack.c.l.b16 %v973
        %v1524 = vunpack.c.l.b16 %v974
        %v1525 = vunpack.c.l.b16 %v975
        %v1526 = vunpack.c.l.b16 %v976
        %v1527 = vunpack.c.l.b16 %v977
        %v1528 = vunpack.c.l.b16 %v978
        %v1529 = vunpack.c.l.b16 %v979
        %v1530 = vunpack.c.l.b16 %v980
        %v1531 = vunpack.c.l.b16 %v981
        %v1532 = vunpack.c.l.b16 %v982
        %v1533 = vunpack.c.l.b16 %v983
        %v1534 = vunpack.c.l.b16 %v984
        %v1535 = vunpack.c.l.b16 %v985
        %v1536 = vunpack.c.l.b16 %v986
        %v1537 = vunpack.c.l.b16 %v987
        %v1538 = vunpack.c.l.b16 %v988
        %v1539 = vunpack.c.l.b16 %v989
        %v1540 = vunpack.c.l.b16 %v990
        %v1541 = vunpack.c.l.b16 %v991
        %v1542 = vunpack.c.l.b16 %v992
        %v1543 = vunpack.c.l.b16 %v993
        %v1544 = vunpack.c.l.b16 %v994
        %v1545 = vunpack.c.l.b16 %v995
        %v1546 = vunpack.c.l.b16 %v996
        %v1547 = vunpack.c.l.b16 %v997
        %v1548 = vunpack.c.l.b16 %v998
        %v1549 = vunpack.c.l.b16 %v999
        %v1550 = vunpack.c.l.b16 %v1000
        %v1551 = vunpack.c.l.b16 %v1001
        %v1552 = vunpack.c.l.b16 %v1002
        %v1553 = vunpack.c.l.b16 %v1003
        %v1554 = vunpack.c.l.b16 %v1004
        %v1555 = vunpack.c.l.b16 %v1005
        %v1556 = vunpack.c.l.b16 %v1006
        %v1557 = vunpack.c.l.b16 %v1007
        %v1558 = vunpack.c.l.b16 %v1008
        %v1559 = vpack.c.b16 %v1512, %v1511
        %v1560 = vpack.c.b16 %v1514, %v1513
        %v1561 = vpack.c.b16 %v1516, %v1515
        %v1562 = vpack.c.b16 %v1518, %v1517
        %v1563 = vpack.c.b16 %v1520, %v1519
        %v1564 = vpack.c.b16 %v1522, %v1521
        %v1565 = vpack.c.b16 %v1524, %v1523
        %v1566 = vpack.c.b16 %v1526, %v1525
        %v1567 = vpack.c.b16 %v1528, %v1527
        %v1568 = vpack.c.b16 %v1530, %v1529
        %v1569 = vpack.c.b16 %v1532, %v1531
        %v1570 = vpack.c.b16 %v1534, %v1533
        %v1571 = vpack.c.b16 %v1536, %v1535
        %v1572 = vpack.c.b16 %v1538, %v1537
        %v1573 = vpack.c.b16 %v1540, %v1539
        %v1574 = vpack.c.b16 %v1542, %v1541
        %v1575 = vpack.c.b16 %v1544, %v1543
        %v1576 = vpack.c.b16 %v1546, %v1545
        %v1577 = vpack.c.b16 %v1548, %v1547
        %v1578 = vpack.c.b16 %v1550, %v1549
        %v1579 = vpack.c.b16 %v1552, %v1551
        %v1580 = vpack.c.b16 %v1554, %v1553
        %v1581 = vpack.c.b16 %v1556, %v1555
        %v1582 = vpack.c.b16 %v1558, %v1557
        %1607 = vmatprep.subr.bf16.mxu0 0
        %1608 = vmatpush1.bf16.msra.mxu0 %v1559
        %1609 = vmatprep.subr.bf16.mxu0 0
        %1610 = vmatpush1.bf16.msra.mxu0 %v1560
        %1611 = vmatprep.subr.bf16.mxu0 0
        %1612 = vmatpush1.bf16.msra.mxu0 %v1561
        %1613 = vmatprep.subr.bf16.mxu0 0
        %1614 = vmatpush1.bf16.msra.mxu0 %v1562
        %1615 = vmatprep.subr.bf16.mxu0 0
        %1616 = vmatpush1.bf16.msra.mxu0 %v1563
        %1617 = vmatprep.subr.bf16.mxu0 0
        %1618 = vmatpush1.bf16.msra.mxu0 %v1564
        %1619 = vmatprep.subr.bf16.mxu0 0
        %1620 = vmatpush1.bf16.msra.mxu0 %v1565
        %1621 = vmatprep.subr.bf16.mxu0 0
        %1622 = vmatpush1.bf16.msra.mxu0 %v1566
        %1623 = vmatprep.subr.bf16.mxu0 0
        %1624 = vmatpush1.bf16.msra.mxu0 %v1567
        %1625 = vmatprep.subr.bf16.mxu0 0
        %1626 = vmatpush1.bf16.msra.mxu0 %v1568
        %1627 = vmatprep.subr.bf16.mxu0 0
        %1628 = vmatpush1.bf16.msra.mxu0 %v1569
        %1629 = vmatprep.subr.bf16.mxu0 0
        %1630 = vmatpush1.bf16.msra.mxu0 %v1570
        %1631 = vmatprep.subr.bf16.mxu0 0
        %1632 = vmatpush1.bf16.msra.mxu0 %v1571
        %1633 = vmatprep.subr.bf16.mxu0 0
        %1634 = vmatpush1.bf16.msra.mxu0 %v1572
        %1635 = vmatprep.subr.bf16.mxu0 0
        %1636 = vmatpush1.bf16.msra.mxu0 %v1573
        %1637 = vmatprep.subr.bf16.mxu0 0
        %1638 = vmatpush1.bf16.msra.mxu0 %v1574
        %1639 = vmatprep.mubr.bf16.mxu0 %v819
        %1640 = vmatmul.mubr.bf16.gmra.mrb[0].mxu0 %v787
        %v1641 = vpop.f32.mrb[0].mxu0
        %v1642 = vadd.f32 %v1401, %v1641
        %v1643 = vpop.f32.mrb[0].mxu0
        %v1644 = vpop.f32.mrb[0].mxu0
        %v1645 = vadd.f32 %v1404, %v1644
        %v1646 = vpop.f32.mrb[0].mxu0
        %1647 = vmatprep.mubr.bf16.mxu0 %v831
        %1648 = vmatmul.mubr.bf16.gmra.mrb[0].mxu0 %v788
        %v1649 = vpop.f32.mrb[0].mxu0
        %v1650 = vadd.f32 %v1409, %v1649
        %v1651 = vpop.f32.mrb[0].mxu0
        %v1652 = vpop.f32.mrb[0].mxu0
        %v1653 = vadd.f32 %v1412, %v1652
        %v1654 = vpop.f32.mrb[0].mxu0
        %1655 = vmatprep.mubr.bf16.mxu0 %v843
        %1656 = vmatmul.mubr.bf16.gmra.mrb[0].mxu0 %v789
        %v1657 = vpop.f32.mrb[0].mxu0
        %v1658 = vadd.f32 %v1417, %v1657
        %v1659 = vpop.f32.mrb[0].mxu0
        %v1660 = vpop.f32.mrb[0].mxu0
        %v1661 = vadd.f32 %v1420, %v1660
        %v1662 = vpop.f32.mrb[0].mxu0
        %1663 = vmatprep.mubr.bf16.mxu0 %v855
        %1664 = vmatmul.mubr.bf16.gmra.mrb[0].mxu0 %v790
        %v1665 = vpop.f32.mrb[0].mxu0
        %v1666 = vadd.f32 %v1425, %v1665
        %v1667 = vpop.f32.mrb[0].mxu0
        %v1668 = vpop.f32.mrb[0].mxu0
        %v1669 = vadd.f32 %v1428, %v1668
        %v1670 = vpop.f32.mrb[0].mxu0
        %1671 = vmatprep.mubr.bf16.mxu0 %v867
        %1672 = vmatmul.mubr.bf16.gmra.mrb[0].mxu0 %v791
        %v1673 = vpop.f32.mrb[0].mxu0
        %v1674 = vadd.f32 %v1433, %v1673
        %v1675 = vpop.f32.mrb[0].mxu0
        %v1676 = vpop.f32.mrb[0].mxu0
        %v1677 = vadd.f32 %v1436, %v1676
        %v1678 = vpop.f32.mrb[0].mxu0
        %1679 = vmatprep.mubr.bf16.mxu0 %v879
        %1680 = vmatmul.mubr.bf16.gmra.mrb[0].mxu0 %v792
        %v1681 = vpop.f32.mrb[0].mxu0
        %v1682 = vadd.f32 %v1441, %v1681
        %v1683 = vpop.f32.mrb[0].mxu0
        %v1684 = vpop.f32.mrb[0].mxu0
        %v1685 = vadd.f32 %v1444, %v1684
        %v1686 = vpop.f32.mrb[0].mxu0
        %1687 = vmatprep.mubr.bf16.mxu0 %v891
        %1688 = vmatmul.mubr.bf16.gmra.mrb[0].mxu0 %v793
        %v1689 = vpop.f32.mrb[0].mxu0
        %v1690 = vadd.f32 %v1449, %v1689
        %v1691 = vpop.f32.mrb[0].mxu0
        %v1692 = vpop.f32.mrb[0].mxu0
        %v1693 = vadd.f32 %v1452, %v1692
        %v1694 = vpop.f32.mrb[0].mxu0
        %1695 = vmatprep.mubr.bf16.mxu0 %v903
        %1696 = vmatmul.mubr.bf16.gmra.mrb[0].mxu0 %v794
        %v1697 = vpop.f32.mrb[0].mxu0
        %v1698 = vadd.f32 %v1457, %v1697
        %v1699 = vpop.f32.mrb[0].mxu0
        %v1700 = vpop.f32.mrb[0].mxu0
        %v1701 = vadd.f32 %v1460, %v1700
        %v1702 = vpop.f32.mrb[0].mxu0
        %1703 = vdwg.mxu0
        %1704 = vmatprep.subr.bf16.mxu0 0
        %1705 = vmatpush1.bf16.msra.mxu0 %v1575
        %1706 = vmatprep.subr.bf16.mxu0 0
        %1707 = vmatpush1.bf16.msra.mxu0 %v1576
        %1708 = vmatprep.subr.bf16.mxu0 0
        %1709 = vmatpush1.bf16.msra.mxu0 %v1577
        %1710 = vmatprep.subr.bf16.mxu0 0
        %1711 = vmatpush1.bf16.msra.mxu0 %v1578
        %1712 = vmatprep.subr.bf16.mxu0 0
        %1713 = vmatpush1.bf16.msra.mxu0 %v1579
        %1714 = vmatprep.subr.bf16.mxu0 0
        %1715 = vmatpush1.bf16.msra.mxu0 %v1580
        %1716 = vmatprep.subr.bf16.mxu0 0
        %1717 = vmatpush1.bf16.msra.mxu0 %v1581
        %1718 = vmatprep.subr.bf16.mxu0 0
        %1719 = vmatpush1.bf16.msra.mxu0 %v1582
        %1720 = vmatprep.subr.bf16.mxu0 0
        %1721 = vmatpush1.bf16.msra.mxu0 0
        %1722 = vmatprep.subr.bf16.mxu0 0
        %1723 = vmatpush1.bf16.msra.mxu0 0
        %1724 = vmatprep.subr.bf16.mxu0 0
        %1725 = vmatpush1.bf16.msra.mxu0 0
        %1726 = vmatprep.subr.bf16.mxu0 0
        %1727 = vmatpush1.bf16.msra.mxu0 0
        %1728 = vmatprep.subr.bf16.mxu0 0
        %1729 = vmatpush1.bf16.msra.mxu0 0
        %1730 = vmatprep.subr.bf16.mxu0 0
        %1731 = vmatpush1.bf16.msra.mxu0 0
        %1732 = vmatprep.subr.bf16.mxu0 0
        %1733 = vmatpush1.bf16.msra.mxu0 0
        %1734 = vmatprep.subr.bf16.mxu0 0
        %1735 = vmatpush1.bf16.msra.mxu0 0
        %1736 = vmatprep.mubr.bf16.mxu0 0
        %1737 = vmatmul.mubr.bf16.gmra.mrb[0].mxu0 %v931
        %v1738 = vpop.f32.mrb[0].mxu0
        %v1739 = vadd.f32 %v1642, %v1738
        %v1740 = vpop.f32.mrb[0].mxu0
        %v1741 = vpop.f32.mrb[0].mxu0
        %v1742 = vadd.f32 %v1645, %v1741
        %v1743 = vpop.f32.mrb[0].mxu0
        %1744 = vmatprep.mubr.bf16.mxu0 0
        %1745 = vmatmul.mubr.bf16.gmra.mrb[0].mxu0 %v934
        %v1746 = vpop.f32.mrb[0].mxu0
        %v1747 = vadd.f32 %v1650, %v1746
        %v1748 = vpop.f32.mrb[0].mxu0
        %v1749 = vpop.f32.mrb[0].mxu0
        %v1750 = vadd.f32 %v1653, %v1749
        %v1751 = vpop.f32.mrb[0].mxu0
        %1752 = vmatprep.mubr.bf16.mxu0 0
        %1753 = vmatmul.mubr.bf16.gmra.mrb[0].mxu0 %v937
        %v1754 = vpop.f32.mrb[0].mxu0
        %v1755 = vadd.f32 %v1658, %v1754
        %v1756 = vpop.f32.mrb[0].mxu0
        %v1757 = vpop.f32.mrb[0].mxu0
        %v1758 = vadd.f32 %v1661, %v1757
        %v1759 = vpop.f32.mrb[0].mxu0
        %1760 = vmatprep.mubr.bf16.mxu0 0
        %1761 = vmatmul.mubr.bf16.gmra.mrb[0].mxu0 %v940
        %v1762 = vpop.f32.mrb[0].mxu0
        %v1763 = vadd.f32 %v1666, %v1762
        %v1764 = vpop.f32.mrb[0].mxu0
        %v1765 = vpop.f32.mrb[0].mxu0
        %v1766 = vadd.f32 %v1669, %v1765
        %v1767 = vpop.f32.mrb[0].mxu0
        %1768 = vmatprep.mubr.bf16.mxu0 0
        %1769 = vmatmul.mubr.bf16.gmra.mrb[0].mxu0 %v943
        %v1770 = vpop.f32.mrb[0].mxu0
        %v1771 = vadd.f32 %v1674, %v1770
        %v1772 = vpop.f32.mrb[0].mxu0
        %v1773 = vpop.f32.mrb[0].mxu0
        %v1774 = vadd.f32 %v1677, %v1773
        %v1775 = vpop.f32.mrb[0].mxu0
        %1776 = vmatprep.mubr.bf16.mxu0 0
        %1777 = vmatmul.mubr.bf16.gmra.mrb[0].mxu0 %v946
        %v1778 = vpop.f32.mrb[0].mxu0
        %v1779 = vadd.f32 %v1682, %v1778
        %v1780 = vpop.f32.mrb[0].mxu0
        %v1781 = vpop.f32.mrb[0].mxu0
        %v1782 = vadd.f32 %v1685, %v1781
        %v1783 = vpop.f32.mrb[0].mxu0
        %1784 = vmatprep.mubr.bf16.mxu0 0
        %1785 = vmatmul.mubr.bf16.gmra.mrb[0].mxu0 %v949
        %v1786 = vpop.f32.mrb[0].mxu0
        %v1787 = vadd.f32 %v1690, %v1786
        %v1788 = vpop.f32.mrb[0].mxu0
        %v1789 = vpop.f32.mrb[0].mxu0
        %v1790 = vadd.f32 %v1693, %v1789
        %v1791 = vpop.f32.mrb[0].mxu0
        %1792 = vmatprep.mubr.bf16.mxu0 0
        %1793 = vmatmul.mubr.bf16.gmra.mrb[0].mxu0 %v952
        %v1794 = vpop.f32.mrb[0].mxu0
        %v1795 = vadd.f32 %v1698, %v1794
        %v1796 = vpop.f32.mrb[0].mxu0
        %v1797 = vpop.f32.mrb[0].mxu0
        %v1798 = vadd.f32 %v1701, %v1797
        %v1799 = vpop.f32.mrb[0].mxu0
        %1800 = vdwg.mxu0
        %s1801 = scalar_lea.vmem %s5, 192
        %v1802 = vld [vmem:[%s1801] sm:$0xf]
        %v1803 = vld [vmem:[%s1801 + $0x4] sm:$0xf]
        %v1804 = vld [vmem:[%s1801 + $0x8] sm:$0xf]
        %v1805 = vld [vmem:[%s1801 + $0xc] sm:$0xf]
        %v1806 = vld [vmem:[%s1801 + $0x10] sm:$0xf]
        %v1807 = vld [vmem:[%s1801 + $0x14] sm:$0xf]
        %v1808 = vld [vmem:[%s1801 + $0x18] sm:$0xf]
        %v1809 = vld [vmem:[%s1801 + $0x1c] sm:$0xf]
        %v1810 = vld [vmem:[%s1801 + $0x20] sm:$0xf]
        %v1811 = vld [vmem:[%s1801 + $0x24] sm:$0xf]
        %v1812 = vld [vmem:[%s1801 + $0x28] sm:$0xf]
        %v1813 = vld [vmem:[%s1801 + $0x2c] sm:$0xf]
        %v1814 = vld [vmem:[%s1801 + $0x30] sm:$0xf]
        %v1815 = vld [vmem:[%s1801 + $0x34] sm:$0xf]
        %v1816 = vld [vmem:[%s1801 + $0x38] sm:$0xf]
        %v1817 = vld [vmem:[%s1801 + $0x3c] sm:$0xf]
        %v1818 = vld [vmem:[%s1801 + $0x40] sm:$0xf]
        %v1819 = vld [vmem:[%s1801 + $0x44] sm:$0xf]
        %v1820 = vld [vmem:[%s1801 + $0x48] sm:$0xf]
        %v1821 = vld [vmem:[%s1801 + $0x4c] sm:$0xf]
        %v1822 = vld [vmem:[%s1801 + $0x50] sm:$0xf]
        %v1823 = vld [vmem:[%s1801 + $0x54] sm:$0xf]
        %v1824 = vld [vmem:[%s1801 + $0x58] sm:$0xf]
        %v1825 = vld [vmem:[%s1801 + $0x5c] sm:$0xf]
        %v1826 = vld [vmem:[%s1801 + $0x60] sm:$0xf]
        %v1827 = vld [vmem:[%s1801 + $0x64] sm:$0xf]
        %v1828 = vld [vmem:[%s1801 + $0x68] sm:$0xf]
        %v1829 = vld [vmem:[%s1801 + $0x6c] sm:$0xf]
        %v1830 = vld [vmem:[%s1801 + $0x70] sm:$0xf]
        %v1831 = vld [vmem:[%s1801 + $0x74] sm:$0xf]
        %v1832 = vld [vmem:[%s1801 + $0x78] sm:$0xf]
        %v1833 = vld [vmem:[%s1801 + $0x7c] sm:$0xf]
        %v1834 = vld [vmem:[%s1801 + $0x80] sm:$0xf]
        %v1835 = vld [vmem:[%s1801 + $0x84] sm:$0xf]
        %v1836 = vld [vmem:[%s1801 + $0x88] sm:$0xf]
        %v1837 = vld [vmem:[%s1801 + $0x8c] sm:$0xf]
        %v1838 = vld [vmem:[%s1801 + $0x90] sm:$0xf]
        %v1839 = vld [vmem:[%s1801 + $0x94] sm:$0xf]
        %v1840 = vld [vmem:[%s1801 + $0x98] sm:$0xf]
        %v1841 = vld [vmem:[%s1801 + $0x9c] sm:$0xf]
        %v1842 = vld [vmem:[%s1801 + $0xa0] sm:$0xf]
        %v1843 = vld [vmem:[%s1801 + $0xa4] sm:$0xf]
        %v1844 = vld [vmem:[%s1801 + $0xa8] sm:$0xf]
        %v1845 = vld [vmem:[%s1801 + $0xac] sm:$0xf]
        %v1846 = vld [vmem:[%s1801 + $0xb0] sm:$0xf]
        %v1847 = vld [vmem:[%s1801 + $0xb4] sm:$0xf]
        %v1848 = vld [vmem:[%s1801 + $0xb8] sm:$0xf]
        %v1849 = vld [vmem:[%s1801 + $0xbc] sm:$0xf]
        %v1898 = vunpack.c.l.b16 %v1802
        %v1899 = vunpack.c.l.b16 %v1803
        %v1900 = vunpack.c.l.b16 %v1804
        %v1901 = vunpack.c.l.b16 %v1805
        %v1902 = vunpack.c.l.b16 %v1806
        %v1903 = vunpack.c.l.b16 %v1807
        %v1904 = vunpack.c.l.b16 %v1808
        %v1905 = vunpack.c.l.b16 %v1809
        %v1906 = vunpack.c.l.b16 %v1810
        %v1907 = vunpack.c.l.b16 %v1811
        %v1908 = vunpack.c.l.b16 %v1812
        %v1909 = vunpack.c.l.b16 %v1813
        %v1910 = vunpack.c.l.b16 %v1814
        %v1911 = vunpack.c.l.b16 %v1815
        %v1912 = vunpack.c.l.b16 %v1816
        %v1913 = vunpack.c.l.b16 %v1817
        %v1914 = vunpack.c.l.b16 %v1818
        %v1915 = vunpack.c.l.b16 %v1819
        %v1916 = vunpack.c.l.b16 %v1820
        %v1917 = vunpack.c.l.b16 %v1821
        %v1918 = vunpack.c.l.b16 %v1822
        %v1919 = vunpack.c.l.b16 %v1823
        %v1920 = vunpack.c.l.b16 %v1824
        %v1921 = vunpack.c.l.b16 %v1825
        %v1922 = vunpack.c.l.b16 %v1826
        %v1923 = vunpack.c.l.b16 %v1827
        %v1924 = vunpack.c.l.b16 %v1828
        %v1925 = vunpack.c.l.b16 %v1829
        %v1926 = vunpack.c.l.b16 %v1830
        %v1927 = vunpack.c.l.b16 %v1831
        %v1928 = vunpack.c.l.b16 %v1832
        %v1929 = vunpack.c.l.b16 %v1833
        %v1930 = vunpack.c.l.b16 %v1834
        %v1931 = vunpack.c.l.b16 %v1835
        %v1932 = vunpack.c.l.b16 %v1836
        %v1933 = vunpack.c.l.b16 %v1837
        %v1934 = vunpack.c.l.b16 %v1838
        %v1935 = vunpack.c.l.b16 %v1839
        %v1936 = vunpack.c.l.b16 %v1840
        %v1937 = vunpack.c.l.b16 %v1841
        %v1938 = vunpack.c.l.b16 %v1842
        %v1939 = vunpack.c.l.b16 %v1843
        %v1940 = vunpack.c.l.b16 %v1844
        %v1941 = vunpack.c.l.b16 %v1845
        %v1942 = vunpack.c.l.b16 %v1846
        %v1943 = vunpack.c.l.b16 %v1847
        %v1944 = vunpack.c.l.b16 %v1848
        %v1945 = vunpack.c.l.b16 %v1849
        %v1946 = vpack.c.b16 %v1899, %v1898
        %v1947 = vpack.c.b16 %v1901, %v1900
        %v1948 = vpack.c.b16 %v1903, %v1902
        %v1949 = vpack.c.b16 %v1905, %v1904
        %v1950 = vpack.c.b16 %v1907, %v1906
        %v1951 = vpack.c.b16 %v1909, %v1908
        %v1952 = vpack.c.b16 %v1911, %v1910
        %v1953 = vpack.c.b16 %v1913, %v1912
        %v1954 = vpack.c.b16 %v1915, %v1914
        %v1955 = vpack.c.b16 %v1917, %v1916
        %v1956 = vpack.c.b16 %v1919, %v1918
        %v1957 = vpack.c.b16 %v1921, %v1920
        %v1958 = vpack.c.b16 %v1923, %v1922
        %v1959 = vpack.c.b16 %v1925, %v1924
        %v1960 = vpack.c.b16 %v1927, %v1926
        %v1961 = vpack.c.b16 %v1929, %v1928
        %v1962 = vpack.c.b16 %v1931, %v1930
        %v1963 = vpack.c.b16 %v1933, %v1932
        %v1964 = vpack.c.b16 %v1935, %v1934
        %v1965 = vpack.c.b16 %v1937, %v1936
        %v1966 = vpack.c.b16 %v1939, %v1938
        %v1967 = vpack.c.b16 %v1941, %v1940
        %v1968 = vpack.c.b16 %v1943, %v1942
        %v1969 = vpack.c.b16 %v1945, %v1944
        %1994 = vmatprep.subr.bf16.mxu0 0
        %1995 = vmatpush1.bf16.msra.mxu0 %v1946
        %1996 = vmatprep.subr.bf16.mxu0 0
        %1997 = vmatpush1.bf16.msra.mxu0 %v1947
        %1998 = vmatprep.subr.bf16.mxu0 0
        %1999 = vmatpush1.bf16.msra.mxu0 %v1948
        %2000 = vmatprep.subr.bf16.mxu0 0
        %2001 = vmatpush1.bf16.msra.mxu0 %v1949
        %2002 = vmatprep.subr.bf16.mxu0 0
        %2003 = vmatpush1.bf16.msra.mxu0 %v1950
        %2004 = vmatprep.subr.bf16.mxu0 0
        %2005 = vmatpush1.bf16.msra.mxu0 %v1951
        %2006 = vmatprep.subr.bf16.mxu0 0
        %2007 = vmatpush1.bf16.msra.mxu0 %v1952
        %2008 = vmatprep.subr.bf16.mxu0 0
        %2009 = vmatpush1.bf16.msra.mxu0 %v1953
        %2010 = vmatprep.subr.bf16.mxu0 0
        %2011 = vmatpush1.bf16.msra.mxu0 %v1954
        %2012 = vmatprep.subr.bf16.mxu0 0
        %2013 = vmatpush1.bf16.msra.mxu0 %v1955
        %2014 = vmatprep.subr.bf16.mxu0 0
        %2015 = vmatpush1.bf16.msra.mxu0 %v1956
        %2016 = vmatprep.subr.bf16.mxu0 0
        %2017 = vmatpush1.bf16.msra.mxu0 %v1957
        %2018 = vmatprep.subr.bf16.mxu0 0
        %2019 = vmatpush1.bf16.msra.mxu0 %v1958
        %2020 = vmatprep.subr.bf16.mxu0 0
        %2021 = vmatpush1.bf16.msra.mxu0 %v1959
        %2022 = vmatprep.subr.bf16.mxu0 0
        %2023 = vmatpush1.bf16.msra.mxu0 %v1960
        %2024 = vmatprep.subr.bf16.mxu0 0
        %2025 = vmatpush1.bf16.msra.mxu0 %v1961
        %2026 = vmatprep.mubr.bf16.mxu0 %v831
        %2027 = vmatmul.mubr.bf16.gmra.mrb[0].mxu0 %v788
        %v2028 = vpop.f32.mrb[0].mxu0
        %v2029 = vadd.f32 0.0, %v2028
        %v2030 = vpop.f32.mrb[0].mxu0
        %v2031 = vpop.f32.mrb[0].mxu0
        %v2032 = vadd.f32 0.0, %v2031
        %v2033 = vpop.f32.mrb[0].mxu0
        %2034 = vmatprep.mubr.bf16.mxu0 %v843
        %2035 = vmatmul.mubr.bf16.gmra.mrb[0].mxu0 %v789
        %v2036 = vpop.f32.mrb[0].mxu0
        %v2037 = vadd.f32 0.0, %v2036
        %v2038 = vpop.f32.mrb[0].mxu0
        %v2039 = vpop.f32.mrb[0].mxu0
        %v2040 = vadd.f32 0.0, %v2039
        %v2041 = vpop.f32.mrb[0].mxu0
        %2042 = vmatprep.mubr.bf16.mxu0 %v855
        %2043 = vmatmul.mubr.bf16.gmra.mrb[0].mxu0 %v790
        %v2044 = vpop.f32.mrb[0].mxu0
        %v2045 = vadd.f32 0.0, %v2044
        %v2046 = vpop.f32.mrb[0].mxu0
        %v2047 = vpop.f32.mrb[0].mxu0
        %v2048 = vadd.f32 0.0, %v2047
        %v2049 = vpop.f32.mrb[0].mxu0
        %2050 = vmatprep.mubr.bf16.mxu0 %v867
        %2051 = vmatmul.mubr.bf16.gmra.mrb[0].mxu0 %v791
        %v2052 = vpop.f32.mrb[0].mxu0
        %v2053 = vadd.f32 0.0, %v2052
        %v2054 = vpop.f32.mrb[0].mxu0
        %v2055 = vpop.f32.mrb[0].mxu0
        %v2056 = vadd.f32 0.0, %v2055
        %v2057 = vpop.f32.mrb[0].mxu0
        %2058 = vmatprep.mubr.bf16.mxu0 %v879
        %2059 = vmatmul.mubr.bf16.gmra.mrb[0].mxu0 %v792
        %v2060 = vpop.f32.mrb[0].mxu0
        %v2061 = vadd.f32 0.0, %v2060
        %v2062 = vpop.f32.mrb[0].mxu0
        %v2063 = vpop.f32.mrb[0].mxu0
        %v2064 = vadd.f32 0.0, %v2063
        %v2065 = vpop.f32.mrb[0].mxu0
        %2066 = vmatprep.mubr.bf16.mxu0 %v891
        %2067 = vmatmul.mubr.bf16.gmra.mrb[0].mxu0 %v793
        %v2068 = vpop.f32.mrb[0].mxu0
        %v2069 = vadd.f32 0.0, %v2068
        %v2070 = vpop.f32.mrb[0].mxu0
        %v2071 = vpop.f32.mrb[0].mxu0
        %v2072 = vadd.f32 0.0, %v2071
        %v2073 = vpop.f32.mrb[0].mxu0
        %2074 = vmatprep.mubr.bf16.mxu0 %v903
        %2075 = vmatmul.mubr.bf16.gmra.mrb[0].mxu0 %v794
        %v2076 = vpop.f32.mrb[0].mxu0
        %v2077 = vadd.f32 0.0, %v2076
        %v2078 = vpop.f32.mrb[0].mxu0
        %v2079 = vpop.f32.mrb[0].mxu0
        %v2080 = vadd.f32 0.0, %v2079
        %v2081 = vpop.f32.mrb[0].mxu0
        %2082 = vmatprep.mubr.bf16.mxu0 %v1068
        %2083 = vmatmul.mubr.bf16.gmra.mrb[0].mxu0 %v795
        %v2084 = vpop.f32.mrb[0].mxu0
        %v2085 = vadd.f32 0.0, %v2084
        %v2086 = vpop.f32.mrb[0].mxu0
        %v2087 = vpop.f32.mrb[0].mxu0
        %v2088 = vadd.f32 0.0, %v2087
        %v2089 = vpop.f32.mrb[0].mxu0
        %2090 = vdwg.mxu0
        %2091 = vmatprep.subr.bf16.mxu0 0
        %2092 = vmatpush1.bf16.msra.mxu0 %v1962
        %2093 = vmatprep.subr.bf16.mxu0 0
        %2094 = vmatpush1.bf16.msra.mxu0 %v1963
        %2095 = vmatprep.subr.bf16.mxu0 0
        %2096 = vmatpush1.bf16.msra.mxu0 %v1964
        %2097 = vmatprep.subr.bf16.mxu0 0
        %2098 = vmatpush1.bf16.msra.mxu0 %v1965
        %2099 = vmatprep.subr.bf16.mxu0 0
        %2100 = vmatpush1.bf16.msra.mxu0 %v1966
        %2101 = vmatprep.subr.bf16.mxu0 0
        %2102 = vmatpush1.bf16.msra.mxu0 %v1967
        %2103 = vmatprep.subr.bf16.mxu0 0
        %2104 = vmatpush1.bf16.msra.mxu0 %v1968
        %2105 = vmatprep.subr.bf16.mxu0 0
        %2106 = vmatpush1.bf16.msra.mxu0 %v1969
        %2107 = vmatprep.subr.bf16.mxu0 0
        %2108 = vmatpush1.bf16.msra.mxu0 0
        %2109 = vmatprep.subr.bf16.mxu0 0
        %2110 = vmatpush1.bf16.msra.mxu0 0
        %2111 = vmatprep.subr.bf16.mxu0 0
        %2112 = vmatpush1.bf16.msra.mxu0 0
        %2113 = vmatprep.subr.bf16.mxu0 0
        %2114 = vmatpush1.bf16.msra.mxu0 0
        %2115 = vmatprep.subr.bf16.mxu0 0
        %2116 = vmatpush1.bf16.msra.mxu0 0
        %2117 = vmatprep.subr.bf16.mxu0 0
        %2118 = vmatpush1.bf16.msra.mxu0 0
        %2119 = vmatprep.subr.bf16.mxu0 0
        %2120 = vmatpush1.bf16.msra.mxu0 0
        %2121 = vmatprep.subr.bf16.mxu0 0
        %2122 = vmatpush1.bf16.msra.mxu0 0
        %2123 = vmatprep.mubr.bf16.mxu0 0
        %2124 = vmatmul.mubr.bf16.gmra.mrb[0].mxu0 %v934
        %v2125 = vpop.f32.mrb[0].mxu0
        %v2126 = vadd.f32 %v2029, %v2125
        %v2127 = vpop.f32.mrb[0].mxu0
        %v2128 = vpop.f32.mrb[0].mxu0
        %v2129 = vadd.f32 %v2032, %v2128
        %v2130 = vpop.f32.mrb[0].mxu0
        %2131 = vmatprep.mubr.bf16.mxu0 0
        %2132 = vmatmul.mubr.bf16.gmra.mrb[0].mxu0 %v937
        %v2133 = vpop.f32.mrb[0].mxu0
        %v2134 = vadd.f32 %v2037, %v2133
        %v2135 = vpop.f32.mrb[0].mxu0
        %v2136 = vpop.f32.mrb[0].mxu0
        %v2137 = vadd.f32 %v2040, %v2136
        %v2138 = vpop.f32.mrb[0].mxu0
        %2139 = vmatprep.mubr.bf16.mxu0 0
        %2140 = vmatmul.mubr.bf16.gmra.mrb[0].mxu0 %v940
        %v2141 = vpop.f32.mrb[0].mxu0
        %v2142 = vadd.f32 %v2045, %v2141
        %v2143 = vpop.f32.mrb[0].mxu0
        %v2144 = vpop.f32.mrb[0].mxu0
        %v2145 = vadd.f32 %v2048, %v2144
        %v2146 = vpop.f32.mrb[0].mxu0
        %2147 = vmatprep.mubr.bf16.mxu0 0
        %2148 = vmatmul.mubr.bf16.gmra.mrb[0].mxu0 %v943
        %v2149 = vpop.f32.mrb[0].mxu0
        %v2150 = vadd.f32 %v2053, %v2149
        %v2151 = vpop.f32.mrb[0].mxu0
        %v2152 = vpop.f32.mrb[0].mxu0
        %v2153 = vadd.f32 %v2056, %v2152
        %v2154 = vpop.f32.mrb[0].mxu0
        %2155 = vmatprep.mubr.bf16.mxu0 0
        %2156 = vmatmul.mubr.bf16.gmra.mrb[0].mxu0 %v946
        %v2157 = vpop.f32.mrb[0].mxu0
        %v2158 = vadd.f32 %v2061, %v2157
        %v2159 = vpop.f32.mrb[0].mxu0
        %v2160 = vpop.f32.mrb[0].mxu0
        %v2161 = vadd.f32 %v2064, %v2160
        %v2162 = vpop.f32.mrb[0].mxu0
        %2163 = vmatprep.mubr.bf16.mxu0 0
        %2164 = vmatmul.mubr.bf16.gmra.mrb[0].mxu0 %v949
        %v2165 = vpop.f32.mrb[0].mxu0
        %v2166 = vadd.f32 %v2069, %v2165
        %v2167 = vpop.f32.mrb[0].mxu0
        %v2168 = vpop.f32.mrb[0].mxu0
        %v2169 = vadd.f32 %v2072, %v2168
        %v2170 = vpop.f32.mrb[0].mxu0
        %2171 = vmatprep.mubr.bf16.mxu0 0
        %2172 = vmatmul.mubr.bf16.gmra.mrb[0].mxu0 %v952
        %v2173 = vpop.f32.mrb[0].mxu0
        %v2174 = vadd.f32 %v2077, %v2173
        %v2175 = vpop.f32.mrb[0].mxu0
        %v2176 = vpop.f32.mrb[0].mxu0
        %v2177 = vadd.f32 %v2080, %v2176
        %v2178 = vpop.f32.mrb[0].mxu0
        %2179 = vmatprep.mubr.bf16.mxu0 0
        %2180 = vmatmul.mubr.bf16.gmra.mrb[0].mxu0 %v1074
        %v2181 = vpop.f32.mrb[0].mxu0
        %v2182 = vadd.f32 %v2085, %v2181
        %v2183 = vpop.f32.mrb[0].mxu0
        %v2184 = vpop.f32.mrb[0].mxu0
        %v2185 = vadd.f32 %v2088, %v2184
        %v2186 = vpop.f32.mrb[0].mxu0
        %2187 = vdwg.mxu0
        %v2236 = vunpack.c.l.b16 %v1009
        %v2237 = vunpack.c.l.b16 %v1010
        %v2238 = vunpack.c.l.b16 %v1011
        %v2239 = vunpack.c.l.b16 %v1012
        %v2240 = vunpack.c.l.b16 %v1013
        %v2241 = vunpack.c.l.b16 %v1014
        %v2242 = vunpack.c.l.b16 %v1015
        %v2243 = vunpack.c.l.b16 %v1016
        %v2244 = vunpack.c.l.b16 %v1017
        %v2245 = vunpack.c.l.b16 %v1018
        %v2246 = vunpack.c.l.b16 %v1019
        %v2247 = vunpack.c.l.b16 %v1020
        %v2248 = vunpack.c.l.b16 %v1021
        %v2249 = vunpack.c.l.b16 %v1022
        %v2250 = vunpack.c.l.b16 %v1023
        %v2251 = vunpack.c.l.b16 %v1024
        %v2252 = vunpack.c.l.b16 %v1025
        %v2253 = vunpack.c.l.b16 %v1026
        %v2254 = vunpack.c.l.b16 %v1027
        %v2255 = vunpack.c.l.b16 %v1028
        %v2256 = vunpack.c.l.b16 %v1029
        %v2257 = vunpack.c.l.b16 %v1030
        %v2258 = vunpack.c.l.b16 %v1031
        %v2259 = vunpack.c.l.b16 %v1032
        %v2260 = vunpack.c.l.b16 %v1033
        %v2261 = vunpack.c.l.b16 %v1034
        %v2262 = vunpack.c.l.b16 %v1035
        %v2263 = vunpack.c.l.b16 %v1036
        %v2264 = vunpack.c.l.b16 %v1037
        %v2265 = vunpack.c.l.b16 %v1038
        %v2266 = vunpack.c.l.b16 %v1039
        %v2267 = vunpack.c.l.b16 %v1040
        %v2268 = vunpack.c.l.b16 %v1041
        %v2269 = vunpack.c.l.b16 %v1042
        %v2270 = vunpack.c.l.b16 %v1043
        %v2271 = vunpack.c.l.b16 %v1044
        %v2272 = vunpack.c.l.b16 %v1045
        %v2273 = vunpack.c.l.b16 %v1046
        %v2274 = vunpack.c.l.b16 %v1047
        %v2275 = vunpack.c.l.b16 %v1048
        %v2276 = vunpack.c.l.b16 %v1049
        %v2277 = vunpack.c.l.b16 %v1050
        %v2278 = vunpack.c.l.b16 %v1051
        %v2279 = vunpack.c.l.b16 %v1052
        %v2280 = vunpack.c.l.b16 %v1053
        %v2281 = vunpack.c.l.b16 %v1054
        %v2282 = vunpack.c.l.b16 %v1055
        %v2283 = vunpack.c.l.b16 %v1056
        %v2284 = vpack.c.b16 %v2237, %v2236
        %v2285 = vpack.c.b16 %v2239, %v2238
        %v2286 = vpack.c.b16 %v2241, %v2240
        %v2287 = vpack.c.b16 %v2243, %v2242
        %v2288 = vpack.c.b16 %v2245, %v2244
        %v2289 = vpack.c.b16 %v2247, %v2246
        %v2290 = vpack.c.b16 %v2249, %v2248
        %v2291 = vpack.c.b16 %v2251, %v2250
        %v2292 = vpack.c.b16 %v2253, %v2252
        %v2293 = vpack.c.b16 %v2255, %v2254
        %v2294 = vpack.c.b16 %v2257, %v2256
        %v2295 = vpack.c.b16 %v2259, %v2258
        %v2296 = vpack.c.b16 %v2261, %v2260
        %v2297 = vpack.c.b16 %v2263, %v2262
        %v2298 = vpack.c.b16 %v2265, %v2264
        %v2299 = vpack.c.b16 %v2267, %v2266
        %v2300 = vpack.c.b16 %v2269, %v2268
        %v2301 = vpack.c.b16 %v2271, %v2270
        %v2302 = vpack.c.b16 %v2273, %v2272
        %v2303 = vpack.c.b16 %v2275, %v2274
        %v2304 = vpack.c.b16 %v2277, %v2276
        %v2305 = vpack.c.b16 %v2279, %v2278
        %v2306 = vpack.c.b16 %v2281, %v2280
        %v2307 = vpack.c.b16 %v2283, %v2282
        %2332 = vmatprep.subr.bf16.mxu0 0
        %2333 = vmatpush1.bf16.msra.mxu0 %v2284
        %2334 = vmatprep.subr.bf16.mxu0 0
        %2335 = vmatpush1.bf16.msra.mxu0 %v2285
        %2336 = vmatprep.subr.bf16.mxu0 0
        %2337 = vmatpush1.bf16.msra.mxu0 %v2286
        %2338 = vmatprep.subr.bf16.mxu0 0
        %2339 = vmatpush1.bf16.msra.mxu0 %v2287
        %2340 = vmatprep.subr.bf16.mxu0 0
        %2341 = vmatpush1.bf16.msra.mxu0 %v2288
        %2342 = vmatprep.subr.bf16.mxu0 0
        %2343 = vmatpush1.bf16.msra.mxu0 %v2289
        %2344 = vmatprep.subr.bf16.mxu0 0
        %2345 = vmatpush1.bf16.msra.mxu0 %v2290
        %2346 = vmatprep.subr.bf16.mxu0 0
        %2347 = vmatpush1.bf16.msra.mxu0 %v2291
        %2348 = vmatprep.subr.bf16.mxu0 0
        %2349 = vmatpush1.bf16.msra.mxu0 %v2292
        %2350 = vmatprep.subr.bf16.mxu0 0
        %2351 = vmatpush1.bf16.msra.mxu0 %v2293
        %2352 = vmatprep.subr.bf16.mxu0 0
        %2353 = vmatpush1.bf16.msra.mxu0 %v2294
        %2354 = vmatprep.subr.bf16.mxu0 0
        %2355 = vmatpush1.bf16.msra.mxu0 %v2295
        %2356 = vmatprep.subr.bf16.mxu0 0
        %2357 = vmatpush1.bf16.msra.mxu0 %v2296
        %2358 = vmatprep.subr.bf16.mxu0 0
        %2359 = vmatpush1.bf16.msra.mxu0 %v2297
        %2360 = vmatprep.subr.bf16.mxu0 0
        %2361 = vmatpush1.bf16.msra.mxu0 %v2298
        %2362 = vmatprep.subr.bf16.mxu0 0
        %2363 = vmatpush1.bf16.msra.mxu0 %v2299
        %2364 = vmatprep.mubr.bf16.mxu0 %v819
        %2365 = vmatmul.mubr.bf16.gmra.mrb[0].mxu0 %v787
        %v2366 = vpop.f32.mrb[0].mxu0
        %v2367 = vadd.f32 %v2126, %v2366
        %v2368 = vpop.f32.mrb[0].mxu0
        %v2369 = vpop.f32.mrb[0].mxu0
        %v2370 = vadd.f32 %v2129, %v2369
        %v2371 = vpop.f32.mrb[0].mxu0
        %2372 = vmatprep.mubr.bf16.mxu0 %v831
        %2373 = vmatmul.mubr.bf16.gmra.mrb[0].mxu0 %v788
        %v2374 = vpop.f32.mrb[0].mxu0
        %v2375 = vadd.f32 %v2134, %v2374
        %v2376 = vpop.f32.mrb[0].mxu0
        %v2377 = vpop.f32.mrb[0].mxu0
        %v2378 = vadd.f32 %v2137, %v2377
        %v2379 = vpop.f32.mrb[0].mxu0
        %2380 = vmatprep.mubr.bf16.mxu0 %v843
        %2381 = vmatmul.mubr.bf16.gmra.mrb[0].mxu0 %v789
        %v2382 = vpop.f32.mrb[0].mxu0
        %v2383 = vadd.f32 %v2142, %v2382
        %v2384 = vpop.f32.mrb[0].mxu0
        %v2385 = vpop.f32.mrb[0].mxu0
        %v2386 = vadd.f32 %v2145, %v2385
        %v2387 = vpop.f32.mrb[0].mxu0
        %2388 = vmatprep.mubr.bf16.mxu0 %v855
        %2389 = vmatmul.mubr.bf16.gmra.mrb[0].mxu0 %v790
        %v2390 = vpop.f32.mrb[0].mxu0
        %v2391 = vadd.f32 %v2150, %v2390
        %v2392 = vpop.f32.mrb[0].mxu0
        %v2393 = vpop.f32.mrb[0].mxu0
        %v2394 = vadd.f32 %v2153, %v2393
        %v2395 = vpop.f32.mrb[0].mxu0
        %2396 = vmatprep.mubr.bf16.mxu0 %v867
        %2397 = vmatmul.mubr.bf16.gmra.mrb[0].mxu0 %v791
        %v2398 = vpop.f32.mrb[0].mxu0
        %v2399 = vadd.f32 %v2158, %v2398
        %v2400 = vpop.f32.mrb[0].mxu0
        %v2401 = vpop.f32.mrb[0].mxu0
        %v2402 = vadd.f32 %v2161, %v2401
        %v2403 = vpop.f32.mrb[0].mxu0
        %2404 = vmatprep.mubr.bf16.mxu0 %v879
        %2405 = vmatmul.mubr.bf16.gmra.mrb[0].mxu0 %v792
        %v2406 = vpop.f32.mrb[0].mxu0
        %v2407 = vadd.f32 %v2166, %v2406
        %v2408 = vpop.f32.mrb[0].mxu0
        %v2409 = vpop.f32.mrb[0].mxu0
        %v2410 = vadd.f32 %v2169, %v2409
        %v2411 = vpop.f32.mrb[0].mxu0
        %2412 = vmatprep.mubr.bf16.mxu0 %v891
        %2413 = vmatmul.mubr.bf16.gmra.mrb[0].mxu0 %v793
        %v2414 = vpop.f32.mrb[0].mxu0
        %v2415 = vadd.f32 %v2174, %v2414
        %v2416 = vpop.f32.mrb[0].mxu0
        %v2417 = vpop.f32.mrb[0].mxu0
        %v2418 = vadd.f32 %v2177, %v2417
        %v2419 = vpop.f32.mrb[0].mxu0
        %2420 = vmatprep.mubr.bf16.mxu0 %v903
        %2421 = vmatmul.mubr.bf16.gmra.mrb[0].mxu0 %v794
        %v2422 = vpop.f32.mrb[0].mxu0
        %v2423 = vadd.f32 %v2182, %v2422
        %v2424 = vpop.f32.mrb[0].mxu0
        %v2425 = vpop.f32.mrb[0].mxu0
        %v2426 = vadd.f32 %v2185, %v2425
        %v2427 = vpop.f32.mrb[0].mxu0
        %2428 = vdwg.mxu0
        %2429 = vmatprep.subr.bf16.mxu0 0
        %2430 = vmatpush1.bf16.msra.mxu0 %v2300
        %2431 = vmatprep.subr.bf16.mxu0 0
        %2432 = vmatpush1.bf16.msra.mxu0 %v2301
        %2433 = vmatprep.subr.bf16.mxu0 0
        %2434 = vmatpush1.bf16.msra.mxu0 %v2302
        %2435 = vmatprep.subr.bf16.mxu0 0
        %2436 = vmatpush1.bf16.msra.mxu0 %v2303
        %2437 = vmatprep.subr.bf16.mxu0 0
        %2438 = vmatpush1.bf16.msra.mxu0 %v2304
        %2439 = vmatprep.subr.bf16.mxu0 0
        %2440 = vmatpush1.bf16.msra.mxu0 %v2305
        %2441 = vmatprep.subr.bf16.mxu0 0
        %2442 = vmatpush1.bf16.msra.mxu0 %v2306
        %2443 = vmatprep.subr.bf16.mxu0 0
        %2444 = vmatpush1.bf16.msra.mxu0 %v2307
        %2445 = vmatprep.subr.bf16.mxu0 0
        %2446 = vmatpush1.bf16.msra.mxu0 0
        %2447 = vmatprep.subr.bf16.mxu0 0
        %2448 = vmatpush1.bf16.msra.mxu0 0
        %2449 = vmatprep.subr.bf16.mxu0 0
        %2450 = vmatpush1.bf16.msra.mxu0 0
        %2451 = vmatprep.subr.bf16.mxu0 0
        %2452 = vmatpush1.bf16.msra.mxu0 0
        %2453 = vmatprep.subr.bf16.mxu0 0
        %2454 = vmatpush1.bf16.msra.mxu0 0
        %2455 = vmatprep.subr.bf16.mxu0 0
        %2456 = vmatpush1.bf16.msra.mxu0 0
        %2457 = vmatprep.subr.bf16.mxu0 0
        %2458 = vmatpush1.bf16.msra.mxu0 0
        %2459 = vmatprep.subr.bf16.mxu0 0
        %2460 = vmatpush1.bf16.msra.mxu0 0
        %2461 = vmatprep.mubr.bf16.mxu0 0
        %2462 = vmatmul.mubr.bf16.gmra.mrb[0].mxu0 %v931
        %v2463 = vpop.f32.mrb[0].mxu0
        %v2464 = vadd.f32 %v2367, %v2463
        %v2465 = vpop.f32.mrb[0].mxu0
        %v2466 = vpop.f32.mrb[0].mxu0
        %v2467 = vadd.f32 %v2370, %v2466
        %v2468 = vpop.f32.mrb[0].mxu0
        %2469 = vmatprep.mubr.bf16.mxu0 0
        %2470 = vmatmul.mubr.bf16.gmra.mrb[0].mxu0 %v934
        %v2471 = vpop.f32.mrb[0].mxu0
        %v2472 = vadd.f32 %v2375, %v2471
        %v2473 = vpop.f32.mrb[0].mxu0
        %v2474 = vpop.f32.mrb[0].mxu0
        %v2475 = vadd.f32 %v2378, %v2474
        %v2476 = vpop.f32.mrb[0].mxu0
        %2477 = vmatprep.mubr.bf16.mxu0 0
        %2478 = vmatmul.mubr.bf16.gmra.mrb[0].mxu0 %v937
        %v2479 = vpop.f32.mrb[0].mxu0
        %v2480 = vadd.f32 %v2383, %v2479
        %v2481 = vpop.f32.mrb[0].mxu0
        %v2482 = vpop.f32.mrb[0].mxu0
        %v2483 = vadd.f32 %v2386, %v2482
        %v2484 = vpop.f32.mrb[0].mxu0
        %2485 = vmatprep.mubr.bf16.mxu0 0
        %2486 = vmatmul.mubr.bf16.gmra.mrb[0].mxu0 %v940
        %v2487 = vpop.f32.mrb[0].mxu0
        %v2488 = vadd.f32 %v2391, %v2487
        %v2489 = vpop.f32.mrb[0].mxu0
        %v2490 = vpop.f32.mrb[0].mxu0
        %v2491 = vadd.f32 %v2394, %v2490
        %v2492 = vpop.f32.mrb[0].mxu0
        %2493 = vmatprep.mubr.bf16.mxu0 0
        %2494 = vmatmul.mubr.bf16.gmra.mrb[0].mxu0 %v943
        %v2495 = vpop.f32.mrb[0].mxu0
        %v2496 = vadd.f32 %v2399, %v2495
        %v2497 = vpop.f32.mrb[0].mxu0
        %v2498 = vpop.f32.mrb[0].mxu0
        %v2499 = vadd.f32 %v2402, %v2498
        %v2500 = vpop.f32.mrb[0].mxu0
        %2501 = vmatprep.mubr.bf16.mxu0 0
        %2502 = vmatmul.mubr.bf16.gmra.mrb[0].mxu0 %v946
        %v2503 = vpop.f32.mrb[0].mxu0
        %v2504 = vadd.f32 %v2407, %v2503
        %v2505 = vpop.f32.mrb[0].mxu0
        %v2506 = vpop.f32.mrb[0].mxu0
        %v2507 = vadd.f32 %v2410, %v2506
        %v2508 = vpop.f32.mrb[0].mxu0
        %2509 = vmatprep.mubr.bf16.mxu0 0
        %2510 = vmatmul.mubr.bf16.gmra.mrb[0].mxu0 %v949
        %v2511 = vpop.f32.mrb[0].mxu0
        %v2512 = vadd.f32 %v2415, %v2511
        %v2513 = vpop.f32.mrb[0].mxu0
        %v2514 = vpop.f32.mrb[0].mxu0
        %v2515 = vadd.f32 %v2418, %v2514
        %v2516 = vpop.f32.mrb[0].mxu0
        %2517 = vmatprep.mubr.bf16.mxu0 0
        %2518 = vmatmul.mubr.bf16.gmra.mrb[0].mxu0 %v952
        %v2519 = vpop.f32.mrb[0].mxu0
        %v2520 = vadd.f32 %v2423, %v2519
        %v2521 = vpop.f32.mrb[0].mxu0
        %v2522 = vpop.f32.mrb[0].mxu0
        %v2523 = vadd.f32 %v2426, %v2522
        %v2524 = vpop.f32.mrb[0].mxu0
        %2525 = vdwg.mxu0
        %v2527 = vshrl.u32 %v796, 16
        %v2529 = vshll.u32 %v796, 16
        %v2531 = vrot.slane %v2529, 1
        %v2532 = vor.u32 %v2527, %v2531
        %v2534 = vshll.u32 %v806, 16
        %v2536 = vrot.slane %v2534, 1
        %v2537 = vsel %vm807, %v2532, %v2536
        %v2541 = vrot.slane %v796, 1
        %v2542 = vrot.slane %v806, 1
        %v2543 = vsel %vm928, %v2541, %v2542
        %s2545 = scalar_lea.vmem %s3, 384
        %v2546 = vld [vmem:[%s2545] sm:$0xf]
        %v2547 = vld [vmem:[%s2545 + $0x4] sm:$0xf]
        %v2548 = vld [vmem:[%s2545 + $0x8] sm:$0xf]
        %v2549 = vld [vmem:[%s2545 + $0xc] sm:$0xf]
        %v2550 = vld [vmem:[%s2545 + $0x10] sm:$0xf]
        %v2551 = vld [vmem:[%s2545 + $0x14] sm:$0xf]
        %v2552 = vld [vmem:[%s2545 + $0x18] sm:$0xf]
        %v2553 = vld [vmem:[%s2545 + $0x1c] sm:$0xf]
        %v2554 = vld [vmem:[%s2545 + $0x20] sm:$0xf]
        %v2555 = vld [vmem:[%s2545 + $0x24] sm:$0xf]
        %v2556 = vld [vmem:[%s2545 + $0x28] sm:$0xf]
        %v2557 = vld [vmem:[%s2545 + $0x2c] sm:$0xf]
        %v2558 = vld [vmem:[%s2545 + $0x30] sm:$0xf]
        %v2559 = vld [vmem:[%s2545 + $0x34] sm:$0xf]
        %v2560 = vld [vmem:[%s2545 + $0x38] sm:$0xf]
        %v2561 = vld [vmem:[%s2545 + $0x3c] sm:$0xf]
        %v2562 = vld [vmem:[%s2545 + $0x40] sm:$0xf]
        %v2563 = vld [vmem:[%s2545 + $0x44] sm:$0xf]
        %v2564 = vld [vmem:[%s2545 + $0x48] sm:$0xf]
        %v2565 = vld [vmem:[%s2545 + $0x4c] sm:$0xf]
        %v2566 = vld [vmem:[%s2545 + $0x50] sm:$0xf]
        %v2567 = vld [vmem:[%s2545 + $0x54] sm:$0xf]
        %v2568 = vld [vmem:[%s2545 + $0x58] sm:$0xf]
        %v2569 = vld [vmem:[%s2545 + $0x5c] sm:$0xf]
        %v2570 = vld [vmem:[%s2545 + $0x60] sm:$0xf]
        %v2571 = vld [vmem:[%s2545 + $0x64] sm:$0xf]
        %v2572 = vld [vmem:[%s2545 + $0x68] sm:$0xf]
        %v2573 = vld [vmem:[%s2545 + $0x6c] sm:$0xf]
        %v2574 = vld [vmem:[%s2545 + $0x70] sm:$0xf]
        %v2575 = vld [vmem:[%s2545 + $0x74] sm:$0xf]
        %v2576 = vld [vmem:[%s2545 + $0x78] sm:$0xf]
        %v2577 = vld [vmem:[%s2545 + $0x7c] sm:$0xf]
        %v2578 = vld [vmem:[%s2545 + $0x80] sm:$0xf]
        %v2579 = vld [vmem:[%s2545 + $0x84] sm:$0xf]
        %v2580 = vld [vmem:[%s2545 + $0x88] sm:$0xf]
        %v2581 = vld [vmem:[%s2545 + $0x8c] sm:$0xf]
        %v2582 = vld [vmem:[%s2545 + $0x90] sm:$0xf]
        %v2583 = vld [vmem:[%s2545 + $0x94] sm:$0xf]
        %v2584 = vld [vmem:[%s2545 + $0x98] sm:$0xf]
        %v2585 = vld [vmem:[%s2545 + $0x9c] sm:$0xf]
        %v2586 = vld [vmem:[%s2545 + $0xa0] sm:$0xf]
        %v2587 = vld [vmem:[%s2545 + $0xa4] sm:$0xf]
        %v2588 = vld [vmem:[%s2545 + $0xa8] sm:$0xf]
        %v2589 = vld [vmem:[%s2545 + $0xac] sm:$0xf]
        %v2590 = vld [vmem:[%s2545 + $0xb0] sm:$0xf]
        %v2591 = vld [vmem:[%s2545 + $0xb4] sm:$0xf]
        %v2592 = vld [vmem:[%s2545 + $0xb8] sm:$0xf]
        %v2593 = vld [vmem:[%s2545 + $0xbc] sm:$0xf]
        %v2642 = vunpack.c.l.b16 %v2546
        %v2643 = vunpack.c.l.b16 %v2547
        %v2644 = vunpack.c.l.b16 %v2548
        %v2645 = vunpack.c.l.b16 %v2549
        %v2646 = vunpack.c.l.b16 %v2550
        %v2647 = vunpack.c.l.b16 %v2551
        %v2648 = vunpack.c.l.b16 %v2552
        %v2649 = vunpack.c.l.b16 %v2553
        %v2650 = vunpack.c.l.b16 %v2554
        %v2651 = vunpack.c.l.b16 %v2555
        %v2652 = vunpack.c.l.b16 %v2556
        %v2653 = vunpack.c.l.b16 %v2557
        %v2654 = vunpack.c.l.b16 %v2558
        %v2655 = vunpack.c.l.b16 %v2559
        %v2656 = vunpack.c.l.b16 %v2560
        %v2657 = vunpack.c.l.b16 %v2561
        %v2658 = vunpack.c.l.b16 %v2562
        %v2659 = vunpack.c.l.b16 %v2563
        %v2660 = vunpack.c.l.b16 %v2564
        %v2661 = vunpack.c.l.b16 %v2565
        %v2662 = vunpack.c.l.b16 %v2566
        %v2663 = vunpack.c.l.b16 %v2567
        %v2664 = vunpack.c.l.b16 %v2568
        %v2665 = vunpack.c.l.b16 %v2569
        %v2666 = vunpack.c.l.b16 %v2570
        %v2667 = vunpack.c.l.b16 %v2571
        %v2668 = vunpack.c.l.b16 %v2572
        %v2669 = vunpack.c.l.b16 %v2573
        %v2670 = vunpack.c.l.b16 %v2574
        %v2671 = vunpack.c.l.b16 %v2575
        %v2672 = vunpack.c.l.b16 %v2576
        %v2673 = vunpack.c.l.b16 %v2577
        %v2674 = vunpack.c.l.b16 %v2578
        %v2675 = vunpack.c.l.b16 %v2579
        %v2676 = vunpack.c.l.b16 %v2580
        %v2677 = vunpack.c.l.b16 %v2581
        %v2678 = vunpack.c.l.b16 %v2582
        %v2679 = vunpack.c.l.b16 %v2583
        %v2680 = vunpack.c.l.b16 %v2584
        %v2681 = vunpack.c.l.b16 %v2585
        %v2682 = vunpack.c.l.b16 %v2586
        %v2683 = vunpack.c.l.b16 %v2587
        %v2684 = vunpack.c.l.b16 %v2588
        %v2685 = vunpack.c.l.b16 %v2589
        %v2686 = vunpack.c.l.b16 %v2590
        %v2687 = vunpack.c.l.b16 %v2591
        %v2688 = vunpack.c.l.b16 %v2592
        %v2689 = vunpack.c.l.b16 %v2593
        %v2690 = vpack.c.b16 %v2643, %v2642
        %v2691 = vpack.c.b16 %v2645, %v2644
        %v2692 = vpack.c.b16 %v2647, %v2646
        %v2693 = vpack.c.b16 %v2649, %v2648
        %v2694 = vpack.c.b16 %v2651, %v2650
        %v2695 = vpack.c.b16 %v2653, %v2652
        %v2696 = vpack.c.b16 %v2655, %v2654
        %v2697 = vpack.c.b16 %v2657, %v2656
        %v2698 = vpack.c.b16 %v2659, %v2658
        %v2699 = vpack.c.b16 %v2661, %v2660
        %v2700 = vpack.c.b16 %v2663, %v2662
        %v2701 = vpack.c.b16 %v2665, %v2664
        %v2702 = vpack.c.b16 %v2667, %v2666
        %v2703 = vpack.c.b16 %v2669, %v2668
        %v2704 = vpack.c.b16 %v2671, %v2670
        %v2705 = vpack.c.b16 %v2673, %v2672
        %v2706 = vpack.c.b16 %v2675, %v2674
        %v2707 = vpack.c.b16 %v2677, %v2676
        %v2708 = vpack.c.b16 %v2679, %v2678
        %v2709 = vpack.c.b16 %v2681, %v2680
        %v2710 = vpack.c.b16 %v2683, %v2682
        %v2711 = vpack.c.b16 %v2685, %v2684
        %v2712 = vpack.c.b16 %v2687, %v2686
        %v2713 = vpack.c.b16 %v2689, %v2688
        %2738 = vmatprep.subr.bf16.mxu0 0
        %2739 = vmatpush1.bf16.msra.mxu0 %v2690
        %2740 = vmatprep.subr.bf16.mxu0 0
        %2741 = vmatpush1.bf16.msra.mxu0 %v2691
        %2742 = vmatprep.subr.bf16.mxu0 0
        %2743 = vmatpush1.bf16.msra.mxu0 %v2692
        %2744 = vmatprep.subr.bf16.mxu0 0
        %2745 = vmatpush1.bf16.msra.mxu0 %v2693
        %2746 = vmatprep.subr.bf16.mxu0 0
        %2747 = vmatpush1.bf16.msra.mxu0 %v2694
        %2748 = vmatprep.subr.bf16.mxu0 0
        %2749 = vmatpush1.bf16.msra.mxu0 %v2695
        %2750 = vmatprep.subr.bf16.mxu0 0
        %2751 = vmatpush1.bf16.msra.mxu0 %v2696
        %2752 = vmatprep.subr.bf16.mxu0 0
        %2753 = vmatpush1.bf16.msra.mxu0 %v2697
        %2754 = vmatprep.subr.bf16.mxu0 0
        %2755 = vmatpush1.bf16.msra.mxu0 %v2698
        %2756 = vmatprep.subr.bf16.mxu0 0
        %2757 = vmatpush1.bf16.msra.mxu0 %v2699
        %2758 = vmatprep.subr.bf16.mxu0 0
        %2759 = vmatpush1.bf16.msra.mxu0 %v2700
        %2760 = vmatprep.subr.bf16.mxu0 0
        %2761 = vmatpush1.bf16.msra.mxu0 %v2701
        %2762 = vmatprep.subr.bf16.mxu0 0
        %2763 = vmatpush1.bf16.msra.mxu0 %v2702
        %2764 = vmatprep.subr.bf16.mxu0 0
        %2765 = vmatpush1.bf16.msra.mxu0 %v2703
        %2766 = vmatprep.subr.bf16.mxu0 0
        %2767 = vmatpush1.bf16.msra.mxu0 %v2704
        %2768 = vmatprep.subr.bf16.mxu0 0
        %2769 = vmatpush1.bf16.msra.mxu0 %v2705
        %2770 = vmatprep.mubr.bf16.mxu0 %v843
        %2771 = vmatmul.mubr.bf16.gmra.mrb[0].mxu0 %v789
        %v2772 = vpop.f32.mrb[0].mxu0
        %v2773 = vadd.f32 0.0, %v2772
        %v2774 = vpop.f32.mrb[0].mxu0
        %v2775 = vpop.f32.mrb[0].mxu0
        %v2776 = vadd.f32 0.0, %v2775
        %v2777 = vpop.f32.mrb[0].mxu0
        %2778 = vmatprep.mubr.bf16.mxu0 %v855
        %2779 = vmatmul.mubr.bf16.gmra.mrb[0].mxu0 %v790
        %v2780 = vpop.f32.mrb[0].mxu0
        %v2781 = vadd.f32 0.0, %v2780
        %v2782 = vpop.f32.mrb[0].mxu0
        %v2783 = vpop.f32.mrb[0].mxu0
        %v2784 = vadd.f32 0.0, %v2783
        %v2785 = vpop.f32.mrb[0].mxu0
        %2786 = vmatprep.mubr.bf16.mxu0 %v867
        %2787 = vmatmul.mubr.bf16.gmra.mrb[0].mxu0 %v791
        %v2788 = vpop.f32.mrb[0].mxu0
        %v2789 = vadd.f32 0.0, %v2788
        %v2790 = vpop.f32.mrb[0].mxu0
        %v2791 = vpop.f32.mrb[0].mxu0
        %v2792 = vadd.f32 0.0, %v2791
        %v2793 = vpop.f32.mrb[0].mxu0
        %2794 = vmatprep.mubr.bf16.mxu0 %v879
        %2795 = vmatmul.mubr.bf16.gmra.mrb[0].mxu0 %v792
        %v2796 = vpop.f32.mrb[0].mxu0
        %v2797 = vadd.f32 0.0, %v2796
        %v2798 = vpop.f32.mrb[0].mxu0
        %v2799 = vpop.f32.mrb[0].mxu0
        %v2800 = vadd.f32 0.0, %v2799
        %v2801 = vpop.f32.mrb[0].mxu0
        %2802 = vmatprep.mubr.bf16.mxu0 %v891
        %2803 = vmatmul.mubr.bf16.gmra.mrb[0].mxu0 %v793
        %v2804 = vpop.f32.mrb[0].mxu0
        %v2805 = vadd.f32 0.0, %v2804
        %v2806 = vpop.f32.mrb[0].mxu0
        %v2807 = vpop.f32.mrb[0].mxu0
        %v2808 = vadd.f32 0.0, %v2807
        %v2809 = vpop.f32.mrb[0].mxu0
        %2810 = vmatprep.mubr.bf16.mxu0 %v903
        %2811 = vmatmul.mubr.bf16.gmra.mrb[0].mxu0 %v794
        %v2812 = vpop.f32.mrb[0].mxu0
        %v2813 = vadd.f32 0.0, %v2812
        %v2814 = vpop.f32.mrb[0].mxu0
        %v2815 = vpop.f32.mrb[0].mxu0
        %v2816 = vadd.f32 0.0, %v2815
        %v2817 = vpop.f32.mrb[0].mxu0
        %2818 = vmatprep.mubr.bf16.mxu0 %v1068
        %2819 = vmatmul.mubr.bf16.gmra.mrb[0].mxu0 %v795
        %v2820 = vpop.f32.mrb[0].mxu0
        %v2821 = vadd.f32 0.0, %v2820
        %v2822 = vpop.f32.mrb[0].mxu0
        %v2823 = vpop.f32.mrb[0].mxu0
        %v2824 = vadd.f32 0.0, %v2823
        %v2825 = vpop.f32.mrb[0].mxu0
        %2826 = vmatprep.mubr.bf16.mxu0 %v2537
        %2827 = vmatmul.mubr.bf16.gmra.mrb[0].mxu0 %v796
        %v2828 = vpop.f32.mrb[0].mxu0
        %v2829 = vadd.f32 0.0, %v2828
        %v2830 = vpop.f32.mrb[0].mxu0
        %v2831 = vpop.f32.mrb[0].mxu0
        %v2832 = vadd.f32 0.0, %v2831
        %v2833 = vpop.f32.mrb[0].mxu0
        %2834 = vdwg.mxu0
        %2835 = vmatprep.subr.bf16.mxu0 0
        %2836 = vmatpush1.bf16.msra.mxu0 %v2706
        %2837 = vmatprep.subr.bf16.mxu0 0
        %2838 = vmatpush1.bf16.msra.mxu0 %v2707
        %2839 = vmatprep.subr.bf16.mxu0 0
        %2840 = vmatpush1.bf16.msra.mxu0 %v2708
        %2841 = vmatprep.subr.bf16.mxu0 0
        %2842 = vmatpush1.bf16.msra.mxu0 %v2709
        %2843 = vmatprep.subr.bf16.mxu0 0
        %2844 = vmatpush1.bf16.msra.mxu0 %v2710
        %2845 = vmatprep.subr.bf16.mxu0 0
        %2846 = vmatpush1.bf16.msra.mxu0 %v2711
        %2847 = vmatprep.subr.bf16.mxu0 0
        %2848 = vmatpush1.bf16.msra.mxu0 %v2712
        %2849 = vmatprep.subr.bf16.mxu0 0
        %2850 = vmatpush1.bf16.msra.mxu0 %v2713
        %2851 = vmatprep.subr.bf16.mxu0 0
        %2852 = vmatpush1.bf16.msra.mxu0 0
        %2853 = vmatprep.subr.bf16.mxu0 0
        %2854 = vmatpush1.bf16.msra.mxu0 0
        %2855 = vmatprep.subr.bf16.mxu0 0
        %2856 = vmatpush1.bf16.msra.mxu0 0
        %2857 = vmatprep.subr.bf16.mxu0 0
        %2858 = vmatpush1.bf16.msra.mxu0 0
        %2859 = vmatprep.subr.bf16.mxu0 0
        %2860 = vmatpush1.bf16.msra.mxu0 0
        %2861 = vmatprep.subr.bf16.mxu0 0
        %2862 = vmatpush1.bf16.msra.mxu0 0
        %2863 = vmatprep.subr.bf16.mxu0 0
        %2864 = vmatpush1.bf16.msra.mxu0 0
        %2865 = vmatprep.subr.bf16.mxu0 0
        %2866 = vmatpush1.bf16.msra.mxu0 0
        %2867 = vmatprep.mubr.bf16.mxu0 0
        %2868 = vmatmul.mubr.bf16.gmra.mrb[0].mxu0 %v937
        %v2869 = vpop.f32.mrb[0].mxu0
        %v2870 = vadd.f32 %v2773, %v2869
        %v2871 = vpop.f32.mrb[0].mxu0
        %v2872 = vpop.f32.mrb[0].mxu0
        %v2873 = vadd.f32 %v2776, %v2872
        %v2874 = vpop.f32.mrb[0].mxu0
        %2875 = vmatprep.mubr.bf16.mxu0 0
        %2876 = vmatmul.mubr.bf16.gmra.mrb[0].mxu0 %v940
        %v2877 = vpop.f32.mrb[0].mxu0
        %v2878 = vadd.f32 %v2781, %v2877
        %v2879 = vpop.f32.mrb[0].mxu0
        %v2880 = vpop.f32.mrb[0].mxu0
        %v2881 = vadd.f32 %v2784, %v2880
        %v2882 = vpop.f32.mrb[0].mxu0
        %2883 = vmatprep.mubr.bf16.mxu0 0
        %2884 = vmatmul.mubr.bf16.gmra.mrb[0].mxu0 %v943
        %v2885 = vpop.f32.mrb[0].mxu0
        %v2886 = vadd.f32 %v2789, %v2885
        %v2887 = vpop.f32.mrb[0].mxu0
        %v2888 = vpop.f32.mrb[0].mxu0
        %v2889 = vadd.f32 %v2792, %v2888
        %v2890 = vpop.f32.mrb[0].mxu0
        %2891 = vmatprep.mubr.bf16.mxu0 0
        %2892 = vmatmul.mubr.bf16.gmra.mrb[0].mxu0 %v946
        %v2893 = vpop.f32.mrb[0].mxu0
        %v2894 = vadd.f32 %v2797, %v2893
        %v2895 = vpop.f32.mrb[0].mxu0
        %v2896 = vpop.f32.mrb[0].mxu0
        %v2897 = vadd.f32 %v2800, %v2896
        %v2898 = vpop.f32.mrb[0].mxu0
        %2899 = vmatprep.mubr.bf16.mxu0 0
        %2900 = vmatmul.mubr.bf16.gmra.mrb[0].mxu0 %v949
        %v2901 = vpop.f32.mrb[0].mxu0
        %v2902 = vadd.f32 %v2805, %v2901
        %v2903 = vpop.f32.mrb[0].mxu0
        %v2904 = vpop.f32.mrb[0].mxu0
        %v2905 = vadd.f32 %v2808, %v2904
        %v2906 = vpop.f32.mrb[0].mxu0
        %2907 = vmatprep.mubr.bf16.mxu0 0
        %2908 = vmatmul.mubr.bf16.gmra.mrb[0].mxu0 %v952
        %v2909 = vpop.f32.mrb[0].mxu0
        %v2910 = vadd.f32 %v2813, %v2909
        %v2911 = vpop.f32.mrb[0].mxu0
        %v2912 = vpop.f32.mrb[0].mxu0
        %v2913 = vadd.f32 %v2816, %v2912
        %v2914 = vpop.f32.mrb[0].mxu0
        %2915 = vmatprep.mubr.bf16.mxu0 0
        %2916 = vmatmul.mubr.bf16.gmra.mrb[0].mxu0 %v1074
        %v2917 = vpop.f32.mrb[0].mxu0
        %v2918 = vadd.f32 %v2821, %v2917
        %v2919 = vpop.f32.mrb[0].mxu0
        %v2920 = vpop.f32.mrb[0].mxu0
        %v2921 = vadd.f32 %v2824, %v2920
        %v2922 = vpop.f32.mrb[0].mxu0
        %2923 = vmatprep.mubr.bf16.mxu0 0
        %2924 = vmatmul.mubr.bf16.gmra.mrb[0].mxu0 %v2543
        %v2925 = vpop.f32.mrb[0].mxu0
        %v2926 = vadd.f32 %v2829, %v2925
        %v2927 = vpop.f32.mrb[0].mxu0
        %v2928 = vpop.f32.mrb[0].mxu0
        %v2929 = vadd.f32 %v2832, %v2928
        %v2930 = vpop.f32.mrb[0].mxu0
        %2931 = vdwg.mxu0
        %v2932 = vadd.f32 %v1739, %v2870
        %v2933 = vadd.f32 %v1742, %v2873
        %v2934 = vadd.f32 %v1747, %v2878
        %v2935 = vadd.f32 %v1750, %v2881
        %v2936 = vadd.f32 %v1755, %v2886
        %v2937 = vadd.f32 %v1758, %v2889
        %v2938 = vadd.f32 %v1763, %v2894
        %v2939 = vadd.f32 %v1766, %v2897
        %v2940 = vadd.f32 %v1771, %v2902
        %v2941 = vadd.f32 %v1774, %v2905
        %v2942 = vadd.f32 %v1779, %v2910
        %v2943 = vadd.f32 %v1782, %v2913
        %v2944 = vadd.f32 %v1787, %v2918
        %v2945 = vadd.f32 %v1790, %v2921
        %v2946 = vadd.f32 %v1795, %v2926
        %v2947 = vadd.f32 %v1798, %v2929
        %s2948 = scalar_lea.vmem %s5, 384
        %v2949 = vld [vmem:[%s2948] sm:$0xf]
        %v2950 = vld [vmem:[%s2948 + $0x4] sm:$0xf]
        %v2951 = vld [vmem:[%s2948 + $0x8] sm:$0xf]
        %v2952 = vld [vmem:[%s2948 + $0xc] sm:$0xf]
        %v2953 = vld [vmem:[%s2948 + $0x10] sm:$0xf]
        %v2954 = vld [vmem:[%s2948 + $0x14] sm:$0xf]
        %v2955 = vld [vmem:[%s2948 + $0x18] sm:$0xf]
        %v2956 = vld [vmem:[%s2948 + $0x1c] sm:$0xf]
        %v2957 = vld [vmem:[%s2948 + $0x20] sm:$0xf]
        %v2958 = vld [vmem:[%s2948 + $0x24] sm:$0xf]
        %v2959 = vld [vmem:[%s2948 + $0x28] sm:$0xf]
        %v2960 = vld [vmem:[%s2948 + $0x2c] sm:$0xf]
        %v2961 = vld [vmem:[%s2948 + $0x30] sm:$0xf]
        %v2962 = vld [vmem:[%s2948 + $0x34] sm:$0xf]
        %v2963 = vld [vmem:[%s2948 + $0x38] sm:$0xf]
        %v2964 = vld [vmem:[%s2948 + $0x3c] sm:$0xf]
        %v2965 = vld [vmem:[%s2948 + $0x40] sm:$0xf]
        %v2966 = vld [vmem:[%s2948 + $0x44] sm:$0xf]
        %v2967 = vld [vmem:[%s2948 + $0x48] sm:$0xf]
        %v2968 = vld [vmem:[%s2948 + $0x4c] sm:$0xf]
        %v2969 = vld [vmem:[%s2948 + $0x50] sm:$0xf]
        %v2970 = vld [vmem:[%s2948 + $0x54] sm:$0xf]
        %v2971 = vld [vmem:[%s2948 + $0x58] sm:$0xf]
        %v2972 = vld [vmem:[%s2948 + $0x5c] sm:$0xf]
        %v2973 = vld [vmem:[%s2948 + $0x60] sm:$0xf]
        %v2974 = vld [vmem:[%s2948 + $0x64] sm:$0xf]
        %v2975 = vld [vmem:[%s2948 + $0x68] sm:$0xf]
        %v2976 = vld [vmem:[%s2948 + $0x6c] sm:$0xf]
        %v2977 = vld [vmem:[%s2948 + $0x70] sm:$0xf]
        %v2978 = vld [vmem:[%s2948 + $0x74] sm:$0xf]
        %v2979 = vld [vmem:[%s2948 + $0x78] sm:$0xf]
        %v2980 = vld [vmem:[%s2948 + $0x7c] sm:$0xf]
        %v2981 = vld [vmem:[%s2948 + $0x80] sm:$0xf]
        %v2982 = vld [vmem:[%s2948 + $0x84] sm:$0xf]
        %v2983 = vld [vmem:[%s2948 + $0x88] sm:$0xf]
        %v2984 = vld [vmem:[%s2948 + $0x8c] sm:$0xf]
        %v2985 = vld [vmem:[%s2948 + $0x90] sm:$0xf]
        %v2986 = vld [vmem:[%s2948 + $0x94] sm:$0xf]
        %v2987 = vld [vmem:[%s2948 + $0x98] sm:$0xf]
        %v2988 = vld [vmem:[%s2948 + $0x9c] sm:$0xf]
        %v2989 = vld [vmem:[%s2948 + $0xa0] sm:$0xf]
        %v2990 = vld [vmem:[%s2948 + $0xa4] sm:$0xf]
        %v2991 = vld [vmem:[%s2948 + $0xa8] sm:$0xf]
        %v2992 = vld [vmem:[%s2948 + $0xac] sm:$0xf]
        %v2993 = vld [vmem:[%s2948 + $0xb0] sm:$0xf]
        %v2994 = vld [vmem:[%s2948 + $0xb4] sm:$0xf]
        %v2995 = vld [vmem:[%s2948 + $0xb8] sm:$0xf]
        %v2996 = vld [vmem:[%s2948 + $0xbc] sm:$0xf]
        %v3045 = vunpack.c.l.b16 %v2949
        %v3046 = vunpack.c.l.b16 %v2950
        %v3047 = vunpack.c.l.b16 %v2951
        %v3048 = vunpack.c.l.b16 %v2952
        %v3049 = vunpack.c.l.b16 %v2953
        %v3050 = vunpack.c.l.b16 %v2954
        %v3051 = vunpack.c.l.b16 %v2955
        %v3052 = vunpack.c.l.b16 %v2956
        %v3053 = vunpack.c.l.b16 %v2957
        %v3054 = vunpack.c.l.b16 %v2958
        %v3055 = vunpack.c.l.b16 %v2959
        %v3056 = vunpack.c.l.b16 %v2960
        %v3057 = vunpack.c.l.b16 %v2961
        %v3058 = vunpack.c.l.b16 %v2962
        %v3059 = vunpack.c.l.b16 %v2963
        %v3060 = vunpack.c.l.b16 %v2964
        %v3061 = vunpack.c.l.b16 %v2965
        %v3062 = vunpack.c.l.b16 %v2966
        %v3063 = vunpack.c.l.b16 %v2967
        %v3064 = vunpack.c.l.b16 %v2968
        %v3065 = vunpack.c.l.b16 %v2969
        %v3066 = vunpack.c.l.b16 %v2970
        %v3067 = vunpack.c.l.b16 %v2971
        %v3068 = vunpack.c.l.b16 %v2972
        %v3069 = vunpack.c.l.b16 %v2973
        %v3070 = vunpack.c.l.b16 %v2974
        %v3071 = vunpack.c.l.b16 %v2975
        %v3072 = vunpack.c.l.b16 %v2976
        %v3073 = vunpack.c.l.b16 %v2977
        %v3074 = vunpack.c.l.b16 %v2978
        %v3075 = vunpack.c.l.b16 %v2979
        %v3076 = vunpack.c.l.b16 %v2980
        %v3077 = vunpack.c.l.b16 %v2981
        %v3078 = vunpack.c.l.b16 %v2982
        %v3079 = vunpack.c.l.b16 %v2983
        %v3080 = vunpack.c.l.b16 %v2984
        %v3081 = vunpack.c.l.b16 %v2985
        %v3082 = vunpack.c.l.b16 %v2986
        %v3083 = vunpack.c.l.b16 %v2987
        %v3084 = vunpack.c.l.b16 %v2988
        %v3085 = vunpack.c.l.b16 %v2989
        %v3086 = vunpack.c.l.b16 %v2990
        %v3087 = vunpack.c.l.b16 %v2991
        %v3088 = vunpack.c.l.b16 %v2992
        %v3089 = vunpack.c.l.b16 %v2993
        %v3090 = vunpack.c.l.b16 %v2994
        %v3091 = vunpack.c.l.b16 %v2995
        %v3092 = vunpack.c.l.b16 %v2996
        %v3093 = vpack.c.b16 %v3046, %v3045
        %v3094 = vpack.c.b16 %v3048, %v3047
        %v3095 = vpack.c.b16 %v3050, %v3049
        %v3096 = vpack.c.b16 %v3052, %v3051
        %v3097 = vpack.c.b16 %v3054, %v3053
        %v3098 = vpack.c.b16 %v3056, %v3055
        %v3099 = vpack.c.b16 %v3058, %v3057
        %v3100 = vpack.c.b16 %v3060, %v3059
        %v3101 = vpack.c.b16 %v3062, %v3061
        %v3102 = vpack.c.b16 %v3064, %v3063
        %v3103 = vpack.c.b16 %v3066, %v3065
        %v3104 = vpack.c.b16 %v3068, %v3067
        %v3105 = vpack.c.b16 %v3070, %v3069
        %v3106 = vpack.c.b16 %v3072, %v3071
        %v3107 = vpack.c.b16 %v3074, %v3073
        %v3108 = vpack.c.b16 %v3076, %v3075
        %v3109 = vpack.c.b16 %v3078, %v3077
        %v3110 = vpack.c.b16 %v3080, %v3079
        %v3111 = vpack.c.b16 %v3082, %v3081
        %v3112 = vpack.c.b16 %v3084, %v3083
        %v3113 = vpack.c.b16 %v3086, %v3085
        %v3114 = vpack.c.b16 %v3088, %v3087
        %v3115 = vpack.c.b16 %v3090, %v3089
        %v3116 = vpack.c.b16 %v3092, %v3091
        %3141 = vmatprep.subr.bf16.mxu0 0
        %3142 = vmatpush1.bf16.msra.mxu0 %v3093
        %3143 = vmatprep.subr.bf16.mxu0 0
        %3144 = vmatpush1.bf16.msra.mxu0 %v3094
        %3145 = vmatprep.subr.bf16.mxu0 0
        %3146 = vmatpush1.bf16.msra.mxu0 %v3095
        %3147 = vmatprep.subr.bf16.mxu0 0
        %3148 = vmatpush1.bf16.msra.mxu0 %v3096
        %3149 = vmatprep.subr.bf16.mxu0 0
        %3150 = vmatpush1.bf16.msra.mxu0 %v3097
        %3151 = vmatprep.subr.bf16.mxu0 0
        %3152 = vmatpush1.bf16.msra.mxu0 %v3098
        %3153 = vmatprep.subr.bf16.mxu0 0
        %3154 = vmatpush1.bf16.msra.mxu0 %v3099
        %3155 = vmatprep.subr.bf16.mxu0 0
        %3156 = vmatpush1.bf16.msra.mxu0 %v3100
        %3157 = vmatprep.subr.bf16.mxu0 0
        %3158 = vmatpush1.bf16.msra.mxu0 %v3101
        %3159 = vmatprep.subr.bf16.mxu0 0
        %3160 = vmatpush1.bf16.msra.mxu0 %v3102
        %3161 = vmatprep.subr.bf16.mxu0 0
        %3162 = vmatpush1.bf16.msra.mxu0 %v3103
        %3163 = vmatprep.subr.bf16.mxu0 0
        %3164 = vmatpush1.bf16.msra.mxu0 %v3104
        %3165 = vmatprep.subr.bf16.mxu0 0
        %3166 = vmatpush1.bf16.msra.mxu0 %v3105
        %3167 = vmatprep.subr.bf16.mxu0 0
        %3168 = vmatpush1.bf16.msra.mxu0 %v3106
        %3169 = vmatprep.subr.bf16.mxu0 0
        %3170 = vmatpush1.bf16.msra.mxu0 %v3107
        %3171 = vmatprep.subr.bf16.mxu0 0
        %3172 = vmatpush1.bf16.msra.mxu0 %v3108
        %3173 = vmatprep.mubr.bf16.mxu0 %v843
        %3174 = vmatmul.mubr.bf16.gmra.mrb[0].mxu0 %v789
        %v3175 = vpop.f32.mrb[0].mxu0
        %v3176 = vadd.f32 0.0, %v3175
        %v3177 = vpop.f32.mrb[0].mxu0
        %v3178 = vpop.f32.mrb[0].mxu0
        %v3179 = vadd.f32 0.0, %v3178
        %v3180 = vpop.f32.mrb[0].mxu0
        %3181 = vmatprep.mubr.bf16.mxu0 %v855
        %3182 = vmatmul.mubr.bf16.gmra.mrb[0].mxu0 %v790
        %v3183 = vpop.f32.mrb[0].mxu0
        %v3184 = vadd.f32 0.0, %v3183
        %v3185 = vpop.f32.mrb[0].mxu0
        %v3186 = vpop.f32.mrb[0].mxu0
        %v3187 = vadd.f32 0.0, %v3186
        %v3188 = vpop.f32.mrb[0].mxu0
        %3189 = vmatprep.mubr.bf16.mxu0 %v867
        %3190 = vmatmul.mubr.bf16.gmra.mrb[0].mxu0 %v791
        %v3191 = vpop.f32.mrb[0].mxu0
        %v3192 = vadd.f32 0.0, %v3191
        %v3193 = vpop.f32.mrb[0].mxu0
        %v3194 = vpop.f32.mrb[0].mxu0
        %v3195 = vadd.f32 0.0, %v3194
        %v3196 = vpop.f32.mrb[0].mxu0
        %3197 = vmatprep.mubr.bf16.mxu0 %v879
        %3198 = vmatmul.mubr.bf16.gmra.mrb[0].mxu0 %v792
        %v3199 = vpop.f32.mrb[0].mxu0
        %v3200 = vadd.f32 0.0, %v3199
        %v3201 = vpop.f32.mrb[0].mxu0
        %v3202 = vpop.f32.mrb[0].mxu0
        %v3203 = vadd.f32 0.0, %v3202
        %v3204 = vpop.f32.mrb[0].mxu0
        %3205 = vmatprep.mubr.bf16.mxu0 %v891
        %3206 = vmatmul.mubr.bf16.gmra.mrb[0].mxu0 %v793
        %v3207 = vpop.f32.mrb[0].mxu0
        %v3208 = vadd.f32 0.0, %v3207
        %v3209 = vpop.f32.mrb[0].mxu0
        %v3210 = vpop.f32.mrb[0].mxu0
        %v3211 = vadd.f32 0.0, %v3210
        %v3212 = vpop.f32.mrb[0].mxu0
        %3213 = vmatprep.mubr.bf16.mxu0 %v903
        %3214 = vmatmul.mubr.bf16.gmra.mrb[0].mxu0 %v794
        %v3215 = vpop.f32.mrb[0].mxu0
        %v3216 = vadd.f32 0.0, %v3215
        %v3217 = vpop.f32.mrb[0].mxu0
        %v3218 = vpop.f32.mrb[0].mxu0
        %v3219 = vadd.f32 0.0, %v3218
        %v3220 = vpop.f32.mrb[0].mxu0
        %3221 = vmatprep.mubr.bf16.mxu0 %v1068
        %3222 = vmatmul.mubr.bf16.gmra.mrb[0].mxu0 %v795
        %v3223 = vpop.f32.mrb[0].mxu0
        %v3224 = vadd.f32 0.0, %v3223
        %v3225 = vpop.f32.mrb[0].mxu0
        %v3226 = vpop.f32.mrb[0].mxu0
        %v3227 = vadd.f32 0.0, %v3226
        %v3228 = vpop.f32.mrb[0].mxu0
        %3229 = vmatprep.mubr.bf16.mxu0 %v2537
        %3230 = vmatmul.mubr.bf16.gmra.mrb[0].mxu0 %v796
        %v3231 = vpop.f32.mrb[0].mxu0
        %v3232 = vadd.f32 0.0, %v3231
        %v3233 = vpop.f32.mrb[0].mxu0
        %v3234 = vpop.f32.mrb[0].mxu0
        %v3235 = vadd.f32 0.0, %v3234
        %v3236 = vpop.f32.mrb[0].mxu0
        %3237 = vdwg.mxu0
        %3238 = vmatprep.subr.bf16.mxu0 0
        %3239 = vmatpush1.bf16.msra.mxu0 %v3109
        %3240 = vmatprep.subr.bf16.mxu0 0
        %3241 = vmatpush1.bf16.msra.mxu0 %v3110
        %3242 = vmatprep.subr.bf16.mxu0 0
        %3243 = vmatpush1.bf16.msra.mxu0 %v3111
        %3244 = vmatprep.subr.bf16.mxu0 0
        %3245 = vmatpush1.bf16.msra.mxu0 %v3112
        %3246 = vmatprep.subr.bf16.mxu0 0
        %3247 = vmatpush1.bf16.msra.mxu0 %v3113
        %3248 = vmatprep.subr.bf16.mxu0 0
        %3249 = vmatpush1.bf16.msra.mxu0 %v3114
        %3250 = vmatprep.subr.bf16.mxu0 0
        %3251 = vmatpush1.bf16.msra.mxu0 %v3115
        %3252 = vmatprep.subr.bf16.mxu0 0
        %3253 = vmatpush1.bf16.msra.mxu0 %v3116
        %3254 = vmatprep.subr.bf16.mxu0 0
        %3255 = vmatpush1.bf16.msra.mxu0 0
        %3256 = vmatprep.subr.bf16.mxu0 0
        %3257 = vmatpush1.bf16.msra.mxu0 0
        %3258 = vmatprep.subr.bf16.mxu0 0
        %3259 = vmatpush1.bf16.msra.mxu0 0
        %3260 = vmatprep.subr.bf16.mxu0 0
        %3261 = vmatpush1.bf16.msra.mxu0 0
        %3262 = vmatprep.subr.bf16.mxu0 0
        %3263 = vmatpush1.bf16.msra.mxu0 0
        %3264 = vmatprep.subr.bf16.mxu0 0
        %3265 = vmatpush1.bf16.msra.mxu0 0
        %3266 = vmatprep.subr.bf16.mxu0 0
        %3267 = vmatpush1.bf16.msra.mxu0 0
        %3268 = vmatprep.subr.bf16.mxu0 0
        %3269 = vmatpush1.bf16.msra.mxu0 0
        %3270 = vmatprep.mubr.bf16.mxu0 0
        %3271 = vmatmul.mubr.bf16.gmra.mrb[0].mxu0 %v937
        %v3272 = vpop.f32.mrb[0].mxu0
        %v3273 = vadd.f32 %v3176, %v3272
        %v3274 = vpop.f32.mrb[0].mxu0
        %v3275 = vpop.f32.mrb[0].mxu0
        %v3276 = vadd.f32 %v3179, %v3275
        %v3277 = vpop.f32.mrb[0].mxu0
        %3278 = vmatprep.mubr.bf16.mxu0 0
        %3279 = vmatmul.mubr.bf16.gmra.mrb[0].mxu0 %v940
        %v3280 = vpop.f32.mrb[0].mxu0
        %v3281 = vadd.f32 %v3184, %v3280
        %v3282 = vpop.f32.mrb[0].mxu0
        %v3283 = vpop.f32.mrb[0].mxu0
        %v3284 = vadd.f32 %v3187, %v3283
        %v3285 = vpop.f32.mrb[0].mxu0
        %3286 = vmatprep.mubr.bf16.mxu0 0
        %3287 = vmatmul.mubr.bf16.gmra.mrb[0].mxu0 %v943
        %v3288 = vpop.f32.mrb[0].mxu0
        %v3289 = vadd.f32 %v3192, %v3288
        %v3290 = vpop.f32.mrb[0].mxu0
        %v3291 = vpop.f32.mrb[0].mxu0
        %v3292 = vadd.f32 %v3195, %v3291
        %v3293 = vpop.f32.mrb[0].mxu0
        %3294 = vmatprep.mubr.bf16.mxu0 0
        %3295 = vmatmul.mubr.bf16.gmra.mrb[0].mxu0 %v946
        %v3296 = vpop.f32.mrb[0].mxu0
        %v3297 = vadd.f32 %v3200, %v3296
        %v3298 = vpop.f32.mrb[0].mxu0
        %v3299 = vpop.f32.mrb[0].mxu0
        %v3300 = vadd.f32 %v3203, %v3299
        %v3301 = vpop.f32.mrb[0].mxu0
        %3302 = vmatprep.mubr.bf16.mxu0 0
        %3303 = vmatmul.mubr.bf16.gmra.mrb[0].mxu0 %v949
        %v3304 = vpop.f32.mrb[0].mxu0
        %v3305 = vadd.f32 %v3208, %v3304
        %v3306 = vpop.f32.mrb[0].mxu0
        %v3307 = vpop.f32.mrb[0].mxu0
        %v3308 = vadd.f32 %v3211, %v3307
        %v3309 = vpop.f32.mrb[0].mxu0
        %3310 = vmatprep.mubr.bf16.mxu0 0
        %3311 = vmatmul.mubr.bf16.gmra.mrb[0].mxu0 %v952
        %v3312 = vpop.f32.mrb[0].mxu0
        %v3313 = vadd.f32 %v3216, %v3312
        %v3314 = vpop.f32.mrb[0].mxu0
        %v3315 = vpop.f32.mrb[0].mxu0
        %v3316 = vadd.f32 %v3219, %v3315
        %v3317 = vpop.f32.mrb[0].mxu0
        %3318 = vmatprep.mubr.bf16.mxu0 0
        %3319 = vmatmul.mubr.bf16.gmra.mrb[0].mxu0 %v1074
        %v3320 = vpop.f32.mrb[0].mxu0
        %v3321 = vadd.f32 %v3224, %v3320
        %v3322 = vpop.f32.mrb[0].mxu0
        %v3323 = vpop.f32.mrb[0].mxu0
        %v3324 = vadd.f32 %v3227, %v3323
        %v3325 = vpop.f32.mrb[0].mxu0
        %3326 = vmatprep.mubr.bf16.mxu0 0
        %3327 = vmatmul.mubr.bf16.gmra.mrb[0].mxu0 %v2543
        %v3328 = vpop.f32.mrb[0].mxu0
        %v3329 = vadd.f32 %v3232, %v3328
        %v3330 = vpop.f32.mrb[0].mxu0
        %v3331 = vpop.f32.mrb[0].mxu0
        %v3332 = vadd.f32 %v3235, %v3331
        %v3333 = vpop.f32.mrb[0].mxu0
        %3334 = vdwg.mxu0
        %v3335 = vadd.f32 %v2464, %v3273
        %v3336 = vadd.f32 %v2467, %v3276
        %v3337 = vadd.f32 %v2472, %v3281
        %v3338 = vadd.f32 %v2475, %v3284
        %v3339 = vadd.f32 %v2480, %v3289
        %v3340 = vadd.f32 %v2483, %v3292
        %v3341 = vadd.f32 %v2488, %v3297
        %v3342 = vadd.f32 %v2491, %v3300
        %v3343 = vadd.f32 %v2496, %v3305
        %v3344 = vadd.f32 %v2499, %v3308
        %v3345 = vadd.f32 %v2504, %v3313
        %v3346 = vadd.f32 %v2507, %v3316
        %v3347 = vadd.f32 %v2512, %v3321
        %v3348 = vadd.f32 %v2515, %v3324
        %v3349 = vadd.f32 %v2520, %v3329
        %v3350 = vadd.f32 %v2523, %v3332
        %v3351 = vld [vmem:[%s4] sm:$0x1]
        %v3353 = vlaneseq
        %v3354 = vshrl.u32 %v3353, 7
        %v3355 = vsub.s32 0, %v3354
        %v3356 = vrot.slane %v3351, %v3355
        %v3358 = vadd.f32 %v2932, %v3356
        %v3359 = vadd.f32 %v2933, %v3356
        %v3360 = vadd.f32 %v2934, %v3356
        %v3361 = vadd.f32 %v2935, %v3356
        %v3362 = vadd.f32 %v2936, %v3356
        %v3363 = vadd.f32 %v2937, %v3356
        %v3364 = vadd.f32 %v2938, %v3356
        %v3365 = vadd.f32 %v2939, %v3356
        %v3366 = vadd.f32 %v2940, %v3356
        %v3367 = vadd.f32 %v2941, %v3356
        %v3368 = vadd.f32 %v2942, %v3356
        %v3369 = vadd.f32 %v2943, %v3356
        %v3370 = vadd.f32 %v2944, %v3356
        %v3371 = vadd.f32 %v2945, %v3356
        %v3372 = vadd.f32 %v2946, %v3356
        %v3373 = vadd.f32 %v2947, %v3356
        %v3374 = vld [vmem:[%s6] sm:$0x1]
        %v3376 = vlaneseq
        %v3377 = vshrl.u32 %v3376, 7
        %v3378 = vsub.s32 0, %v3377
        %v3379 = vrot.slane %v3374, %v3378
        %v3381 = vadd.f32 %v3335, %v3379
        %v3382 = vadd.f32 %v3336, %v3379
        %v3383 = vadd.f32 %v3337, %v3379
        %v3384 = vadd.f32 %v3338, %v3379
        %v3385 = vadd.f32 %v3339, %v3379
        %v3386 = vadd.f32 %v3340, %v3379
        %v3387 = vadd.f32 %v3341, %v3379
        %v3388 = vadd.f32 %v3342, %v3379
        %v3389 = vadd.f32 %v3343, %v3379
        %v3390 = vadd.f32 %v3344, %v3379
        %v3391 = vadd.f32 %v3345, %v3379
        %v3392 = vadd.f32 %v3346, %v3379
        %v3393 = vadd.f32 %v3347, %v3379
        %v3394 = vadd.f32 %v3348, %v3379
        %v3395 = vadd.f32 %v3349, %v3379
        %v3396 = vadd.f32 %v3350, %v3379
        %v3397 = vld [vmem:[%s369] sm:$0xff]
        %v3398 = vld [vmem:[%s369 + $0x8] sm:$0xff]
        %v3399 = vld [vmem:[%s369 + $0x10] sm:$0xff]
        %v3400 = vld [vmem:[%s369 + $0x18] sm:$0xff]
        %v3401 = vld [vmem:[%s369 + $0x20] sm:$0xff]
        %v3402 = vld [vmem:[%s369 + $0x28] sm:$0xff]
        %v3403 = vld [vmem:[%s369 + $0x30] sm:$0xff]
        %v3404 = vld [vmem:[%s369 + $0x38] sm:$0xff]
        %v3405 = vld [vmem:[%s369 + $0x40] sm:$0xff]
        %v3406 = vld [vmem:[%s369 + $0x48] sm:$0xff]
        %v3407 = vld [vmem:[%s369 + $0x50] sm:$0xff]
        %v3408 = vld [vmem:[%s369 + $0x58] sm:$0xff]
        %v3409 = vld [vmem:[%s369 + $0x60] sm:$0xff]
        %v3410 = vld [vmem:[%s369 + $0x68] sm:$0xff]
        %v3411 = vld [vmem:[%s369 + $0x70] sm:$0xff]
        %v3412 = vld [vmem:[%s369 + $0x78] sm:$0xff]
        %3413 = vadd.xlane.f32.xlu0 %v3397
        %v3414 = vpop.xlane.xlu0 %3413
        %3415 = vadd.xlane.f32.xlu0 %v3398
        %v3416 = vpop.xlane.xlu0 %3415
        %3417 = vadd.xlane.f32.xlu0 %v3399
        %v3418 = vpop.xlane.xlu0 %3417
        %3419 = vadd.xlane.f32.xlu0 %v3400
        %v3420 = vpop.xlane.xlu0 %3419
        %3421 = vadd.xlane.f32.xlu0 %v3401
        %v3422 = vpop.xlane.xlu0 %3421
        %3423 = vadd.xlane.f32.xlu0 %v3402
        %v3424 = vpop.xlane.xlu0 %3423
        %3425 = vadd.xlane.f32.xlu0 %v3403
        %v3426 = vpop.xlane.xlu0 %3425
        %3427 = vadd.xlane.f32.xlu0 %v3404
        %v3428 = vpop.xlane.xlu0 %3427
        %3429 = vadd.xlane.f32.xlu0 %v3405
        %v3430 = vpop.xlane.xlu0 %3429
        %3431 = vadd.xlane.f32.xlu0 %v3406
        %v3432 = vpop.xlane.xlu0 %3431
        %3433 = vadd.xlane.f32.xlu0 %v3407
        %v3434 = vpop.xlane.xlu0 %3433
        %3435 = vadd.xlane.f32.xlu0 %v3408
        %v3436 = vpop.xlane.xlu0 %3435
        %3437 = vadd.xlane.f32.xlu0 %v3409
        %v3438 = vpop.xlane.xlu0 %3437
        %3439 = vadd.xlane.f32.xlu0 %v3410
        %v3440 = vpop.xlane.xlu0 %3439
        %3441 = vadd.xlane.f32.xlu0 %v3411
        %v3442 = vpop.xlane.xlu0 %3441
        %3443 = vadd.xlane.f32.xlu0 %v3412
        %v3444 = vpop.xlane.xlu0 %3443
        %v3445 = vrcp.pop 128.0
        %v3446 = vmul.f32 %v3414, %v3445
        %v3447 = vmul.f32 %v3416, %v3445
        %v3448 = vmul.f32 %v3418, %v3445
        %v3449 = vmul.f32 %v3420, %v3445
        %v3450 = vmul.f32 %v3422, %v3445
        %v3451 = vmul.f32 %v3424, %v3445
        %v3452 = vmul.f32 %v3426, %v3445
        %v3453 = vmul.f32 %v3428, %v3445
        %v3454 = vmul.f32 %v3430, %v3445
        %v3455 = vmul.f32 %v3432, %v3445
        %v3456 = vmul.f32 %v3434, %v3445
        %v3457 = vmul.f32 %v3436, %v3445
        %v3458 = vmul.f32 %v3438, %v3445
        %v3459 = vmul.f32 %v3440, %v3445
        %v3460 = vmul.f32 %v3442, %v3445
        %v3461 = vmul.f32 %v3444, %v3445
        %v3462 = vsub.f32 %v3397, %v3446
        %v3463 = vsub.f32 %v3398, %v3447
        %v3464 = vsub.f32 %v3399, %v3448
        %v3465 = vsub.f32 %v3400, %v3449
        %v3466 = vsub.f32 %v3401, %v3450
        %v3467 = vsub.f32 %v3402, %v3451
        %v3468 = vsub.f32 %v3403, %v3452
        %v3469 = vsub.f32 %v3404, %v3453
        %v3470 = vsub.f32 %v3405, %v3454
        %v3471 = vsub.f32 %v3406, %v3455
        %v3472 = vsub.f32 %v3407, %v3456
        %v3473 = vsub.f32 %v3408, %v3457
        %v3474 = vsub.f32 %v3409, %v3458
        %v3475 = vsub.f32 %v3410, %v3459
        %v3476 = vsub.f32 %v3411, %v3460
        %v3477 = vsub.f32 %v3412, %v3461
        %v3478 = vmul.f32 %v3462, %v3462
        %v3479 = vmul.f32 %v3463, %v3463
        %v3480 = vmul.f32 %v3464, %v3464
        %v3481 = vmul.f32 %v3465, %v3465
        %v3482 = vmul.f32 %v3466, %v3466
        %v3483 = vmul.f32 %v3467, %v3467
        %v3484 = vmul.f32 %v3468, %v3468
        %v3485 = vmul.f32 %v3469, %v3469
        %v3486 = vmul.f32 %v3470, %v3470
        %v3487 = vmul.f32 %v3471, %v3471
        %v3488 = vmul.f32 %v3472, %v3472
        %v3489 = vmul.f32 %v3473, %v3473
        %v3490 = vmul.f32 %v3474, %v3474
        %v3491 = vmul.f32 %v3475, %v3475
        %v3492 = vmul.f32 %v3476, %v3476
        %v3493 = vmul.f32 %v3477, %v3477
        %3494 = vadd.xlane.f32.xlu0 %v3478
        %v3495 = vpop.xlane.xlu0 %3494
        %3496 = vadd.xlane.f32.xlu0 %v3479
        %v3497 = vpop.xlane.xlu0 %3496
        %3498 = vadd.xlane.f32.xlu0 %v3480
        %v3499 = vpop.xlane.xlu0 %3498
        %3500 = vadd.xlane.f32.xlu0 %v3481
        %v3501 = vpop.xlane.xlu0 %3500
        %3502 = vadd.xlane.f32.xlu0 %v3482
        %v3503 = vpop.xlane.xlu0 %3502
        %3504 = vadd.xlane.f32.xlu0 %v3483
        %v3505 = vpop.xlane.xlu0 %3504
        %3506 = vadd.xlane.f32.xlu0 %v3484
        %v3507 = vpop.xlane.xlu0 %3506
        %3508 = vadd.xlane.f32.xlu0 %v3485
        %v3509 = vpop.xlane.xlu0 %3508
        %3510 = vadd.xlane.f32.xlu0 %v3486
        %v3511 = vpop.xlane.xlu0 %3510
        %3512 = vadd.xlane.f32.xlu0 %v3487
        %v3513 = vpop.xlane.xlu0 %3512
        %3514 = vadd.xlane.f32.xlu0 %v3488
        %v3515 = vpop.xlane.xlu0 %3514
        %3516 = vadd.xlane.f32.xlu0 %v3489
        %v3517 = vpop.xlane.xlu0 %3516
        %3518 = vadd.xlane.f32.xlu0 %v3490
        %v3519 = vpop.xlane.xlu0 %3518
        %3520 = vadd.xlane.f32.xlu0 %v3491
        %v3521 = vpop.xlane.xlu0 %3520
        %3522 = vadd.xlane.f32.xlu0 %v3492
        %v3523 = vpop.xlane.xlu0 %3522
        %3524 = vadd.xlane.f32.xlu0 %v3493
        %v3525 = vpop.xlane.xlu0 %3524
        %v3526 = vmul.f32 %v3495, 0.007874016
        %v3527 = vmul.f32 %v3497, 0.007874016
        %v3528 = vmul.f32 %v3499, 0.007874016
        %v3529 = vmul.f32 %v3501, 0.007874016
        %v3530 = vmul.f32 %v3503, 0.007874016
        %v3531 = vmul.f32 %v3505, 0.007874016
        %v3532 = vmul.f32 %v3507, 0.007874016
        %v3533 = vmul.f32 %v3509, 0.007874016
        %v3534 = vmul.f32 %v3511, 0.007874016
        %v3535 = vmul.f32 %v3513, 0.007874016
        %v3536 = vmul.f32 %v3515, 0.007874016
        %v3537 = vmul.f32 %v3517, 0.007874016
        %v3538 = vmul.f32 %v3519, 0.007874016
        %v3539 = vmul.f32 %v3521, 0.007874016
        %v3540 = vmul.f32 %v3523, 0.007874016
        %v3541 = vmul.f32 %v3525, 0.007874016
        %v3542 = vadd.f32 %v3526, 1e-08
        %v3543 = vadd.f32 %v3527, 1e-08
        %v3544 = vadd.f32 %v3528, 1e-08
        %v3545 = vadd.f32 %v3529, 1e-08
        %v3546 = vadd.f32 %v3530, 1e-08
        %v3547 = vadd.f32 %v3531, 1e-08
        %v3548 = vadd.f32 %v3532, 1e-08
        %v3549 = vadd.f32 %v3533, 1e-08
        %v3550 = vadd.f32 %v3534, 1e-08
        %v3551 = vadd.f32 %v3535, 1e-08
        %v3552 = vadd.f32 %v3536, 1e-08
        %v3553 = vadd.f32 %v3537, 1e-08
        %v3554 = vadd.f32 %v3538, 1e-08
        %v3555 = vadd.f32 %v3539, 1e-08
        %v3556 = vadd.f32 %v3540, 1e-08
        %v3557 = vadd.f32 %v3541, 1e-08
        %v3558 = vrsqrt.pop %v3542
        %v3559 = vrsqrt.pop %v3543
        %v3560 = vrsqrt.pop %v3544
        %v3561 = vrsqrt.pop %v3545
        %v3562 = vrsqrt.pop %v3546
        %v3563 = vrsqrt.pop %v3547
        %v3564 = vrsqrt.pop %v3548
        %v3565 = vrsqrt.pop %v3549
        %v3566 = vrsqrt.pop %v3550
        %v3567 = vrsqrt.pop %v3551
        %v3568 = vrsqrt.pop %v3552
        %v3569 = vrsqrt.pop %v3553
        %v3570 = vrsqrt.pop %v3554
        %v3571 = vrsqrt.pop %v3555
        %v3572 = vrsqrt.pop %v3556
        %v3573 = vrsqrt.pop %v3557
        %v3574 = vmul.f32 %v3462, %v3558
        %v3575 = vmul.f32 %v3463, %v3559
        %v3576 = vmul.f32 %v3464, %v3560
        %v3577 = vmul.f32 %v3465, %v3561
        %v3578 = vmul.f32 %v3466, %v3562
        %v3579 = vmul.f32 %v3467, %v3563
        %v3580 = vmul.f32 %v3468, %v3564
        %v3581 = vmul.f32 %v3469, %v3565
        %v3582 = vmul.f32 %v3470, %v3566
        %v3583 = vmul.f32 %v3471, %v3567
        %v3584 = vmul.f32 %v3472, %v3568
        %v3585 = vmul.f32 %v3473, %v3569
        %v3586 = vmul.f32 %v3474, %v3570
        %v3587 = vmul.f32 %v3475, %v3571
        %v3588 = vmul.f32 %v3476, %v3572
        %v3589 = vmul.f32 %v3477, %v3573
        %v3590 = vadd.f32 %v3358, 1.0
        %v3591 = vadd.f32 %v3359, 1.0
        %v3592 = vadd.f32 %v3360, 1.0
        %v3593 = vadd.f32 %v3361, 1.0
        %v3594 = vadd.f32 %v3362, 1.0
        %v3595 = vadd.f32 %v3363, 1.0
        %v3596 = vadd.f32 %v3364, 1.0
        %v3597 = vadd.f32 %v3365, 1.0
        %v3598 = vadd.f32 %v3366, 1.0
        %v3599 = vadd.f32 %v3367, 1.0
        %v3600 = vadd.f32 %v3368, 1.0
        %v3601 = vadd.f32 %v3369, 1.0
        %v3602 = vadd.f32 %v3370, 1.0
        %v3603 = vadd.f32 %v3371, 1.0
        %v3604 = vadd.f32 %v3372, 1.0
        %v3605 = vadd.f32 %v3373, 1.0
        %v3606 = vmul.f32 %v3590, %v3574
        %v3607 = vmul.f32 %v3591, %v3575
        %v3608 = vmul.f32 %v3592, %v3576
        %v3609 = vmul.f32 %v3593, %v3577
        %v3610 = vmul.f32 %v3594, %v3578
        %v3611 = vmul.f32 %v3595, %v3579
        %v3612 = vmul.f32 %v3596, %v3580
        %v3613 = vmul.f32 %v3597, %v3581
        %v3614 = vmul.f32 %v3598, %v3582
        %v3615 = vmul.f32 %v3599, %v3583
        %v3616 = vmul.f32 %v3600, %v3584
        %v3617 = vmul.f32 %v3601, %v3585
        %v3618 = vmul.f32 %v3602, %v3586
        %v3619 = vmul.f32 %v3603, %v3587
        %v3620 = vmul.f32 %v3604, %v3588
        %v3621 = vmul.f32 %v3605, %v3589
        %v3622 = vadd.f32 %v3606, %v3381
        %v3623 = vadd.f32 %v3607, %v3382
        %v3624 = vadd.f32 %v3608, %v3383
        %v3625 = vadd.f32 %v3609, %v3384
        %v3626 = vadd.f32 %v3610, %v3385
        %v3627 = vadd.f32 %v3611, %v3386
        %v3628 = vadd.f32 %v3612, %v3387
        %v3629 = vadd.f32 %v3613, %v3388
        %v3630 = vadd.f32 %v3614, %v3389
        %v3631 = vadd.f32 %v3615, %v3390
        %v3632 = vadd.f32 %v3616, %v3391
        %v3633 = vadd.f32 %v3617, %v3392
        %v3634 = vadd.f32 %v3618, %v3393
        %v3635 = vadd.f32 %v3619, %v3394
        %v3636 = vadd.f32 %v3620, %v3395
        %v3637 = vadd.f32 %v3621, %v3396
        %3638 = vst [vmem:[%s350] sm:$0xff] %v3622
        %3639 = vst [vmem:[%s350 + $0x8] sm:$0xff] %v3623
        %3640 = vst [vmem:[%s350 + $0x10] sm:$0xff] %v3624
        %3641 = vst [vmem:[%s350 + $0x18] sm:$0xff] %v3625
        %3642 = vst [vmem:[%s350 + $0x20] sm:$0xff] %v3626
        %3643 = vst [vmem:[%s350 + $0x28] sm:$0xff] %v3627
        %3644 = vst [vmem:[%s350 + $0x30] sm:$0xff] %v3628
        %3645 = vst [vmem:[%s350 + $0x38] sm:$0xff] %v3629
        %3646 = vst [vmem:[%s350 + $0x40] sm:$0xff] %v3630
        %3647 = vst [vmem:[%s350 + $0x48] sm:$0xff] %v3631
        %3648 = vst [vmem:[%s350 + $0x50] sm:$0xff] %v3632
        %3649 = vst [vmem:[%s350 + $0x58] sm:$0xff] %v3633
        %3650 = vst [vmem:[%s350 + $0x60] sm:$0xff] %v3634
        %3651 = vst [vmem:[%s350 + $0x68] sm:$0xff] %v3635
        %3652 = vst [vmem:[%s350 + $0x70] sm:$0xff] %v3636
        %3653 = vst [vmem:[%s350 + $0x78] sm:$0xff] %v3637
        %s3654 = sand.u32 %s226, 1
        %s3655 = scalar_lea.sflag [#allocation3], %s3654
        %s3656 = sand.u32 %s226, 1
        %s3657 = smul.addr %s3656, 128
        %s3658 = scalar_lea.vmem [#allocation2], %s3657
        // Predicated region
        $region53: #{spade_forward.1} parent=51 // pred_check
          %p3659 = pneg %p236
        $region54: #{spade_forward.1} parent=51 // pred_check_branch
          %3661 = sbr.rel (%p3659) target = $region56
        $region55: #{spade_forward.1} parent=51 // pred_region
          %s3662 = smul.u32 8, %s27
          %s3664 = ssub.s32 2048, 2048
          %3665 = vsyncadd %s3655, %s3664
          %s3666 = smul.addr %s3662, 2
          %s3667 = smul.addr %s26, 32
          %s3668 = sadd.s32 %s3666, %s3667
          %s3669 = smul.addr %s3668, 128
          %s3670 = scalar_lea.hbm %s8, %s3669
          %s3671 = sshll.u32 %s3658, 4
          %s3672 = int_to_ptr.vmem [resolvable:$true] %s3671
          %3677 = dma.vmem_to_hbm [thread:$0]  %s3672, 2048, %s3670, %s3655, 128, 128, 8
        $region56: #{spade_forward.1} parent=51 // pred_fallthru
          _
      $region52: #{spade_forward.1} parent=5 // pred_fallthru
        _
      %p3678 = scmp.le.s32.totalorder 2, %s17
      // Predicated region
      $region57: #{spade_forward.1} parent=5 // pred_check
        %p3679 = pneg %p3678
      $region58: #{spade_forward.1} parent=5 // pred_check_branch
        %3681 = sbr.rel (%p3679) target = $region60
      $region59: #{spade_forward.1} parent=5 // pred_region
        %s3682 = ssub.s32 %s17, 2
        // Predicated region
        $region61: #{spade_forward.1} parent=59 // pred_check
          %p3683 = pneg %p242
        $region62: #{spade_forward.1} parent=59 // pred_check_branch
          %3685 = sbr.rel (%p3683) target = $region64
        $region63: #{spade_forward.1} parent=59 // pred_region
          %s3686 = sand.u32 %s227, 1
          %s3687 = scalar_lea.sflag [#allocation3], %s3686
          %s3688 = sand.u32 %s227, 1
          %s3689 = smul.addr %s3688, 128
          %s3690 = scalar_lea.vmem [#allocation2], %s3689
          %3691 = dma.done %s3687, 2048
        $region64: #{spade_forward.1} parent=59 // pred_fallthru
          _
      $region60: #{spade_forward.1} parent=5 // pred_fallthru
        _
    $region6: #{spade_forward.1} parent=1 // loop_footer
      %s21 = sadd.s32 1, %s17
    $region7: #{spade_forward.1} parent=1 // loop_footer_branch
      %16 = sbr.rel target = $region3
    $region8: #{spade_forward.1} parent=1 // loop_exit
      _
    %3692 = vsyncpa [#allocation3], 1
    %s3693 = scalar_lea.sflag [#allocation3], 1
    %3694 = vsyncpa %s3693, 1

</llo_original>
